<compile_context>
chip_gen: v6e
topology: v6e:2x2x1
jax: 0.10.0
libtpu: 0.0.40
codegen_flags: <defaults>
</compile_context>

<pallas_src>
import functools

import jax
import jax.numpy as jnp
from jax import lax
from jax.experimental import pallas as pl
from jax.experimental.pallas import tpu as pltpu

# Keep every f32 matmul (XLA reference *and* in-kernel MXU dots) at full f32
# accuracy so the kernel/reference comparison below stays tight.
jax.config.update("jax_default_matmul_precision", "highest")

# ----------------------------- configuration -------------------------------
B = 2
DIM_Q = 8
DIM_KV = 12
H, W = 7, 6                    # deliberately not window-aligned -> pad + crop
H_SP, W_SP = 4, 4
S = H_SP * W_SP                # tokens per window
SHARED_DIM = 16
NUM_HEADS = 2
HEAD_DIM = SHARED_DIM // NUM_HEADS
SCALE = HEAD_DIM ** (-0.5)

TOK_DIM = DIM_Q + DIM_KV + 1          # q rows + kv rows + ones row (bias trick)
PAR_ROWS = 3 * SHARED_DIM + DIM_Q     # fused q/k/v proj rows + output proj rows
NEG_INF = -1e30                       # off-window mask value (finite: no NaNs)


# ------------------------------ glue helpers -------------------------------
def img2windows(img, H_sp, W_sp):
    """NCHW image -> (B*nWh*nWw, H_sp*W_sp, C) windows (reference path)."""
    Bn, C, Hh, Ww = img.shape
    pad_r = (W_sp - Ww % W_sp) % W_sp
    pad_b = (H_sp - Hh % H_sp) % H_sp
    img = jnp.pad(img, ((0, 0), (0, 0), (0, pad_b), (0, pad_r)))
    Hp, Wp = img.shape[2], img.shape[3]
    img = img.reshape(Bn, C, Hp // H_sp, H_sp, Wp // W_sp, W_sp)
    windows = img.transpose(0, 2, 4, 3, 5, 1).reshape(-1, H_sp * W_sp, C)
    return windows, Hp, Wp


def img2windows_t(img, H_sp, W_sp):
    """NCHW image -> lane-dense transposed windows (C, B*nWh*nWw*H_sp*W_sp)."""
    Bn, C, Hh, Ww = img.shape
    pad_r = (W_sp - Ww % W_sp) % W_sp
    pad_b = (H_sp - Hh % H_sp) % H_sp
    img = jnp.pad(img, ((0, 0), (0, 0), (0, pad_b), (0, pad_r)))
    Hp, Wp = img.shape[2], img.shape[3]
    img = img.reshape(Bn, C, Hp // H_sp, H_sp, Wp // W_sp, W_sp)
    t = img.transpose(1, 0, 2, 4, 3, 5).reshape(C, -1)   # same token order as above
    return t, Hp, Wp


def windows2img(windows, H_sp, W_sp, Hp, Wp, Bn):
    """(B*nWh*nWw, H_sp*W_sp, C) windows -> NCHW image (reference path)."""
    C = windows.shape[-1]
    x = windows.reshape(Bn, Hp // H_sp, Wp // W_sp, H_sp, W_sp, C)
    x = x.transpose(0, 1, 3, 2, 4, 5).reshape(Bn, Hp, Wp, C)
    return x.transpose(0, 3, 1, 2)


def make_relative_position_index(H_sp, W_sp):
    coords_h = jnp.arange(H_sp)
    coords_w = jnp.arange(W_sp)
    coords = jnp.stack(jnp.meshgrid(coords_h, coords_w, indexing="ij"))   # (2,Hs,Ws)
    coords_flatten = coords.reshape(2, -1)                                # (2, S)
    rel = coords_flatten[:, :, None] - coords_flatten[:, None, :]         # (2, S, S)
    rel = rel.transpose(1, 2, 0)                                          # (S, S, 2)
    rel = rel.at[:, :, 0].add(H_sp - 1)
    rel = rel.at[:, :, 1].add(W_sp - 1)
    rel = rel.at[:, :, 0].multiply(2 * W_sp - 1)
    return rel.sum(-1)                                                    # (S, S)


def precompute_rel_bias(rel_table):
    """(nH, S, S) relative position bias, [h, query, key]."""
    rel_index = make_relative_position_index(H_SP, W_SP)
    rel_bias = rel_table[rel_index.reshape(-1)]
    return rel_bias.reshape(S, S, NUM_HEADS).transpose(2, 0, 1)


def precompute_bias_mask_t(rel_table, nw):
    """Transposed block-diagonal bias/mask (nH, n_tok, n_tok), [h, key, query].

    Diagonal 16x16 blocks carry the relative-position bias; off-window entries
    are NEG_INF so one dense 128-wide score matmul replaces 8 tiny per-window
    ones (constant for a fixed window size / table / token count)."""
    rel_bias = precompute_rel_bias(rel_table)              # (nH, S, S) [h, q, k]
    blk_t = jnp.transpose(rel_bias, (0, 2, 1))             # [h, key, query]
    n_tok = nw * S
    tiled = jnp.tile(blk_t, (1, nw, nw))                   # (nH, n_tok, n_tok)
    win = jnp.arange(n_tok) // S
    same = win[:, None] == win[None, :]
    return jnp.where(same[None, :, :], tiled, jnp.float32(NEG_INF))


def pack_params(params):
    """Pack all projection weights/biases into one (PAR_ROWS, TOK_DIM) buffer.

    rows 0:16   (scale*Wq)^T | zeros        | (scale*bq)^T   (q projection)
    rows 16:32  zeros        | Wk^T         | bk^T           (k projection)
    rows 32:48  zeros        | Wv^T         | bv^T           (v projection)
    rows 48:56  Wo^T (8,16)  | zeros        | bo^T           (output projection)
    The last token row is a constant 1, so the biases ride in the matmul."""
    bias_col = TOK_DIM - 1
    w = jnp.zeros((PAR_ROWS, TOK_DIM), jnp.float32)
    w = w.at[0:SHARED_DIM, 0:DIM_Q].set((SCALE * params["wq"]).T)
    w = w.at[0:SHARED_DIM, bias_col].set(SCALE * params["bq"].reshape(-1))
    w = w.at[SHARED_DIM:2 * SHARED_DIM, DIM_Q:DIM_Q + DIM_KV].set(params["wk"].T)
    w = w.at[SHARED_DIM:2 * SHARED_DIM, bias_col].set(params["bk"].reshape(-1))
    w = w.at[2 * SHARED_DIM:3 * SHARED_DIM, DIM_Q:DIM_Q + DIM_KV].set(params["wv"].T)
    w = w.at[2 * SHARED_DIM:3 * SHARED_DIM, bias_col].set(params["bv"].reshape(-1))
    w = w.at[3 * SHARED_DIM:, 0:SHARED_DIM].set(params["wo"].T)
    w = w.at[3 * SHARED_DIM:, bias_col].set(params["bo"].reshape(-1))
    return w


# ------------------------------ Pallas kernel -------------------------------
def _attn_kernel(tok_ref, par_ref, bias_ref, out_ref, *,
                 num_heads, head_dim, shared_dim, dim_q, tok_dim):
    tok = tok_ref[...]                                   # (tok_dim, N) lane-dense
    par = par_ref[...]                                   # (PAR_ROWS, tok_dim)

    # Fused q/k/v projections + biases (+ q pre-scaled): ONE MXU pass.
    proj = jnp.dot(par[0:3 * shared_dim, :], tok,
                   preferred_element_type=jnp.float32)   # (3*shared_dim, N)

    o_parts = []
    for h in range(num_heads):                           # tiny static loop (2 heads)
        q_h = proj[h * head_dim:(h + 1) * head_dim, :]                       # (hd, N)
        k_h = proj[shared_dim + h * head_dim:
                   shared_dim + (h + 1) * head_dim, :]                       # (hd, N)
        v_h = proj[2 * shared_dim + h * head_dim:
                   2 * shared_dim + (h + 1) * head_dim, :]                   # (hd, N)

        # Dense transposed scores (keys, queries): one 128-wide MXU pass;
        # off-window entries are masked by the precomputed NEG_INF bias.
        st = lax.dot_general(k_h, q_h, (((0,), (0,)), ((), ())),
                             preferred_element_type=jnp.float32)             # (N, N)
        st = st + bias_ref[h]
        st = st - jnp.max(st, axis=0, keepdims=True)     # lane-dense (1, N) max
        p = jnp.exp(st)                                  # masked entries -> 0
        denom = jnp.sum(p, axis=0, keepdims=True)        # lane-dense (1, N)

        # PV first, normalize after: scale (hd, N) instead of (N, N).
        o_un = jnp.dot(v_h, p, preferred_element_type=jnp.float32)           # (hd, N)
        o_parts.append(o_un * pl.reciprocal(denom, approx=False))

    o_t = jnp.concatenate(o_parts, axis=0)               # (shared_dim, N)

    # Output projection directly in transposed form -> lane-dense (8, N) store.
    wo_t = par[3 * shared_dim:3 * shared_dim + dim_q, 0:shared_dim]          # (dq, sd)
    bo_t = par[3 * shared_dim:3 * shared_dim + dim_q, tok_dim - 1:tok_dim]   # (dq, 1)
    out = jnp.dot(wo_t, o_t, preferred_element_type=jnp.float32) + bo_t
    out_ref[...] = out.astype(out_ref.dtype)


def cross_window_attention_pallas(tokens, packed_params, bias_t):
    """tokens: (TOK_DIM, n_tok), packed_params: (PAR_ROWS, TOK_DIM),
    bias_t: (nH, n_tok, n_tok) -> (DIM_Q, n_tok)."""
    tok_dim, n_tok = tokens.shape
    par_rows = packed_params.shape[0]
    assert packed_params.shape[1] == tok_dim
    assert bias_t.shape == (NUM_HEADS, n_tok, n_tok)

    kernel = functools.partial(
        _attn_kernel, num_heads=NUM_HEADS, head_dim=HEAD_DIM,
        shared_dim=SHARED_DIM, dim_q=DIM_Q, tok_dim=tok_dim)

    return pl.pallas_call(
        kernel,
        out_shape=jax.ShapeDtypeStruct((DIM_Q, n_tok), jnp.float32),
        grid=(1,),                                       # whole problem in one step
        in_specs=[
            pl.BlockSpec((tok_dim, n_tok), lambda i: (0, 0)),          # tokens
            pl.BlockSpec((par_rows, tok_dim), lambda i: (0, 0)),       # packed params
            pl.BlockSpec((NUM_HEADS, n_tok, n_tok), lambda i: (0, 0, 0)),  # bias/mask
        ],
        out_specs=pl.BlockSpec((DIM_Q, n_tok), lambda i: (0, 0)),      # (8, 128) vst
        compiler_params=pltpu.CompilerParams(
            dimension_semantics=("arbitrary",),
            vmem_limit_bytes=16 * 1024 * 1024),          # working set << limit everywhere
    )(tokens, packed_params, bias_t)


# ------------------------------ module forward ------------------------------
def cross_spatial_window_attention(x_q, x_kv, packed_params, bias_t):
    """x_q: (B, dim_q, H, W), x_kv: (B, dim_kv, H, W) -> (B, dim_q, H, W)."""
    Bn, C_q, Hh, Ww = x_q.shape
    q_t, Hp, Wp = img2windows_t(x_q, H_SP, W_SP)         # (dim_q, n_tok) lane-dense
    kv_t, _, _ = img2windows_t(x_kv, H_SP, W_SP)         # (dim_kv, n_tok)
    n_tok = q_t.shape[1]

    ones = jnp.ones((1, n_tok), jnp.float32)             # bias row for fused proj
    tokens = jnp.concatenate([q_t, kv_t, ones], axis=0)  # (TOK_DIM, n_tok)

    out_t = cross_window_attention_pallas(tokens, packed_params, bias_t)

    # Fold the (dim_q, n_tok) un-transpose into the window merge.
    nwh, nww = Hp // H_SP, Wp // W_SP
    out = out_t.reshape(C_q, Bn, nwh, nww, H_SP, W_SP)
    out = out.transpose(1, 0, 2, 4, 3, 5).reshape(Bn, C_q, Hp, Wp)
    return out[:, :, :Hh, :Ww]


# ------------------------------ pure-JAX reference ---------------------------
def reference(x_q, x_kv, params):
    Bn, _, Hh, Ww = x_q.shape
    qw, Hp, Wp = img2windows(x_q, H_SP, W_SP)
    kvw, _, _ = img2windows(x_kv, H_SP, W_SP)
    q = qw @ params["wq"] + params["bq"]
    k = kvw @ params["wk"] + params["bk"]
    v = kvw @ params["wv"] + params["bv"]
    Nw = q.shape[0]
    q = q.reshape(Nw, S, NUM_HEADS, HEAD_DIM).transpose(0, 2, 1, 3)
    k = k.reshape(Nw, S, NUM_HEADS, HEAD_DIM).transpose(0, 2, 1, 3)
    v = v.reshape(Nw, S, NUM_HEADS, HEAD_DIM).transpose(0, 2, 1, 3)
    attn = jnp.einsum("nhqd,nhkd->nhqk", q, k) * SCALE
    rel_bias = precompute_rel_bias(params["rel_table"])
    attn = attn + rel_bias[None]
    attn = jax.nn.softmax(attn, axis=-1)
    out = jnp.einsum("nhqk,nhkd->nhqd", attn, v).transpose(0, 2, 1, 3)
    out = out.reshape(Nw, S, SHARED_DIM) @ params["wo"] + params["bo"]
    out = windows2img(out, H_SP, W_SP, Hp, Wp, Bn)
    return out[:, :, :Hh, :Ww]


# ---------------------------------- main ------------------------------------
if __name__ == "__main__":
    key = jax.random.PRNGKey(0)
    keys = jax.random.split(key, 12)

    # deterministic synthetic parameters (nn.Linear stored here as (in, out))
    params = {
        "wq": 0.1 * jax.random.normal(keys[0], (DIM_Q, SHARED_DIM), jnp.float32),
        "bq": 0.1 * jax.random.normal(keys[1], (1, SHARED_DIM), jnp.float32),
        "wk": 0.1 * jax.random.normal(keys[2], (DIM_KV, SHARED_DIM), jnp.float32),
        "bk": 0.1 * jax.random.normal(keys[3], (1, SHARED_DIM), jnp.float32),
        "wv": 0.1 * jax.random.normal(keys[4], (DIM_KV, SHARED_DIM), jnp.float32),
        "bv": 0.1 * jax.random.normal(keys[5], (1, SHARED_DIM), jnp.float32),
        "wo": 0.1 * jax.random.normal(keys[6], (SHARED_DIM, DIM_Q), jnp.float32),
        "bo": 0.1 * jax.random.normal(keys[7], (1, DIM_Q), jnp.float32),
        # trunc_normal_(std=0.02) approximated with a plain normal (synthetic)
        "rel_table": 0.02 * jax.random.normal(
            keys[8], ((2 * H_SP - 1) * (2 * W_SP - 1), NUM_HEADS), jnp.float32),
    }

    # Constants for a fixed window size / table / image size -> computed once.
    packed_params = pack_params(params)
    nw = B * ((H + H_SP - 1) // H_SP) * ((W + W_SP - 1) // W_SP)   # 8 windows
    bias_t = precompute_bias_mask_t(params["rel_table"], nw)        # (2, 128, 128)

    x_q = jax.random.normal(keys[9], (B, DIM_Q, H, W), jnp.float32)
    x_kv = jax.random.normal(keys[10], (B, DIM_KV, H, W), jnp.float32)

    # One jit over the whole forward (window split/merge glue + kernel).
    fwd = jax.jit(cross_spatial_window_attention)
    out = jax.block_until_ready(fwd(x_q, x_kv, packed_params, bias_t))

    ref = jax.block_until_ready(reference(x_q, x_kv, params))
    assert out.shape == (B, DIM_Q, H, W), out.shape
    max_err = float(jnp.max(jnp.abs(out - ref)))
    # Both paths run f32 matmuls at "highest" precision -> expected error ~1e-6.
    assert jnp.allclose(out, ref, atol=1e-4, rtol=1e-4), max_err

    print("KERNEL_OK")
</pallas_src>

<mosaic_0001>
module attributes {stable_mosaic.version = 11 : i64} {
  func.func @_attn_kernel(%arg0: i32, %arg1: memref<21x128xf32, #tpu.memory_space<vmem>>, %arg2: memref<56x21xf32, #tpu.memory_space<vmem>>, %arg3: memref<2x128x128xf32, #tpu.memory_space<vmem>>, %arg4: memref<8x128xf32, #tpu.memory_space<vmem>>) attributes {dimension_semantics = [#tpu.dimension_semantics<arbitrary>], iteration_bounds = array<i64: 1>, scalar_prefetch = 0 : i64, scratch_operands = 0 : i64, tpu.core_type = #tpu.core_type<tc>, window_params = [{pipeline_mode = #tpu.pipeline_mode<synchronous>, transform_indices = @transform_0, window_bounds = array<i64: 21, 128>}, {pipeline_mode = #tpu.pipeline_mode<synchronous>, transform_indices = @transform_1, window_bounds = array<i64: 56, 21>}, {pipeline_mode = #tpu.pipeline_mode<synchronous>, transform_indices = @transform_2, window_bounds = array<i64: 2, 128, 128>}, {pipeline_mode = #tpu.pipeline_mode<synchronous>, transform_indices = @transform_3, window_bounds = array<i64: 8, 128>}]} {
    %c0 = arith.constant 0 : index
    %c0_0 = arith.constant 0 : index
    %0 = vector.load %arg1[%c0, %c0_0] : memref<21x128xf32, #tpu.memory_space<vmem>>, vector<21x128xf32>
    %c0_1 = arith.constant 0 : index
    %c0_2 = arith.constant 0 : index
    %1 = vector.load %arg2[%c0_1, %c0_2] : memref<56x21xf32, #tpu.memory_space<vmem>>, vector<56x21xf32>
    %2 = vector.extract_strided_slice %1 {offsets = [0, 0], sizes = [48, 21], strides = [1, 1]} : vector<56x21xf32> to vector<48x21xf32>
    %cst = arith.constant dense<0.000000e+00> : vector<48x128xf32>
    %3 = tpu.matmul %2, %0, %cst {dimension_numbers = #tpu.dot_dimension_numbers<[1], [0], [0], [1], [0, 0, 1, 1], [], []>, precision = #tpu.contract_precision<fp32>} : vector<48x21xf32>, vector<21x128xf32>, vector<48x128xf32> -> vector<48x128xf32>
    %4 = vector.extract_strided_slice %3 {offsets = [0, 0], sizes = [8, 128], strides = [1, 1]} : vector<48x128xf32> to vector<8x128xf32>
    %5 = vector.extract_strided_slice %3 {offsets = [16, 0], sizes = [8, 128], strides = [1, 1]} : vector<48x128xf32> to vector<8x128xf32>
    %6 = vector.extract_strided_slice %3 {offsets = [32, 0], sizes = [8, 128], strides = [1, 1]} : vector<48x128xf32> to vector<8x128xf32>
    %cst_3 = arith.constant dense<0.000000e+00> : vector<128x128xf32>
    %7 = tpu.matmul %5, %4, %cst_3 {dimension_numbers = #tpu.dot_dimension_numbers<[0], [0], [1], [1], [0, 1, 1, 1], [], []>, precision = #tpu.contract_precision<fp32>} : vector<8x128xf32>, vector<8x128xf32>, vector<128x128xf32> -> vector<128x128xf32>
    %c0_4 = arith.constant 0 : index
    %c0_5 = arith.constant 0 : index
    %c0_6 = arith.constant 0 : index
    %8 = vector.load %arg3[%c0_4, %c0_5, %c0_6] : memref<2x128x128xf32, #tpu.memory_space<vmem>>, vector<1x128x128xf32>
    %9 = vector.shape_cast %8 : vector<1x128x128xf32> to vector<128x128xf32>
    %10 = arith.addf %7, %9 : vector<128x128xf32>
    %cst_7 = arith.constant dense<0xFF800000> : vector<128xf32>
    %11 = vector.multi_reduction <maximumf>, %10, %cst_7 [0] : vector<128x128xf32> to vector<128xf32>
    %12 = vector.shape_cast %11 : vector<128xf32> to vector<1x128xf32>
    %13 = vector.broadcast %12 : vector<1x128xf32> to vector<128x128xf32>
    %14 = arith.subf %10, %13 : vector<128x128xf32>
    %15 = math.exp %14 : vector<128x128xf32>
    %cst_8 = arith.constant dense<0.000000e+00> : vector<128xf32>
    %16 = vector.multi_reduction <add>, %15, %cst_8 [0] : vector<128x128xf32> to vector<128xf32>
    %17 = vector.shape_cast %16 : vector<128xf32> to vector<1x128xf32>
    %cst_9 = arith.constant dense<0.000000e+00> : vector<8x128xf32>
    %18 = tpu.matmul %6, %15, %cst_9 {dimension_numbers = #tpu.dot_dimension_numbers<[1], [0], [0], [1], [0, 0, 1, 1], [], []>, precision = #tpu.contract_precision<fp32>} : vector<8x128xf32>, vector<128x128xf32>, vector<8x128xf32> -> vector<8x128xf32>
    %19 = tpu.reciprocal %17 : vector<1x128xf32> -> vector<1x128xf32>
    %20 = vector.broadcast %19 : vector<1x128xf32> to vector<8x128xf32>
    %21 = arith.mulf %18, %20 : vector<8x128xf32>
    %22 = vector.extract_strided_slice %3 {offsets = [8, 0], sizes = [8, 128], strides = [1, 1]} : vector<48x128xf32> to vector<8x128xf32>
    %23 = vector.extract_strided_slice %3 {offsets = [24, 0], sizes = [8, 128], strides = [1, 1]} : vector<48x128xf32> to vector<8x128xf32>
    %24 = vector.extract_strided_slice %3 {offsets = [40, 0], sizes = [8, 128], strides = [1, 1]} : vector<48x128xf32> to vector<8x128xf32>
    %cst_10 = arith.constant dense<0.000000e+00> : vector<128x128xf32>
    %25 = tpu.matmul %23, %22, %cst_10 {dimension_numbers = #tpu.dot_dimension_numbers<[0], [0], [1], [1], [0, 1, 1, 1], [], []>, precision = #tpu.contract_precision<fp32>} : vector<8x128xf32>, vector<8x128xf32>, vector<128x128xf32> -> vector<128x128xf32>
    %c1 = arith.constant 1 : index
    %c0_11 = arith.constant 0 : index
    %c0_12 = arith.constant 0 : index
    %26 = vector.load %arg3[%c1, %c0_11, %c0_12] : memref<2x128x128xf32, #tpu.memory_space<vmem>>, vector<1x128x128xf32>
    %27 = vector.shape_cast %26 : vector<1x128x128xf32> to vector<128x128xf32>
    %28 = arith.addf %25, %27 : vector<128x128xf32>
    %cst_13 = arith.constant dense<0xFF800000> : vector<128xf32>
    %29 = vector.multi_reduction <maximumf>, %28, %cst_13 [0] : vector<128x128xf32> to vector<128xf32>
    %30 = vector.shape_cast %29 : vector<128xf32> to vector<1x128xf32>
    %31 = vector.broadcast %30 : vector<1x128xf32> to vector<128x128xf32>
    %32 = arith.subf %28, %31 : vector<128x128xf32>
    %33 = math.exp %32 : vector<128x128xf32>
    %cst_14 = arith.constant dense<0.000000e+00> : vector<128xf32>
    %34 = vector.multi_reduction <add>, %33, %cst_14 [0] : vector<128x128xf32> to vector<128xf32>
    %35 = vector.shape_cast %34 : vector<128xf32> to vector<1x128xf32>
    %cst_15 = arith.constant dense<0.000000e+00> : vector<8x128xf32>
    %36 = tpu.matmul %24, %33, %cst_15 {dimension_numbers = #tpu.dot_dimension_numbers<[1], [0], [0], [1], [0, 0, 1, 1], [], []>, precision = #tpu.contract_precision<fp32>} : vector<8x128xf32>, vector<128x128xf32>, vector<8x128xf32> -> vector<8x128xf32>
    %37 = tpu.reciprocal %35 : vector<1x128xf32> -> vector<1x128xf32>
    %38 = vector.broadcast %37 : vector<1x128xf32> to vector<8x128xf32>
    %39 = arith.mulf %36, %38 : vector<8x128xf32>
    %40 = tpu.concatenate %21, %39 in 0 : vector<8x128xf32>, vector<8x128xf32> -> vector<16x128xf32>
    %41 = vector.extract_strided_slice %1 {offsets = [48, 0], sizes = [8, 16], strides = [1, 1]} : vector<56x21xf32> to vector<8x16xf32>
    %42 = vector.extract_strided_slice %1 {offsets = [48, 20], sizes = [8, 1], strides = [1, 1]} : vector<56x21xf32> to vector<8x1xf32>
    %cst_16 = arith.constant dense<0.000000e+00> : vector<8x128xf32>
    %43 = tpu.matmul %41, %40, %cst_16 {dimension_numbers = #tpu.dot_dimension_numbers<[1], [0], [0], [1], [0, 0, 1, 1], [], []>, precision = #tpu.contract_precision<fp32>} : vector<8x16xf32>, vector<16x128xf32>, vector<8x128xf32> -> vector<8x128xf32>
    %44 = vector.broadcast %42 : vector<8x1xf32> to vector<8x128xf32>
    %45 = arith.addf %43, %44 : vector<8x128xf32>
    %c0_17 = arith.constant 0 : index
    %c0_18 = arith.constant 0 : index
    %46 = vector.load %arg4[%c0_17, %c0_18] : memref<8x128xf32, #tpu.memory_space<vmem>>, vector<8x128xf32>
    tpu.vector_store %arg4[%c0_17, %c0_18], %45 {strides = array<i32>} : memref<8x128xf32, #tpu.memory_space<vmem>>, vector<8x128xf32>,
    return
  }
  func.func @transform_0(%arg0: i32) -> (i32, i32) {
    %c0_i32 = arith.constant 0 : i32
    %c0_i32_0 = arith.constant 0 : i32
    %c0_i32_1 = arith.constant 0 : i32
    return %c0_i32, %c0_i32_0 : i32, i32
  }
  func.func @transform_1(%arg0: i32) -> (i32, i32) {
    %c0_i32 = arith.constant 0 : i32
    %c0_i32_0 = arith.constant 0 : i32
    %c0_i32_1 = arith.constant 0 : i32
    return %c0_i32, %c0_i32_0 : i32, i32
  }
  func.func @transform_2(%arg0: i32) -> (i32, i32, i32) {
    %c0_i32 = arith.constant 0 : i32
    %c0_i32_0 = arith.constant 0 : i32
    %c0_i32_1 = arith.constant 0 : i32
    %c0_i32_2 = arith.constant 0 : i32
    return %c0_i32, %c0_i32_0, %c0_i32_1 : i32, i32, i32
  }
  func.func @transform_3(%arg0: i32) -> (i32, i32) {
    %c0_i32 = arith.constant 0 : i32
    %c0_i32_0 = arith.constant 0 : i32
    %c0_i32_1 = arith.constant 0 : i32
    return %c0_i32, %c0_i32_0 : i32, i32
  }
}

</mosaic_0001>

<llo_original>
// kernel: cross_spatial_window_attention.1
$region0: #{cross_spatial_window_attention.1}
  #allocation0 [shape = 'u32[]', space=smem, size = 0x4, offset = 0x4, fixed_abs, tag = 'smem constant byte address 0x4 - core index']
  #allocation1 [shape = 'u32[144,128]{1,0:T(1,128)}', space=vmem, size = 0x12000, scoped, tag = 'internal scratch']
  %s0 = inlined_call_operand.vmem [shape: f32[21,128], index: 0, kind: input, shape index: {}]
  %s1 = inlined_call_operand.vmem [shape: f32[56,21], index: 1, kind: input, shape index: {}]
  %s2 = inlined_call_operand.vmem [shape: f32[2,128,128], index: 2, kind: input, shape index: {}]
  %s3 = inlined_call_operand.vmem [shape: f32[8,128], index: 3, kind: output, shape index: {}]
  %s4 = sld [smem:[#allocation0]]
  $region22: #{cross_spatial_window_attention.1} parent=0
    _
  %s6 = ssub.s32 1, %s4
  %s7 = scalar_select 0, %s6, %s4
  // Predicated region
  $region2: #{cross_spatial_window_attention.1} parent=0 // pred_check
    _
  $region3: #{cross_spatial_window_attention.1} parent=0 // pred_check_branch
    %9 = sbr.rel (0) target = $region5
  $region4: #{cross_spatial_window_attention.1} parent=0 // pred_region
    _
  $region5: #{cross_spatial_window_attention.1} parent=0 // pred_fallthru
    _
  // Predicated region
  $region6: #{cross_spatial_window_attention.1} parent=0 // pred_check
    _
  $region7: #{cross_spatial_window_attention.1} parent=0 // pred_check_branch
    %11 = sbr.rel (0) target = $region9
  $region8: #{cross_spatial_window_attention.1} parent=0 // pred_region
    _
  $region9: #{cross_spatial_window_attention.1} parent=0 // pred_fallthru
    _
  // Predicated region
  $region10: #{cross_spatial_window_attention.1} parent=0 // pred_check
    _
  $region11: #{cross_spatial_window_attention.1} parent=0 // pred_check_branch
    %13 = sbr.rel (0) target = $region13
  $region12: #{cross_spatial_window_attention.1} parent=0 // pred_region
    _
  $region13: #{cross_spatial_window_attention.1} parent=0 // pred_fallthru
    _
  %v14 = vld [vmem:[%s0] sm:$0xff]
  %v15 = vld [vmem:[%s0 + $0x8] sm:$0xff]
  %v16 = vld [vmem:[%s0 + $0x10] sm:$0x1f]
  %v17 = vld [vmem:[%s1] sm:$0xff]
  %v18 = vld [vmem:[%s1 + $0x8] sm:$0xff]
  %v19 = vld [vmem:[%s1 + $0x10] sm:$0xff]
  %v20 = vld [vmem:[%s1 + $0x18] sm:$0xff]
  %v21 = vld [vmem:[%s1 + $0x20] sm:$0xff]
  %v22 = vld [vmem:[%s1 + $0x28] sm:$0xff]
  %v23 = vld [vmem:[%s1 + $0x30] sm:$0xff]
  %vm24 = vcmask 171008
  %v26 = vsel %vm24, %v17, 0
  %v29 = vsel %vm24, %v18, 0
  %v32 = vsel %vm24, %v19, 0
  %v35 = vsel %vm24, %v20, 0
  %v38 = vsel %vm24, %v21, 0
  %v41 = vsel %vm24, %v22, 0
  %vm43 = vcmask 1044480
  %v45 = vsel %vm43, %v16, 0
  %47 = vmatprep.subr.mxu0 0.0
  %48 = vmatpush1.msra.mxu0 0.0
  %49 = vmatprep.subr.mxu0 0.0
  %50 = vmatpush1.msra.mxu0 0.0
  %51 = vmatprep.subr.mxu0 0.0
  %52 = vmatpush1.msra.mxu0 0.0
  %53 = vmatprep.subr.mxu0 0.0
  %54 = vmatpush1.msra.mxu0 0.0
  %55 = vmatprep.subr.mxu0 0.0
  %56 = vmatpush1.msra.mxu0 0.0
  %57 = vmatprep.subr.mxu0 0.0
  %58 = vmatpush1.msra.mxu0 0.0
  %59 = vmatprep.subr.mxu0 0.0
  %60 = vmatpush1.msra.mxu0 0.0
  %61 = vmatprep.subr.mxu0 0.0
  %62 = vmatpush1.msra.mxu0 0.0
  %63 = vmatprep.subr.mxu0 0.0
  %64 = vmatpush1.msra.mxu0 0.0
  %65 = vmatprep.subr.mxu0 0.0
  %66 = vmatpush1.msra.mxu0 0.0
  %67 = vmatprep.subr.mxu0 0.0
  %68 = vmatpush1.msra.mxu0 0.0
  %69 = vmatprep.subr.mxu0 0.0
  %70 = vmatpush1.msra.mxu0 0.0
  %71 = vmatprep.subr.mxu0 0.0
  %72 = vmatpush1.msra.mxu0 0.0
  %73 = vmatprep.subr.mxu0 0.0
  %v74 = vand.u32 %v45, 4294901760
  %75 = vmatpush1.msra.mxu0 %v74
  %76 = vmatprep.subr.mxu0 0.0
  %v77 = vand.u32 %v15, 4294901760
  %78 = vmatpush1.msra.mxu0 %v77
  %79 = vmatprep.subr.mxu0 0.0
  %v80 = vand.u32 %v14, 4294901760
  %81 = vmatpush1.msra.mxu0 %v80
  %82 = vmatprep.subr.mxu0 0.0
  %83 = vmatpush2.msra.mxu0 0.0
  %84 = vmatprep.subr.mxu0 0.0
  %85 = vmatpush2.msra.mxu0 0.0
  %86 = vmatprep.subr.mxu0 0.0
  %87 = vmatpush2.msra.mxu0 0.0
  %88 = vmatprep.subr.mxu0 0.0
  %89 = vmatpush2.msra.mxu0 0.0
  %90 = vmatprep.subr.mxu0 0.0
  %91 = vmatpush2.msra.mxu0 0.0
  %92 = vmatprep.subr.mxu0 0.0
  %93 = vmatpush2.msra.mxu0 0.0
  %94 = vmatprep.subr.mxu0 0.0
  %95 = vmatpush2.msra.mxu0 0.0
  %96 = vmatprep.subr.mxu0 0.0
  %97 = vmatpush2.msra.mxu0 0.0
  %98 = vmatprep.subr.mxu0 0.0
  %99 = vmatpush2.msra.mxu0 0.0
  %100 = vmatprep.subr.mxu0 0.0
  %101 = vmatpush2.msra.mxu0 0.0
  %102 = vmatprep.subr.mxu0 0.0
  %103 = vmatpush2.msra.mxu0 0.0
  %104 = vmatprep.subr.mxu0 0.0
  %105 = vmatpush2.msra.mxu0 0.0
  %106 = vmatprep.subr.mxu0 0.0
  %107 = vmatpush2.msra.mxu0 0.0
  %108 = vmatprep.subr.mxu0 0.0
  %109 = vmatpush2.msra.mxu0 0.0
  %110 = vmatprep.subr.mxu0 0.0
  %111 = vmatpush2.msra.mxu0 0.0
  %112 = vmatprep.subr.mxu0 0.0
  %113 = vmatpush2.msra.mxu0 0.0
  %114 = vmatprep.mubr.f32.mxu0 0.0
  %v115 = vand.u32 %v26, 4294901760
  %v116 = vsub.f32 %v26, %v115
  %v117 = vand.u32 %v116, 4294901760
  %v118 = vsub.f32 %v116, %v117
  %v119 = vand.u32 %v118, 4294901760
  %120 = vmatmul.mubr.f32.gmra.mxu0 %v119
  %v121 = vpop.f32.mrf.mxu0
  %v122 = vadd.f32 0.0, %v121
  %v123 = vpop.f32.mrf.mxu0
  %124 = vmatprep.mubr.f32.mxu0 0.0
  %v125 = vand.u32 %v29, 4294901760
  %v126 = vsub.f32 %v29, %v125
  %v127 = vand.u32 %v126, 4294901760
  %v128 = vsub.f32 %v126, %v127
  %v129 = vand.u32 %v128, 4294901760
  %130 = vmatmul.mubr.f32.gmra.mxu0 %v129
  %v131 = vpop.f32.mrf.mxu0
  %v132 = vadd.f32 0.0, %v131
  %v133 = vpop.f32.mrf.mxu0
  %134 = vmatprep.mubr.f32.mxu0 0.0
  %v135 = vand.u32 %v32, 4294901760
  %v136 = vsub.f32 %v32, %v135
  %v137 = vand.u32 %v136, 4294901760
  %v138 = vsub.f32 %v136, %v137
  %v139 = vand.u32 %v138, 4294901760
  %140 = vmatmul.mubr.f32.gmra.mxu0 %v139
  %v141 = vpop.f32.mrf.mxu0
  %v142 = vadd.f32 0.0, %v141
  %v143 = vpop.f32.mrf.mxu0
  %144 = vmatprep.mubr.f32.mxu0 0.0
  %v145 = vand.u32 %v35, 4294901760
  %v146 = vsub.f32 %v35, %v145
  %v147 = vand.u32 %v146, 4294901760
  %v148 = vsub.f32 %v146, %v147
  %v149 = vand.u32 %v148, 4294901760
  %150 = vmatmul.mubr.f32.gmra.mxu0 %v149
  %v151 = vpop.f32.mrf.mxu0
  %v152 = vadd.f32 0.0, %v151
  %v153 = vpop.f32.mrf.mxu0
  %154 = vmatprep.mubr.f32.mxu0 0.0
  %v155 = vand.u32 %v38, 4294901760
  %v156 = vsub.f32 %v38, %v155
  %v157 = vand.u32 %v156, 4294901760
  %v158 = vsub.f32 %v156, %v157
  %v159 = vand.u32 %v158, 4294901760
  %160 = vmatmul.mubr.f32.gmra.mxu0 %v159
  %v161 = vpop.f32.mrf.mxu0
  %v162 = vadd.f32 0.0, %v161
  %v163 = vpop.f32.mrf.mxu0
  %164 = vmatprep.mubr.f32.mxu0 0.0
  %v165 = vand.u32 %v41, 4294901760
  %v166 = vsub.f32 %v41, %v165
  %v167 = vand.u32 %v166, 4294901760
  %v168 = vsub.f32 %v166, %v167
  %v169 = vand.u32 %v168, 4294901760
  %170 = vmatmul.mubr.f32.gmra.mxu0 %v169
  %v171 = vpop.f32.mrf.mxu0
  %v172 = vadd.f32 0.0, %v171
  %v173 = vpop.f32.mrf.mxu0
  %174 = vdwg.mxu0
  %175 = vmatprep.subr.mxu0 0.0
  %176 = vmatpush1.msra.mxu0 0.0
  %177 = vmatprep.subr.mxu0 0.0
  %178 = vmatpush1.msra.mxu0 0.0
  %179 = vmatprep.subr.mxu0 0.0
  %180 = vmatpush1.msra.mxu0 0.0
  %181 = vmatprep.subr.mxu0 0.0
  %182 = vmatpush1.msra.mxu0 0.0
  %183 = vmatprep.subr.mxu0 0.0
  %184 = vmatpush1.msra.mxu0 0.0
  %185 = vmatprep.subr.mxu0 0.0
  %186 = vmatpush1.msra.mxu0 0.0
  %187 = vmatprep.subr.mxu0 0.0
  %188 = vmatpush1.msra.mxu0 0.0
  %189 = vmatprep.subr.mxu0 0.0
  %190 = vmatpush1.msra.mxu0 0.0
  %191 = vmatprep.subr.mxu0 0.0
  %192 = vmatpush1.msra.mxu0 0.0
  %193 = vmatprep.subr.mxu0 0.0
  %194 = vmatpush1.msra.mxu0 0.0
  %195 = vmatprep.subr.mxu0 0.0
  %196 = vmatpush1.msra.mxu0 0.0
  %197 = vmatprep.subr.mxu0 0.0
  %198 = vmatpush1.msra.mxu0 0.0
  %199 = vmatprep.subr.mxu0 0.0
  %200 = vmatpush1.msra.mxu0 0.0
  %201 = vmatprep.subr.mxu0 0.0
  %v202 = vand.u32 %v45, 4294901760
  %v203 = vsub.f32 %v45, %v202
  %v204 = vand.u32 %v203, 4294901760
  %v205 = vsub.f32 %v203, %v204
  %v206 = vand.u32 %v205, 4294901760
  %207 = vmatpush1.msra.mxu0 %v206
  %208 = vmatprep.subr.mxu0 0.0
  %v209 = vand.u32 %v15, 4294901760
  %v210 = vsub.f32 %v15, %v209
  %v211 = vand.u32 %v210, 4294901760
  %v212 = vsub.f32 %v210, %v211
  %v213 = vand.u32 %v212, 4294901760
  %214 = vmatpush1.msra.mxu0 %v213
  %215 = vmatprep.subr.mxu0 0.0
  %v216 = vand.u32 %v14, 4294901760
  %v217 = vsub.f32 %v14, %v216
  %v218 = vand.u32 %v217, 4294901760
  %v219 = vsub.f32 %v217, %v218
  %v220 = vand.u32 %v219, 4294901760
  %221 = vmatpush1.msra.mxu0 %v220
  %222 = vmatprep.subr.mxu0 0.0
  %223 = vmatpush2.msra.mxu0 0.0
  %224 = vmatprep.subr.mxu0 0.0
  %225 = vmatpush2.msra.mxu0 0.0
  %226 = vmatprep.subr.mxu0 0.0
  %227 = vmatpush2.msra.mxu0 0.0
  %228 = vmatprep.subr.mxu0 0.0
  %229 = vmatpush2.msra.mxu0 0.0
  %230 = vmatprep.subr.mxu0 0.0
  %231 = vmatpush2.msra.mxu0 0.0
  %232 = vmatprep.subr.mxu0 0.0
  %233 = vmatpush2.msra.mxu0 0.0
  %234 = vmatprep.subr.mxu0 0.0
  %235 = vmatpush2.msra.mxu0 0.0
  %236 = vmatprep.subr.mxu0 0.0
  %237 = vmatpush2.msra.mxu0 0.0
  %238 = vmatprep.subr.mxu0 0.0
  %239 = vmatpush2.msra.mxu0 0.0
  %240 = vmatprep.subr.mxu0 0.0
  %241 = vmatpush2.msra.mxu0 0.0
  %242 = vmatprep.subr.mxu0 0.0
  %243 = vmatpush2.msra.mxu0 0.0
  %244 = vmatprep.subr.mxu0 0.0
  %245 = vmatpush2.msra.mxu0 0.0
  %246 = vmatprep.subr.mxu0 0.0
  %247 = vmatpush2.msra.mxu0 0.0
  %248 = vmatprep.subr.mxu0 0.0
  %249 = vmatpush2.msra.mxu0 0.0
  %250 = vmatprep.subr.mxu0 0.0
  %251 = vmatpush2.msra.mxu0 0.0
  %252 = vmatprep.subr.mxu0 0.0
  %253 = vmatpush2.msra.mxu0 0.0
  %254 = vmatprep.mubr.f32.mxu0 0.0
  %v255 = vand.u32 %v26, 4294901760
  %256 = vmatmul.mubr.f32.gmra.mxu0 %v255
  %v257 = vpop.f32.mrf.mxu0
  %v258 = vadd.f32 %v122, %v257
  %v259 = vpop.f32.mrf.mxu0
  %260 = vmatprep.mubr.f32.mxu0 0.0
  %v261 = vand.u32 %v29, 4294901760
  %262 = vmatmul.mubr.f32.gmra.mxu0 %v261
  %v263 = vpop.f32.mrf.mxu0
  %v264 = vadd.f32 %v132, %v263
  %v265 = vpop.f32.mrf.mxu0
  %266 = vmatprep.mubr.f32.mxu0 0.0
  %v267 = vand.u32 %v32, 4294901760
  %268 = vmatmul.mubr.f32.gmra.mxu0 %v267
  %v269 = vpop.f32.mrf.mxu0
  %v270 = vadd.f32 %v142, %v269
  %v271 = vpop.f32.mrf.mxu0
  %272 = vmatprep.mubr.f32.mxu0 0.0
  %v273 = vand.u32 %v35, 4294901760
  %274 = vmatmul.mubr.f32.gmra.mxu0 %v273
  %v275 = vpop.f32.mrf.mxu0
  %v276 = vadd.f32 %v152, %v275
  %v277 = vpop.f32.mrf.mxu0
  %278 = vmatprep.mubr.f32.mxu0 0.0
  %v279 = vand.u32 %v38, 4294901760
  %280 = vmatmul.mubr.f32.gmra.mxu0 %v279
  %v281 = vpop.f32.mrf.mxu0
  %v282 = vadd.f32 %v162, %v281
  %v283 = vpop.f32.mrf.mxu0
  %284 = vmatprep.mubr.f32.mxu0 0.0
  %v285 = vand.u32 %v41, 4294901760
  %286 = vmatmul.mubr.f32.gmra.mxu0 %v285
  %v287 = vpop.f32.mrf.mxu0
  %v288 = vadd.f32 %v172, %v287
  %v289 = vpop.f32.mrf.mxu0
  %290 = vdwg.mxu0
  %291 = vmatprep.subr.mxu0 0.0
  %292 = vmatpush1.msra.mxu0 0.0
  %293 = vmatprep.subr.mxu0 0.0
  %294 = vmatpush1.msra.mxu0 0.0
  %295 = vmatprep.subr.mxu0 0.0
  %296 = vmatpush1.msra.mxu0 0.0
  %297 = vmatprep.subr.mxu0 0.0
  %298 = vmatpush1.msra.mxu0 0.0
  %299 = vmatprep.subr.mxu0 0.0
  %300 = vmatpush1.msra.mxu0 0.0
  %301 = vmatprep.subr.mxu0 0.0
  %302 = vmatpush1.msra.mxu0 0.0
  %303 = vmatprep.subr.mxu0 0.0
  %304 = vmatpush1.msra.mxu0 0.0
  %305 = vmatprep.subr.mxu0 0.0
  %306 = vmatpush1.msra.mxu0 0.0
  %307 = vmatprep.subr.mxu0 0.0
  %308 = vmatpush1.msra.mxu0 0.0
  %309 = vmatprep.subr.mxu0 0.0
  %310 = vmatpush1.msra.mxu0 0.0
  %311 = vmatprep.subr.mxu0 0.0
  %312 = vmatpush1.msra.mxu0 0.0
  %313 = vmatprep.subr.mxu0 0.0
  %314 = vmatpush1.msra.mxu0 0.0
  %315 = vmatprep.subr.mxu0 0.0
  %316 = vmatpush1.msra.mxu0 0.0
  %317 = vmatprep.subr.mxu0 0.0
  %v318 = vand.u32 %v45, 4294901760
  %v319 = vsub.f32 %v45, %v318
  %320 = vmatpush1.msra.mxu0 %v319
  %321 = vmatprep.subr.mxu0 0.0
  %v322 = vand.u32 %v15, 4294901760
  %v323 = vsub.f32 %v15, %v322
  %324 = vmatpush1.msra.mxu0 %v323
  %325 = vmatprep.subr.mxu0 0.0
  %v326 = vand.u32 %v14, 4294901760
  %v327 = vsub.f32 %v14, %v326
  %328 = vmatpush1.msra.mxu0 %v327
  %329 = vmatprep.subr.mxu0 0.0
  %330 = vmatpush2.msra.mxu0 0.0
  %331 = vmatprep.subr.mxu0 0.0
  %332 = vmatpush2.msra.mxu0 0.0
  %333 = vmatprep.subr.mxu0 0.0
  %334 = vmatpush2.msra.mxu0 0.0
  %335 = vmatprep.subr.mxu0 0.0
  %336 = vmatpush2.msra.mxu0 0.0
  %337 = vmatprep.subr.mxu0 0.0
  %338 = vmatpush2.msra.mxu0 0.0
  %339 = vmatprep.subr.mxu0 0.0
  %340 = vmatpush2.msra.mxu0 0.0
  %341 = vmatprep.subr.mxu0 0.0
  %342 = vmatpush2.msra.mxu0 0.0
  %343 = vmatprep.subr.mxu0 0.0
  %344 = vmatpush2.msra.mxu0 0.0
  %345 = vmatprep.subr.mxu0 0.0
  %346 = vmatpush2.msra.mxu0 0.0
  %347 = vmatprep.subr.mxu0 0.0
  %348 = vmatpush2.msra.mxu0 0.0
  %349 = vmatprep.subr.mxu0 0.0
  %350 = vmatpush2.msra.mxu0 0.0
  %351 = vmatprep.subr.mxu0 0.0
  %352 = vmatpush2.msra.mxu0 0.0
  %353 = vmatprep.subr.mxu0 0.0
  %354 = vmatpush2.msra.mxu0 0.0
  %355 = vmatprep.subr.mxu0 0.0
  %356 = vmatpush2.msra.mxu0 0.0
  %357 = vmatprep.subr.mxu0 0.0
  %358 = vmatpush2.msra.mxu0 0.0
  %359 = vmatprep.subr.mxu0 0.0
  %360 = vmatpush2.msra.mxu0 0.0
  %361 = vmatprep.mubr.f32.mxu0 0.0
  %v362 = vand.u32 %v26, 4294901760
  %v363 = vsub.f32 %v26, %v362
  %364 = vmatmul.mubr.f32.gmra.mxu0 %v363
  %v365 = vpop.f32.mrf.mxu0
  %v366 = vadd.f32 %v258, %v365
  %v367 = vpop.f32.mrf.mxu0
  %368 = vmatprep.mubr.f32.mxu0 0.0
  %v369 = vand.u32 %v29, 4294901760
  %v370 = vsub.f32 %v29, %v369
  %371 = vmatmul.mubr.f32.gmra.mxu0 %v370
  %v372 = vpop.f32.mrf.mxu0
  %v373 = vadd.f32 %v264, %v372
  %v374 = vpop.f32.mrf.mxu0
  %375 = vmatprep.mubr.f32.mxu0 0.0
  %v376 = vand.u32 %v32, 4294901760
  %v377 = vsub.f32 %v32, %v376
  %378 = vmatmul.mubr.f32.gmra.mxu0 %v377
  %v379 = vpop.f32.mrf.mxu0
  %v380 = vadd.f32 %v270, %v379
  %v381 = vpop.f32.mrf.mxu0
  %382 = vmatprep.mubr.f32.mxu0 0.0
  %v383 = vand.u32 %v35, 4294901760
  %v384 = vsub.f32 %v35, %v383
  %385 = vmatmul.mubr.f32.gmra.mxu0 %v384
  %v386 = vpop.f32.mrf.mxu0
  %v387 = vadd.f32 %v276, %v386
  %v388 = vpop.f32.mrf.mxu0
  %389 = vmatprep.mubr.f32.mxu0 0.0
  %v390 = vand.u32 %v38, 4294901760
  %v391 = vsub.f32 %v38, %v390
  %392 = vmatmul.mubr.f32.gmra.mxu0 %v391
  %v393 = vpop.f32.mrf.mxu0
  %v394 = vadd.f32 %v282, %v393
  %v395 = vpop.f32.mrf.mxu0
  %396 = vmatprep.mubr.f32.mxu0 0.0
  %v397 = vand.u32 %v41, 4294901760
  %v398 = vsub.f32 %v41, %v397
  %399 = vmatmul.mubr.f32.gmra.mxu0 %v398
  %v400 = vpop.f32.mrf.mxu0
  %v401 = vadd.f32 %v288, %v400
  %v402 = vpop.f32.mrf.mxu0
  %403 = vdwg.mxu0
  %404 = vmatprep.subr.mxu0 0.0
  %405 = vmatpush1.msra.mxu0 0.0
  %406 = vmatprep.subr.mxu0 0.0
  %407 = vmatpush1.msra.mxu0 0.0
  %408 = vmatprep.subr.mxu0 0.0
  %409 = vmatpush1.msra.mxu0 0.0
  %410 = vmatprep.subr.mxu0 0.0
  %411 = vmatpush1.msra.mxu0 0.0
  %412 = vmatprep.subr.mxu0 0.0
  %413 = vmatpush1.msra.mxu0 0.0
  %414 = vmatprep.subr.mxu0 0.0
  %415 = vmatpush1.msra.mxu0 0.0
  %416 = vmatprep.subr.mxu0 0.0
  %417 = vmatpush1.msra.mxu0 0.0
  %418 = vmatprep.subr.mxu0 0.0
  %419 = vmatpush1.msra.mxu0 0.0
  %420 = vmatprep.subr.mxu0 0.0
  %421 = vmatpush1.msra.mxu0 0.0
  %422 = vmatprep.subr.mxu0 0.0
  %423 = vmatpush1.msra.mxu0 0.0
  %424 = vmatprep.subr.mxu0 0.0
  %425 = vmatpush1.msra.mxu0 0.0
  %426 = vmatprep.subr.mxu0 0.0
  %427 = vmatpush1.msra.mxu0 0.0
  %428 = vmatprep.subr.mxu0 0.0
  %429 = vmatpush1.msra.mxu0 0.0
  %430 = vmatprep.subr.mxu0 0.0
  %v431 = vand.u32 %v45, 4294901760
  %432 = vmatpush1.msra.mxu0 %v431
  %433 = vmatprep.subr.mxu0 0.0
  %v434 = vand.u32 %v15, 4294901760
  %435 = vmatpush1.msra.mxu0 %v434
  %436 = vmatprep.subr.mxu0 0.0
  %v437 = vand.u32 %v14, 4294901760
  %438 = vmatpush1.msra.mxu0 %v437
  %439 = vmatprep.subr.mxu0 0.0
  %440 = vmatpush2.msra.mxu0 0.0
  %441 = vmatprep.subr.mxu0 0.0
  %442 = vmatpush2.msra.mxu0 0.0
  %443 = vmatprep.subr.mxu0 0.0
  %444 = vmatpush2.msra.mxu0 0.0
  %445 = vmatprep.subr.mxu0 0.0
  %446 = vmatpush2.msra.mxu0 0.0
  %447 = vmatprep.subr.mxu0 0.0
  %448 = vmatpush2.msra.mxu0 0.0
  %449 = vmatprep.subr.mxu0 0.0
  %450 = vmatpush2.msra.mxu0 0.0
  %451 = vmatprep.subr.mxu0 0.0
  %452 = vmatpush2.msra.mxu0 0.0
  %453 = vmatprep.subr.mxu0 0.0
  %454 = vmatpush2.msra.mxu0 0.0
  %455 = vmatprep.subr.mxu0 0.0
  %456 = vmatpush2.msra.mxu0 0.0
  %457 = vmatprep.subr.mxu0 0.0
  %458 = vmatpush2.msra.mxu0 0.0
  %459 = vmatprep.subr.mxu0 0.0
  %460 = vmatpush2.msra.mxu0 0.0
  %461 = vmatprep.subr.mxu0 0.0
  %462 = vmatpush2.msra.mxu0 0.0
  %463 = vmatprep.subr.mxu0 0.0
  %464 = vmatpush2.msra.mxu0 0.0
  %465 = vmatprep.subr.mxu0 0.0
  %466 = vmatpush2.msra.mxu0 0.0
  %467 = vmatprep.subr.mxu0 0.0
  %468 = vmatpush2.msra.mxu0 0.0
  %469 = vmatprep.subr.mxu0 0.0
  %470 = vmatpush2.msra.mxu0 0.0
  %471 = vmatprep.mubr.f32.mxu0 0.0
  %v472 = vand.u32 %v26, 4294901760
  %v473 = vsub.f32 %v26, %v472
  %v474 = vand.u32 %v473, 4294901760
  %475 = vmatmul.mubr.f32.gmra.mxu0 %v474
  %v476 = vpop.f32.mrf.mxu0
  %v477 = vadd.f32 %v366, %v476
  %v478 = vpop.f32.mrf.mxu0
  %479 = vmatprep.mubr.f32.mxu0 0.0
  %v480 = vand.u32 %v29, 4294901760
  %v481 = vsub.f32 %v29, %v480
  %v482 = vand.u32 %v481, 4294901760
  %483 = vmatmul.mubr.f32.gmra.mxu0 %v482
  %v484 = vpop.f32.mrf.mxu0
  %v485 = vadd.f32 %v373, %v484
  %v486 = vpop.f32.mrf.mxu0
  %487 = vmatprep.mubr.f32.mxu0 0.0
  %v488 = vand.u32 %v32, 4294901760
  %v489 = vsub.f32 %v32, %v488
  %v490 = vand.u32 %v489, 4294901760
  %491 = vmatmul.mubr.f32.gmra.mxu0 %v490
  %v492 = vpop.f32.mrf.mxu0
  %v493 = vadd.f32 %v380, %v492
  %v494 = vpop.f32.mrf.mxu0
  %495 = vmatprep.mubr.f32.mxu0 0.0
  %v496 = vand.u32 %v35, 4294901760
  %v497 = vsub.f32 %v35, %v496
  %v498 = vand.u32 %v497, 4294901760
  %499 = vmatmul.mubr.f32.gmra.mxu0 %v498
  %v500 = vpop.f32.mrf.mxu0
  %v501 = vadd.f32 %v387, %v500
  %v502 = vpop.f32.mrf.mxu0
  %503 = vmatprep.mubr.f32.mxu0 0.0
  %v504 = vand.u32 %v38, 4294901760
  %v505 = vsub.f32 %v38, %v504
  %v506 = vand.u32 %v505, 4294901760
  %507 = vmatmul.mubr.f32.gmra.mxu0 %v506
  %v508 = vpop.f32.mrf.mxu0
  %v509 = vadd.f32 %v394, %v508
  %v510 = vpop.f32.mrf.mxu0
  %511 = vmatprep.mubr.f32.mxu0 0.0
  %v512 = vand.u32 %v41, 4294901760
  %v513 = vsub.f32 %v41, %v512
  %v514 = vand.u32 %v513, 4294901760
  %515 = vmatmul.mubr.f32.gmra.mxu0 %v514
  %v516 = vpop.f32.mrf.mxu0
  %v517 = vadd.f32 %v401, %v516
  %v518 = vpop.f32.mrf.mxu0
  %519 = vdwg.mxu0
  %520 = vmatprep.subr.mxu0 0.0
  %521 = vmatpush1.msra.mxu0 0.0
  %522 = vmatprep.subr.mxu0 0.0
  %523 = vmatpush1.msra.mxu0 0.0
  %524 = vmatprep.subr.mxu0 0.0
  %525 = vmatpush1.msra.mxu0 0.0
  %526 = vmatprep.subr.mxu0 0.0
  %527 = vmatpush1.msra.mxu0 0.0
  %528 = vmatprep.subr.mxu0 0.0
  %529 = vmatpush1.msra.mxu0 0.0
  %530 = vmatprep.subr.mxu0 0.0
  %531 = vmatpush1.msra.mxu0 0.0
  %532 = vmatprep.subr.mxu0 0.0
  %533 = vmatpush1.msra.mxu0 0.0
  %534 = vmatprep.subr.mxu0 0.0
  %535 = vmatpush1.msra.mxu0 0.0
  %536 = vmatprep.subr.mxu0 0.0
  %537 = vmatpush1.msra.mxu0 0.0
  %538 = vmatprep.subr.mxu0 0.0
  %539 = vmatpush1.msra.mxu0 0.0
  %540 = vmatprep.subr.mxu0 0.0
  %541 = vmatpush1.msra.mxu0 0.0
  %542 = vmatprep.subr.mxu0 0.0
  %543 = vmatpush1.msra.mxu0 0.0
  %544 = vmatprep.subr.mxu0 0.0
  %545 = vmatpush1.msra.mxu0 0.0
  %546 = vmatprep.subr.mxu0 0.0
  %v547 = vand.u32 %v45, 4294901760
  %v548 = vsub.f32 %v45, %v547
  %v549 = vand.u32 %v548, 4294901760
  %550 = vmatpush1.msra.mxu0 %v549
  %551 = vmatprep.subr.mxu0 0.0
  %v552 = vand.u32 %v15, 4294901760
  %v553 = vsub.f32 %v15, %v552
  %v554 = vand.u32 %v553, 4294901760
  %555 = vmatpush1.msra.mxu0 %v554
  %556 = vmatprep.subr.mxu0 0.0
  %v557 = vand.u32 %v14, 4294901760
  %v558 = vsub.f32 %v14, %v557
  %v559 = vand.u32 %v558, 4294901760
  %560 = vmatpush1.msra.mxu0 %v559
  %561 = vmatprep.subr.mxu0 0.0
  %562 = vmatpush2.msra.mxu0 0.0
  %563 = vmatprep.subr.mxu0 0.0
  %564 = vmatpush2.msra.mxu0 0.0
  %565 = vmatprep.subr.mxu0 0.0
  %566 = vmatpush2.msra.mxu0 0.0
  %567 = vmatprep.subr.mxu0 0.0
  %568 = vmatpush2.msra.mxu0 0.0
  %569 = vmatprep.subr.mxu0 0.0
  %570 = vmatpush2.msra.mxu0 0.0
  %571 = vmatprep.subr.mxu0 0.0
  %572 = vmatpush2.msra.mxu0 0.0
  %573 = vmatprep.subr.mxu0 0.0
  %574 = vmatpush2.msra.mxu0 0.0
  %575 = vmatprep.subr.mxu0 0.0
  %576 = vmatpush2.msra.mxu0 0.0
  %577 = vmatprep.subr.mxu0 0.0
  %578 = vmatpush2.msra.mxu0 0.0
  %579 = vmatprep.subr.mxu0 0.0
  %580 = vmatpush2.msra.mxu0 0.0
  %581 = vmatprep.subr.mxu0 0.0
  %582 = vmatpush2.msra.mxu0 0.0
  %583 = vmatprep.subr.mxu0 0.0
  %584 = vmatpush2.msra.mxu0 0.0
  %585 = vmatprep.subr.mxu0 0.0
  %586 = vmatpush2.msra.mxu0 0.0
  %587 = vmatprep.subr.mxu0 0.0
  %588 = vmatpush2.msra.mxu0 0.0
  %589 = vmatprep.subr.mxu0 0.0
  %590 = vmatpush2.msra.mxu0 0.0
  %591 = vmatprep.subr.mxu0 0.0
  %592 = vmatpush2.msra.mxu0 0.0
  %593 = vmatprep.mubr.f32.mxu0 0.0
  %v594 = vand.u32 %v26, 4294901760
  %595 = vmatmul.mubr.f32.gmra.mxu0 %v594
  %v596 = vpop.f32.mrf.mxu0
  %v597 = vadd.f32 %v477, %v596
  %v598 = vpop.f32.mrf.mxu0
  %599 = vmatprep.mubr.f32.mxu0 0.0
  %v600 = vand.u32 %v29, 4294901760
  %601 = vmatmul.mubr.f32.gmra.mxu0 %v600
  %v602 = vpop.f32.mrf.mxu0
  %v603 = vadd.f32 %v485, %v602
  %v604 = vpop.f32.mrf.mxu0
  %605 = vmatprep.mubr.f32.mxu0 0.0
  %v606 = vand.u32 %v32, 4294901760
  %607 = vmatmul.mubr.f32.gmra.mxu0 %v606
  %v608 = vpop.f32.mrf.mxu0
  %v609 = vadd.f32 %v493, %v608
  %v610 = vpop.f32.mrf.mxu0
  %611 = vmatprep.mubr.f32.mxu0 0.0
  %v612 = vand.u32 %v35, 4294901760
  %613 = vmatmul.mubr.f32.gmra.mxu0 %v612
  %v614 = vpop.f32.mrf.mxu0
  %v615 = vadd.f32 %v501, %v614
  %v616 = vpop.f32.mrf.mxu0
  %617 = vmatprep.mubr.f32.mxu0 0.0
  %v618 = vand.u32 %v38, 4294901760
  %619 = vmatmul.mubr.f32.gmra.mxu0 %v618
  %v620 = vpop.f32.mrf.mxu0
  %v621 = vadd.f32 %v509, %v620
  %v622 = vpop.f32.mrf.mxu0
  %623 = vmatprep.mubr.f32.mxu0 0.0
  %v624 = vand.u32 %v41, 4294901760
  %625 = vmatmul.mubr.f32.gmra.mxu0 %v624
  %v626 = vpop.f32.mrf.mxu0
  %v627 = vadd.f32 %v517, %v626
  %v628 = vpop.f32.mrf.mxu0
  %629 = vdwg.mxu0
  %630 = vmatprep.subr.mxu0 0.0
  %631 = vmatpush1.msra.mxu0 0.0
  %632 = vmatprep.subr.mxu0 0.0
  %633 = vmatpush1.msra.mxu0 0.0
  %634 = vmatprep.subr.mxu0 0.0
  %635 = vmatpush1.msra.mxu0 0.0
  %636 = vmatprep.subr.mxu0 0.0
  %637 = vmatpush1.msra.mxu0 0.0
  %638 = vmatprep.subr.mxu0 0.0
  %639 = vmatpush1.msra.mxu0 0.0
  %640 = vmatprep.subr.mxu0 0.0
  %641 = vmatpush1.msra.mxu0 0.0
  %642 = vmatprep.subr.mxu0 0.0
  %643 = vmatpush1.msra.mxu0 0.0
  %644 = vmatprep.subr.mxu0 0.0
  %645 = vmatpush1.msra.mxu0 0.0
  %646 = vmatprep.subr.mxu0 0.0
  %647 = vmatpush1.msra.mxu0 0.0
  %648 = vmatprep.subr.mxu0 0.0
  %649 = vmatpush1.msra.mxu0 0.0
  %650 = vmatprep.subr.mxu0 0.0
  %651 = vmatpush1.msra.mxu0 0.0
  %652 = vmatprep.subr.mxu0 0.0
  %653 = vmatpush1.msra.mxu0 0.0
  %654 = vmatprep.subr.mxu0 0.0
  %655 = vmatpush1.msra.mxu0 0.0
  %656 = vmatprep.subr.mxu0 0.0
  %v657 = vand.u32 %v45, 4294901760
  %658 = vmatpush1.msra.mxu0 %v657
  %659 = vmatprep.subr.mxu0 0.0
  %v660 = vand.u32 %v15, 4294901760
  %661 = vmatpush1.msra.mxu0 %v660
  %662 = vmatprep.subr.mxu0 0.0
  %v663 = vand.u32 %v14, 4294901760
  %664 = vmatpush1.msra.mxu0 %v663
  %665 = vmatprep.subr.mxu0 0.0
  %666 = vmatpush2.msra.mxu0 0.0
  %667 = vmatprep.subr.mxu0 0.0
  %668 = vmatpush2.msra.mxu0 0.0
  %669 = vmatprep.subr.mxu0 0.0
  %670 = vmatpush2.msra.mxu0 0.0
  %671 = vmatprep.subr.mxu0 0.0
  %672 = vmatpush2.msra.mxu0 0.0
  %673 = vmatprep.subr.mxu0 0.0
  %674 = vmatpush2.msra.mxu0 0.0
  %675 = vmatprep.subr.mxu0 0.0
  %676 = vmatpush2.msra.mxu0 0.0
  %677 = vmatprep.subr.mxu0 0.0
  %678 = vmatpush2.msra.mxu0 0.0
  %679 = vmatprep.subr.mxu0 0.0
  %680 = vmatpush2.msra.mxu0 0.0
  %681 = vmatprep.subr.mxu0 0.0
  %682 = vmatpush2.msra.mxu0 0.0
  %683 = vmatprep.subr.mxu0 0.0
  %684 = vmatpush2.msra.mxu0 0.0
  %685 = vmatprep.subr.mxu0 0.0
  %686 = vmatpush2.msra.mxu0 0.0
  %687 = vmatprep.subr.mxu0 0.0
  %688 = vmatpush2.msra.mxu0 0.0
  %689 = vmatprep.subr.mxu0 0.0
  %690 = vmatpush2.msra.mxu0 0.0
  %691 = vmatprep.subr.mxu0 0.0
  %692 = vmatpush2.msra.mxu0 0.0
  %693 = vmatprep.subr.mxu0 0.0
  %694 = vmatpush2.msra.mxu0 0.0
  %695 = vmatprep.subr.mxu0 0.0
  %696 = vmatpush2.msra.mxu0 0.0
  %697 = vmatprep.mubr.f32.mxu0 0.0
  %v698 = vand.u32 %v26, 4294901760
  %699 = vmatmul.mubr.f32.gmra.mxu0 %v698
  %v700 = vpop.f32.mrf.mxu0
  %v701 = vadd.f32 %v597, %v700
  %v702 = vpop.f32.mrf.mxu0
  %703 = vmatprep.mubr.f32.mxu0 0.0
  %v704 = vand.u32 %v29, 4294901760
  %705 = vmatmul.mubr.f32.gmra.mxu0 %v704
  %v706 = vpop.f32.mrf.mxu0
  %v707 = vadd.f32 %v603, %v706
  %v708 = vpop.f32.mrf.mxu0
  %709 = vmatprep.mubr.f32.mxu0 0.0
  %v710 = vand.u32 %v32, 4294901760
  %711 = vmatmul.mubr.f32.gmra.mxu0 %v710
  %v712 = vpop.f32.mrf.mxu0
  %v713 = vadd.f32 %v609, %v712
  %v714 = vpop.f32.mrf.mxu0
  %715 = vmatprep.mubr.f32.mxu0 0.0
  %v716 = vand.u32 %v35, 4294901760
  %717 = vmatmul.mubr.f32.gmra.mxu0 %v716
  %v718 = vpop.f32.mrf.mxu0
  %v719 = vadd.f32 %v615, %v718
  %v720 = vpop.f32.mrf.mxu0
  %721 = vmatprep.mubr.f32.mxu0 0.0
  %v722 = vand.u32 %v38, 4294901760
  %723 = vmatmul.mubr.f32.gmra.mxu0 %v722
  %v724 = vpop.f32.mrf.mxu0
  %v725 = vadd.f32 %v621, %v724
  %v726 = vpop.f32.mrf.mxu0
  %727 = vmatprep.mubr.f32.mxu0 0.0
  %v728 = vand.u32 %v41, 4294901760
  %729 = vmatmul.mubr.f32.gmra.mxu0 %v728
  %v730 = vpop.f32.mrf.mxu0
  %v731 = vadd.f32 %v627, %v730
  %v732 = vpop.f32.mrf.mxu0
  %733 = vdwg.mxu0
  %v734 = vld [vmem:[%s2] sm:$0xff]
  %v735 = vld [vmem:[%s2 + $0x8] sm:$0xff]
  %v736 = vld [vmem:[%s2 + $0x10] sm:$0xff]
  %v737 = vld [vmem:[%s2 + $0x18] sm:$0xff]
  %v738 = vld [vmem:[%s2 + $0x20] sm:$0xff]
  %v739 = vld [vmem:[%s2 + $0x28] sm:$0xff]
  %v740 = vld [vmem:[%s2 + $0x30] sm:$0xff]
  %v741 = vld [vmem:[%s2 + $0x38] sm:$0xff]
  %v742 = vld [vmem:[%s2 + $0x40] sm:$0xff]
  %v743 = vld [vmem:[%s2 + $0x48] sm:$0xff]
  %v744 = vld [vmem:[%s2 + $0x50] sm:$0xff]
  %v745 = vld [vmem:[%s2 + $0x58] sm:$0xff]
  %v746 = vld [vmem:[%s2 + $0x60] sm:$0xff]
  %v747 = vld [vmem:[%s2 + $0x68] sm:$0xff]
  %v748 = vld [vmem:[%s2 + $0x70] sm:$0xff]
  %v749 = vld [vmem:[%s2 + $0x78] sm:$0xff]
  %750 = vxpose.xlu0.b32.start [1/16] %v713, 128
  %751 = vxpose.xlu0.b32.cont [2/16] 0.0, 128
  %752 = vxpose.xlu0.b32.cont [3/16] 0.0, 128
  %753 = vxpose.xlu0.b32.cont [4/16] 0.0, 128
  %754 = vxpose.xlu0.b32.cont [5/16] 0.0, 128
  %755 = vxpose.xlu0.b32.cont [6/16] 0.0, 128
  %756 = vxpose.xlu0.b32.cont [7/16] 0.0, 128
  %757 = vxpose.xlu0.b32.cont [8/16] 0.0, 128
  %758 = vxpose.xlu0.b32.cont [9/16] 0.0, 128
  %759 = vxpose.xlu0.b32.cont [10/16] 0.0, 128
  %760 = vxpose.xlu0.b32.cont [11/16] 0.0, 128
  %761 = vxpose.xlu0.b32.cont [12/16] 0.0, 128
  %762 = vxpose.xlu0.b32.cont [13/16] 0.0, 128
  %763 = vxpose.xlu0.b32.cont [14/16] 0.0, 128
  %764 = vxpose.xlu0.b32.cont [15/16] 0.0, 128
  %765 = vxpose.xlu0.b32.end [16/16] 0.0, 128
  %v766 = vpop.trf.xlu0
  %v767 = vpop.trf.xlu0
  %v768 = vpop.trf.xlu0
  %v769 = vpop.trf.xlu0
  %v770 = vpop.trf.xlu0
  %v771 = vpop.trf.xlu0
  %v772 = vpop.trf.xlu0
  %v773 = vpop.trf.xlu0
  %v774 = vpop.trf.xlu0
  %v775 = vpop.trf.xlu0
  %v776 = vpop.trf.xlu0
  %v777 = vpop.trf.xlu0
  %v778 = vpop.trf.xlu0
  %v779 = vpop.trf.xlu0
  %v780 = vpop.trf.xlu0
  %v781 = vpop.trf.xlu0
  %vm782 = vcmask 64512
  %v784 = vsel %vm782, %v766, 0
  %v787 = vsel %vm782, %v767, 0
  %v790 = vsel %vm782, %v768, 0
  %v793 = vsel %vm782, %v769, 0
  %v796 = vsel %vm782, %v770, 0
  %v799 = vsel %vm782, %v771, 0
  %v802 = vsel %vm782, %v772, 0
  %v805 = vsel %vm782, %v773, 0
  %v808 = vsel %vm782, %v774, 0
  %v811 = vsel %vm782, %v775, 0
  %v814 = vsel %vm782, %v776, 0
  %v817 = vsel %vm782, %v777, 0
  %v820 = vsel %vm782, %v778, 0
  %v823 = vsel %vm782, %v779, 0
  %v826 = vsel %vm782, %v780, 0
  %v829 = vsel %vm782, %v781, 0
  %831 = vmatprep.subr.mxu0 0.0
  %832 = vmatpush1.msra.mxu0 0.0
  %833 = vmatprep.subr.mxu0 0.0
  %834 = vmatpush1.msra.mxu0 0.0
  %835 = vmatprep.subr.mxu0 0.0
  %836 = vmatpush1.msra.mxu0 0.0
  %837 = vmatprep.subr.mxu0 0.0
  %838 = vmatpush1.msra.mxu0 0.0
  %839 = vmatprep.subr.mxu0 0.0
  %840 = vmatpush1.msra.mxu0 0.0
  %841 = vmatprep.subr.mxu0 0.0
  %842 = vmatpush1.msra.mxu0 0.0
  %843 = vmatprep.subr.mxu0 0.0
  %844 = vmatpush1.msra.mxu0 0.0
  %845 = vmatprep.subr.mxu0 0.0
  %846 = vmatpush1.msra.mxu0 0.0
  %847 = vmatprep.subr.mxu0 0.0
  %848 = vmatpush1.msra.mxu0 0.0
  %849 = vmatprep.subr.mxu0 0.0
  %850 = vmatpush1.msra.mxu0 0.0
  %851 = vmatprep.subr.mxu0 0.0
  %852 = vmatpush1.msra.mxu0 0.0
  %853 = vmatprep.subr.mxu0 0.0
  %854 = vmatpush1.msra.mxu0 0.0
  %855 = vmatprep.subr.mxu0 0.0
  %856 = vmatpush1.msra.mxu0 0.0
  %857 = vmatprep.subr.mxu0 0.0
  %858 = vmatpush1.msra.mxu0 0.0
  %859 = vmatprep.subr.mxu0 0.0
  %860 = vmatpush1.msra.mxu0 0.0
  %861 = vmatprep.subr.mxu0 0.0
  %v862 = vand.u32 %v701, 4294901760
  %863 = vmatpush1.msra.mxu0 %v862
  %864 = vmatprep.subr.mxu0 0.0
  %865 = vmatpush2.msra.mxu0 0.0
  %866 = vmatprep.subr.mxu0 0.0
  %867 = vmatpush2.msra.mxu0 0.0
  %868 = vmatprep.subr.mxu0 0.0
  %869 = vmatpush2.msra.mxu0 0.0
  %870 = vmatprep.subr.mxu0 0.0
  %871 = vmatpush2.msra.mxu0 0.0
  %872 = vmatprep.subr.mxu0 0.0
  %873 = vmatpush2.msra.mxu0 0.0
  %874 = vmatprep.subr.mxu0 0.0
  %875 = vmatpush2.msra.mxu0 0.0
  %876 = vmatprep.subr.mxu0 0.0
  %877 = vmatpush2.msra.mxu0 0.0
  %878 = vmatprep.subr.mxu0 0.0
  %879 = vmatpush2.msra.mxu0 0.0
  %880 = vmatprep.subr.mxu0 0.0
  %881 = vmatpush2.msra.mxu0 0.0
  %882 = vmatprep.subr.mxu0 0.0
  %883 = vmatpush2.msra.mxu0 0.0
  %884 = vmatprep.subr.mxu0 0.0
  %885 = vmatpush2.msra.mxu0 0.0
  %886 = vmatprep.subr.mxu0 0.0
  %887 = vmatpush2.msra.mxu0 0.0
  %888 = vmatprep.subr.mxu0 0.0
  %889 = vmatpush2.msra.mxu0 0.0
  %890 = vmatprep.subr.mxu0 0.0
  %891 = vmatpush2.msra.mxu0 0.0
  %892 = vmatprep.subr.mxu0 0.0
  %893 = vmatpush2.msra.mxu0 0.0
  %894 = vmatprep.subr.mxu0 0.0
  %895 = vmatpush2.msra.mxu0 0.0
  %896 = vmatprep.mubr.f32.mxu0 0.0
  %v897 = vand.u32 %v784, 4294901760
  %v898 = vsub.f32 %v784, %v897
  %v899 = vand.u32 %v898, 4294901760
  %v900 = vsub.f32 %v898, %v899
  %v901 = vand.u32 %v900, 4294901760
  %902 = vmatmul.mubr.f32.gmra.mxu0 %v901
  %v903 = vpop.f32.mrf.mxu0
  %v904 = vadd.f32 %v734, %v903
  %v905 = vpop.f32.mrf.mxu0
  %906 = vmatprep.mubr.f32.mxu0 0.0
  %v907 = vand.u32 %v787, 4294901760
  %v908 = vsub.f32 %v787, %v907
  %v909 = vand.u32 %v908, 4294901760
  %v910 = vsub.f32 %v908, %v909
  %v911 = vand.u32 %v910, 4294901760
  %912 = vmatmul.mubr.f32.gmra.mxu0 %v911
  %v913 = vpop.f32.mrf.mxu0
  %v914 = vadd.f32 %v735, %v913
  %v915 = vpop.f32.mrf.mxu0
  %916 = vmatprep.mubr.f32.mxu0 0.0
  %v917 = vand.u32 %v790, 4294901760
  %v918 = vsub.f32 %v790, %v917
  %v919 = vand.u32 %v918, 4294901760
  %v920 = vsub.f32 %v918, %v919
  %v921 = vand.u32 %v920, 4294901760
  %922 = vmatmul.mubr.f32.gmra.mxu0 %v921
  %v923 = vpop.f32.mrf.mxu0
  %v924 = vadd.f32 %v736, %v923
  %v925 = vpop.f32.mrf.mxu0
  %926 = vmatprep.mubr.f32.mxu0 0.0
  %v927 = vand.u32 %v793, 4294901760
  %v928 = vsub.f32 %v793, %v927
  %v929 = vand.u32 %v928, 4294901760
  %v930 = vsub.f32 %v928, %v929
  %v931 = vand.u32 %v930, 4294901760
  %932 = vmatmul.mubr.f32.gmra.mxu0 %v931
  %v933 = vpop.f32.mrf.mxu0
  %v934 = vadd.f32 %v737, %v933
  %v935 = vpop.f32.mrf.mxu0
  %936 = vmatprep.mubr.f32.mxu0 0.0
  %v937 = vand.u32 %v796, 4294901760
  %v938 = vsub.f32 %v796, %v937
  %v939 = vand.u32 %v938, 4294901760
  %v940 = vsub.f32 %v938, %v939
  %v941 = vand.u32 %v940, 4294901760
  %942 = vmatmul.mubr.f32.gmra.mxu0 %v941
  %v943 = vpop.f32.mrf.mxu0
  %v944 = vadd.f32 %v738, %v943
  %v945 = vpop.f32.mrf.mxu0
  %946 = vmatprep.mubr.f32.mxu0 0.0
  %v947 = vand.u32 %v799, 4294901760
  %v948 = vsub.f32 %v799, %v947
  %v949 = vand.u32 %v948, 4294901760
  %v950 = vsub.f32 %v948, %v949
  %v951 = vand.u32 %v950, 4294901760
  %952 = vmatmul.mubr.f32.gmra.mxu0 %v951
  %v953 = vpop.f32.mrf.mxu0
  %v954 = vadd.f32 %v739, %v953
  %v955 = vpop.f32.mrf.mxu0
  %956 = vmatprep.mubr.f32.mxu0 0.0
  %v957 = vand.u32 %v802, 4294901760
  %v958 = vsub.f32 %v802, %v957
  %v959 = vand.u32 %v958, 4294901760
  %v960 = vsub.f32 %v958, %v959
  %v961 = vand.u32 %v960, 4294901760
  %962 = vmatmul.mubr.f32.gmra.mxu0 %v961
  %v963 = vpop.f32.mrf.mxu0
  %v964 = vadd.f32 %v740, %v963
  %v965 = vpop.f32.mrf.mxu0
  %966 = vmatprep.mubr.f32.mxu0 0.0
  %v967 = vand.u32 %v805, 4294901760
  %v968 = vsub.f32 %v805, %v967
  %v969 = vand.u32 %v968, 4294901760
  %v970 = vsub.f32 %v968, %v969
  %v971 = vand.u32 %v970, 4294901760
  %972 = vmatmul.mubr.f32.gmra.mxu0 %v971
  %v973 = vpop.f32.mrf.mxu0
  %v974 = vadd.f32 %v741, %v973
  %v975 = vpop.f32.mrf.mxu0
  %976 = vmatprep.mubr.f32.mxu0 0.0
  %v977 = vand.u32 %v808, 4294901760
  %v978 = vsub.f32 %v808, %v977
  %v979 = vand.u32 %v978, 4294901760
  %v980 = vsub.f32 %v978, %v979
  %v981 = vand.u32 %v980, 4294901760
  %982 = vmatmul.mubr.f32.gmra.mxu0 %v981
  %v983 = vpop.f32.mrf.mxu0
  %v984 = vadd.f32 %v742, %v983
  %v985 = vpop.f32.mrf.mxu0
  %986 = vmatprep.mubr.f32.mxu0 0.0
  %v987 = vand.u32 %v811, 4294901760
  %v988 = vsub.f32 %v811, %v987
  %v989 = vand.u32 %v988, 4294901760
  %v990 = vsub.f32 %v988, %v989
  %v991 = vand.u32 %v990, 4294901760
  %992 = vmatmul.mubr.f32.gmra.mxu0 %v991
  %v993 = vpop.f32.mrf.mxu0
  %v994 = vadd.f32 %v743, %v993
  %v995 = vpop.f32.mrf.mxu0
  %996 = vmatprep.mubr.f32.mxu0 0.0
  %v997 = vand.u32 %v814, 4294901760
  %v998 = vsub.f32 %v814, %v997
  %v999 = vand.u32 %v998, 4294901760
  %v1000 = vsub.f32 %v998, %v999
  %v1001 = vand.u32 %v1000, 4294901760
  %1002 = vmatmul.mubr.f32.gmra.mxu0 %v1001
  %v1003 = vpop.f32.mrf.mxu0
  %v1004 = vadd.f32 %v744, %v1003
  %v1005 = vpop.f32.mrf.mxu0
  %1006 = vmatprep.mubr.f32.mxu0 0.0
  %v1007 = vand.u32 %v817, 4294901760
  %v1008 = vsub.f32 %v817, %v1007
  %v1009 = vand.u32 %v1008, 4294901760
  %v1010 = vsub.f32 %v1008, %v1009
  %v1011 = vand.u32 %v1010, 4294901760
  %1012 = vmatmul.mubr.f32.gmra.mxu0 %v1011
  %v1013 = vpop.f32.mrf.mxu0
  %v1014 = vadd.f32 %v745, %v1013
  %v1015 = vpop.f32.mrf.mxu0
  %1016 = vmatprep.mubr.f32.mxu0 0.0
  %v1017 = vand.u32 %v820, 4294901760
  %v1018 = vsub.f32 %v820, %v1017
  %v1019 = vand.u32 %v1018, 4294901760
  %v1020 = vsub.f32 %v1018, %v1019
  %v1021 = vand.u32 %v1020, 4294901760
  %1022 = vmatmul.mubr.f32.gmra.mxu0 %v1021
  %v1023 = vpop.f32.mrf.mxu0
  %v1024 = vadd.f32 %v746, %v1023
  %v1025 = vpop.f32.mrf.mxu0
  %1026 = vmatprep.mubr.f32.mxu0 0.0
  %v1027 = vand.u32 %v823, 4294901760
  %v1028 = vsub.f32 %v823, %v1027
  %v1029 = vand.u32 %v1028, 4294901760
  %v1030 = vsub.f32 %v1028, %v1029
  %v1031 = vand.u32 %v1030, 4294901760
  %1032 = vmatmul.mubr.f32.gmra.mxu0 %v1031
  %v1033 = vpop.f32.mrf.mxu0
  %v1034 = vadd.f32 %v747, %v1033
  %v1035 = vpop.f32.mrf.mxu0
  %1036 = vmatprep.mubr.f32.mxu0 0.0
  %v1037 = vand.u32 %v826, 4294901760
  %v1038 = vsub.f32 %v826, %v1037
  %v1039 = vand.u32 %v1038, 4294901760
  %v1040 = vsub.f32 %v1038, %v1039
  %v1041 = vand.u32 %v1040, 4294901760
  %1042 = vmatmul.mubr.f32.gmra.mxu0 %v1041
  %v1043 = vpop.f32.mrf.mxu0
  %v1044 = vadd.f32 %v748, %v1043
  %v1045 = vpop.f32.mrf.mxu0
  %1046 = vmatprep.mubr.f32.mxu0 0.0
  %v1047 = vand.u32 %v829, 4294901760
  %v1048 = vsub.f32 %v829, %v1047
  %v1049 = vand.u32 %v1048, 4294901760
  %v1050 = vsub.f32 %v1048, %v1049
  %v1051 = vand.u32 %v1050, 4294901760
  %1052 = vmatmul.mubr.f32.gmra.mxu0 %v1051
  %v1053 = vpop.f32.mrf.mxu0
  %v1054 = vadd.f32 %v749, %v1053
  %v1055 = vpop.f32.mrf.mxu0
  %1056 = vdwg.mxu0
  %1057 = vmatprep.subr.mxu0 0.0
  %1058 = vmatpush1.msra.mxu0 0.0
  %1059 = vmatprep.subr.mxu0 0.0
  %1060 = vmatpush1.msra.mxu0 0.0
  %1061 = vmatprep.subr.mxu0 0.0
  %1062 = vmatpush1.msra.mxu0 0.0
  %1063 = vmatprep.subr.mxu0 0.0
  %1064 = vmatpush1.msra.mxu0 0.0
  %1065 = vmatprep.subr.mxu0 0.0
  %1066 = vmatpush1.msra.mxu0 0.0
  %1067 = vmatprep.subr.mxu0 0.0
  %1068 = vmatpush1.msra.mxu0 0.0
  %1069 = vmatprep.subr.mxu0 0.0
  %1070 = vmatpush1.msra.mxu0 0.0
  %1071 = vmatprep.subr.mxu0 0.0
  %1072 = vmatpush1.msra.mxu0 0.0
  %1073 = vmatprep.subr.mxu0 0.0
  %1074 = vmatpush1.msra.mxu0 0.0
  %1075 = vmatprep.subr.mxu0 0.0
  %1076 = vmatpush1.msra.mxu0 0.0
  %1077 = vmatprep.subr.mxu0 0.0
  %1078 = vmatpush1.msra.mxu0 0.0
  %1079 = vmatprep.subr.mxu0 0.0
  %1080 = vmatpush1.msra.mxu0 0.0
  %1081 = vmatprep.subr.mxu0 0.0
  %1082 = vmatpush1.msra.mxu0 0.0
  %1083 = vmatprep.subr.mxu0 0.0
  %1084 = vmatpush1.msra.mxu0 0.0
  %1085 = vmatprep.subr.mxu0 0.0
  %1086 = vmatpush1.msra.mxu0 0.0
  %1087 = vmatprep.subr.mxu0 0.0
  %v1088 = vand.u32 %v701, 4294901760
  %v1089 = vsub.f32 %v701, %v1088
  %v1090 = vand.u32 %v1089, 4294901760
  %v1091 = vsub.f32 %v1089, %v1090
  %v1092 = vand.u32 %v1091, 4294901760
  %1093 = vmatpush1.msra.mxu0 %v1092
  %1094 = vmatprep.subr.mxu0 0.0
  %1095 = vmatpush2.msra.mxu0 0.0
  %1096 = vmatprep.subr.mxu0 0.0
  %1097 = vmatpush2.msra.mxu0 0.0
  %1098 = vmatprep.subr.mxu0 0.0
  %1099 = vmatpush2.msra.mxu0 0.0
  %1100 = vmatprep.subr.mxu0 0.0
  %1101 = vmatpush2.msra.mxu0 0.0
  %1102 = vmatprep.subr.mxu0 0.0
  %1103 = vmatpush2.msra.mxu0 0.0
  %1104 = vmatprep.subr.mxu0 0.0
  %1105 = vmatpush2.msra.mxu0 0.0
  %1106 = vmatprep.subr.mxu0 0.0
  %1107 = vmatpush2.msra.mxu0 0.0
  %1108 = vmatprep.subr.mxu0 0.0
  %1109 = vmatpush2.msra.mxu0 0.0
  %1110 = vmatprep.subr.mxu0 0.0
  %1111 = vmatpush2.msra.mxu0 0.0
  %1112 = vmatprep.subr.mxu0 0.0
  %1113 = vmatpush2.msra.mxu0 0.0
  %1114 = vmatprep.subr.mxu0 0.0
  %1115 = vmatpush2.msra.mxu0 0.0
  %1116 = vmatprep.subr.mxu0 0.0
  %1117 = vmatpush2.msra.mxu0 0.0
  %1118 = vmatprep.subr.mxu0 0.0
  %1119 = vmatpush2.msra.mxu0 0.0
  %1120 = vmatprep.subr.mxu0 0.0
  %1121 = vmatpush2.msra.mxu0 0.0
  %1122 = vmatprep.subr.mxu0 0.0
  %1123 = vmatpush2.msra.mxu0 0.0
  %1124 = vmatprep.subr.mxu0 0.0
  %1125 = vmatpush2.msra.mxu0 0.0
  %1126 = vmatprep.mubr.f32.mxu0 0.0
  %v1127 = vand.u32 %v784, 4294901760
  %1128 = vmatmul.mubr.f32.gmra.mxu0 %v1127
  %v1129 = vpop.f32.mrf.mxu0
  %v1130 = vadd.f32 %v904, %v1129
  %v1131 = vpop.f32.mrf.mxu0
  %1132 = vmatprep.mubr.f32.mxu0 0.0
  %v1133 = vand.u32 %v787, 4294901760
  %1134 = vmatmul.mubr.f32.gmra.mxu0 %v1133
  %v1135 = vpop.f32.mrf.mxu0
  %v1136 = vadd.f32 %v914, %v1135
  %v1137 = vpop.f32.mrf.mxu0
  %1138 = vmatprep.mubr.f32.mxu0 0.0
  %v1139 = vand.u32 %v790, 4294901760
  %1140 = vmatmul.mubr.f32.gmra.mxu0 %v1139
  %v1141 = vpop.f32.mrf.mxu0
  %v1142 = vadd.f32 %v924, %v1141
  %v1143 = vpop.f32.mrf.mxu0
  %1144 = vmatprep.mubr.f32.mxu0 0.0
  %v1145 = vand.u32 %v793, 4294901760
  %1146 = vmatmul.mubr.f32.gmra.mxu0 %v1145
  %v1147 = vpop.f32.mrf.mxu0
  %v1148 = vadd.f32 %v934, %v1147
  %v1149 = vpop.f32.mrf.mxu0
  %1150 = vmatprep.mubr.f32.mxu0 0.0
  %v1151 = vand.u32 %v796, 4294901760
  %1152 = vmatmul.mubr.f32.gmra.mxu0 %v1151
  %v1153 = vpop.f32.mrf.mxu0
  %v1154 = vadd.f32 %v944, %v1153
  %v1155 = vpop.f32.mrf.mxu0
  %1156 = vmatprep.mubr.f32.mxu0 0.0
  %v1157 = vand.u32 %v799, 4294901760
  %1158 = vmatmul.mubr.f32.gmra.mxu0 %v1157
  %v1159 = vpop.f32.mrf.mxu0
  %v1160 = vadd.f32 %v954, %v1159
  %v1161 = vpop.f32.mrf.mxu0
  %1162 = vmatprep.mubr.f32.mxu0 0.0
  %v1163 = vand.u32 %v802, 4294901760
  %1164 = vmatmul.mubr.f32.gmra.mxu0 %v1163
  %v1165 = vpop.f32.mrf.mxu0
  %v1166 = vadd.f32 %v964, %v1165
  %v1167 = vpop.f32.mrf.mxu0
  %1168 = vmatprep.mubr.f32.mxu0 0.0
  %v1169 = vand.u32 %v805, 4294901760
  %1170 = vmatmul.mubr.f32.gmra.mxu0 %v1169
  %v1171 = vpop.f32.mrf.mxu0
  %v1172 = vadd.f32 %v974, %v1171
  %v1173 = vpop.f32.mrf.mxu0
  %1174 = vmatprep.mubr.f32.mxu0 0.0
  %v1175 = vand.u32 %v808, 4294901760
  %1176 = vmatmul.mubr.f32.gmra.mxu0 %v1175
  %v1177 = vpop.f32.mrf.mxu0
  %v1178 = vadd.f32 %v984, %v1177
  %v1179 = vpop.f32.mrf.mxu0
  %1180 = vmatprep.mubr.f32.mxu0 0.0
  %v1181 = vand.u32 %v811, 4294901760
  %1182 = vmatmul.mubr.f32.gmra.mxu0 %v1181
  %v1183 = vpop.f32.mrf.mxu0
  %v1184 = vadd.f32 %v994, %v1183
  %v1185 = vpop.f32.mrf.mxu0
  %1186 = vmatprep.mubr.f32.mxu0 0.0
  %v1187 = vand.u32 %v814, 4294901760
  %1188 = vmatmul.mubr.f32.gmra.mxu0 %v1187
  %v1189 = vpop.f32.mrf.mxu0
  %v1190 = vadd.f32 %v1004, %v1189
  %v1191 = vpop.f32.mrf.mxu0
  %1192 = vmatprep.mubr.f32.mxu0 0.0
  %v1193 = vand.u32 %v817, 4294901760
  %1194 = vmatmul.mubr.f32.gmra.mxu0 %v1193
  %v1195 = vpop.f32.mrf.mxu0
  %v1196 = vadd.f32 %v1014, %v1195
  %v1197 = vpop.f32.mrf.mxu0
  %1198 = vmatprep.mubr.f32.mxu0 0.0
  %v1199 = vand.u32 %v820, 4294901760
  %1200 = vmatmul.mubr.f32.gmra.mxu0 %v1199
  %v1201 = vpop.f32.mrf.mxu0
  %v1202 = vadd.f32 %v1024, %v1201
  %v1203 = vpop.f32.mrf.mxu0
  %1204 = vmatprep.mubr.f32.mxu0 0.0
  %v1205 = vand.u32 %v823, 4294901760
  %1206 = vmatmul.mubr.f32.gmra.mxu0 %v1205
  %v1207 = vpop.f32.mrf.mxu0
  %v1208 = vadd.f32 %v1034, %v1207
  %v1209 = vpop.f32.mrf.mxu0
  %1210 = vmatprep.mubr.f32.mxu0 0.0
  %v1211 = vand.u32 %v826, 4294901760
  %1212 = vmatmul.mubr.f32.gmra.mxu0 %v1211
  %v1213 = vpop.f32.mrf.mxu0
  %v1214 = vadd.f32 %v1044, %v1213
  %v1215 = vpop.f32.mrf.mxu0
  %1216 = vmatprep.mubr.f32.mxu0 0.0
  %v1217 = vand.u32 %v829, 4294901760
  %1218 = vmatmul.mubr.f32.gmra.mxu0 %v1217
  %v1219 = vpop.f32.mrf.mxu0
  %v1220 = vadd.f32 %v1054, %v1219
  %v1221 = vpop.f32.mrf.mxu0
  %1222 = vdwg.mxu0
  %1223 = vmatprep.subr.mxu0 0.0
  %1224 = vmatpush1.msra.mxu0 0.0
  %1225 = vmatprep.subr.mxu0 0.0
  %1226 = vmatpush1.msra.mxu0 0.0
  %1227 = vmatprep.subr.mxu0 0.0
  %1228 = vmatpush1.msra.mxu0 0.0
  %1229 = vmatprep.subr.mxu0 0.0
  %1230 = vmatpush1.msra.mxu0 0.0
  %1231 = vmatprep.subr.mxu0 0.0
  %1232 = vmatpush1.msra.mxu0 0.0
  %1233 = vmatprep.subr.mxu0 0.0
  %1234 = vmatpush1.msra.mxu0 0.0
  %1235 = vmatprep.subr.mxu0 0.0
  %1236 = vmatpush1.msra.mxu0 0.0
  %1237 = vmatprep.subr.mxu0 0.0
  %1238 = vmatpush1.msra.mxu0 0.0
  %1239 = vmatprep.subr.mxu0 0.0
  %1240 = vmatpush1.msra.mxu0 0.0
  %1241 = vmatprep.subr.mxu0 0.0
  %1242 = vmatpush1.msra.mxu0 0.0
  %1243 = vmatprep.subr.mxu0 0.0
  %1244 = vmatpush1.msra.mxu0 0.0
  %1245 = vmatprep.subr.mxu0 0.0
  %1246 = vmatpush1.msra.mxu0 0.0
  %1247 = vmatprep.subr.mxu0 0.0
  %1248 = vmatpush1.msra.mxu0 0.0
  %1249 = vmatprep.subr.mxu0 0.0
  %1250 = vmatpush1.msra.mxu0 0.0
  %1251 = vmatprep.subr.mxu0 0.0
  %1252 = vmatpush1.msra.mxu0 0.0
  %1253 = vmatprep.subr.mxu0 0.0
  %v1254 = vand.u32 %v701, 4294901760
  %v1255 = vsub.f32 %v701, %v1254
  %1256 = vmatpush1.msra.mxu0 %v1255
  %1257 = vmatprep.subr.mxu0 0.0
  %1258 = vmatpush2.msra.mxu0 0.0
  %1259 = vmatprep.subr.mxu0 0.0
  %1260 = vmatpush2.msra.mxu0 0.0
  %1261 = vmatprep.subr.mxu0 0.0
  %1262 = vmatpush2.msra.mxu0 0.0
  %1263 = vmatprep.subr.mxu0 0.0
  %1264 = vmatpush2.msra.mxu0 0.0
  %1265 = vmatprep.subr.mxu0 0.0
  %1266 = vmatpush2.msra.mxu0 0.0
  %1267 = vmatprep.subr.mxu0 0.0
  %1268 = vmatpush2.msra.mxu0 0.0
  %1269 = vmatprep.subr.mxu0 0.0
  %1270 = vmatpush2.msra.mxu0 0.0
  %1271 = vmatprep.subr.mxu0 0.0
  %1272 = vmatpush2.msra.mxu0 0.0
  %1273 = vmatprep.subr.mxu0 0.0
  %1274 = vmatpush2.msra.mxu0 0.0
  %1275 = vmatprep.subr.mxu0 0.0
  %1276 = vmatpush2.msra.mxu0 0.0
  %1277 = vmatprep.subr.mxu0 0.0
  %1278 = vmatpush2.msra.mxu0 0.0
  %1279 = vmatprep.subr.mxu0 0.0
  %1280 = vmatpush2.msra.mxu0 0.0
  %1281 = vmatprep.subr.mxu0 0.0
  %1282 = vmatpush2.msra.mxu0 0.0
  %1283 = vmatprep.subr.mxu0 0.0
  %1284 = vmatpush2.msra.mxu0 0.0
  %1285 = vmatprep.subr.mxu0 0.0
  %1286 = vmatpush2.msra.mxu0 0.0
  %1287 = vmatprep.subr.mxu0 0.0
  %1288 = vmatpush2.msra.mxu0 0.0
  %1289 = vmatprep.mubr.f32.mxu0 0.0
  %v1290 = vand.u32 %v784, 4294901760
  %v1291 = vsub.f32 %v784, %v1290
  %1292 = vmatmul.mubr.f32.gmra.mxu0 %v1291
  %v1293 = vpop.f32.mrf.mxu0
  %v1294 = vadd.f32 %v1130, %v1293
  %v1295 = vpop.f32.mrf.mxu0
  %1296 = vmatprep.mubr.f32.mxu0 0.0
  %v1297 = vand.u32 %v787, 4294901760
  %v1298 = vsub.f32 %v787, %v1297
  %1299 = vmatmul.mubr.f32.gmra.mxu0 %v1298
  %v1300 = vpop.f32.mrf.mxu0
  %v1301 = vadd.f32 %v1136, %v1300
  %v1302 = vpop.f32.mrf.mxu0
  %1303 = vmatprep.mubr.f32.mxu0 0.0
  %v1304 = vand.u32 %v790, 4294901760
  %v1305 = vsub.f32 %v790, %v1304
  %1306 = vmatmul.mubr.f32.gmra.mxu0 %v1305
  %v1307 = vpop.f32.mrf.mxu0
  %v1308 = vadd.f32 %v1142, %v1307
  %v1309 = vpop.f32.mrf.mxu0
  %1310 = vmatprep.mubr.f32.mxu0 0.0
  %v1311 = vand.u32 %v793, 4294901760
  %v1312 = vsub.f32 %v793, %v1311
  %1313 = vmatmul.mubr.f32.gmra.mxu0 %v1312
  %v1314 = vpop.f32.mrf.mxu0
  %v1315 = vadd.f32 %v1148, %v1314
  %v1316 = vpop.f32.mrf.mxu0
  %1317 = vmatprep.mubr.f32.mxu0 0.0
  %v1318 = vand.u32 %v796, 4294901760
  %v1319 = vsub.f32 %v796, %v1318
  %1320 = vmatmul.mubr.f32.gmra.mxu0 %v1319
  %v1321 = vpop.f32.mrf.mxu0
  %v1322 = vadd.f32 %v1154, %v1321
  %v1323 = vpop.f32.mrf.mxu0
  %1324 = vmatprep.mubr.f32.mxu0 0.0
  %v1325 = vand.u32 %v799, 4294901760
  %v1326 = vsub.f32 %v799, %v1325
  %1327 = vmatmul.mubr.f32.gmra.mxu0 %v1326
  %v1328 = vpop.f32.mrf.mxu0
  %v1329 = vadd.f32 %v1160, %v1328
  %v1330 = vpop.f32.mrf.mxu0
  %1331 = vmatprep.mubr.f32.mxu0 0.0
  %v1332 = vand.u32 %v802, 4294901760
  %v1333 = vsub.f32 %v802, %v1332
  %1334 = vmatmul.mubr.f32.gmra.mxu0 %v1333
  %v1335 = vpop.f32.mrf.mxu0
  %v1336 = vadd.f32 %v1166, %v1335
  %v1337 = vpop.f32.mrf.mxu0
  %1338 = vmatprep.mubr.f32.mxu0 0.0
  %v1339 = vand.u32 %v805, 4294901760
  %v1340 = vsub.f32 %v805, %v1339
  %1341 = vmatmul.mubr.f32.gmra.mxu0 %v1340
  %v1342 = vpop.f32.mrf.mxu0
  %v1343 = vadd.f32 %v1172, %v1342
  %v1344 = vpop.f32.mrf.mxu0
  %1345 = vmatprep.mubr.f32.mxu0 0.0
  %v1346 = vand.u32 %v808, 4294901760
  %v1347 = vsub.f32 %v808, %v1346
  %1348 = vmatmul.mubr.f32.gmra.mxu0 %v1347
  %v1349 = vpop.f32.mrf.mxu0
  %v1350 = vadd.f32 %v1178, %v1349
  %v1351 = vpop.f32.mrf.mxu0
  %1352 = vmatprep.mubr.f32.mxu0 0.0
  %v1353 = vand.u32 %v811, 4294901760
  %v1354 = vsub.f32 %v811, %v1353
  %1355 = vmatmul.mubr.f32.gmra.mxu0 %v1354
  %v1356 = vpop.f32.mrf.mxu0
  %v1357 = vadd.f32 %v1184, %v1356
  %v1358 = vpop.f32.mrf.mxu0
  %1359 = vmatprep.mubr.f32.mxu0 0.0
  %v1360 = vand.u32 %v814, 4294901760
  %v1361 = vsub.f32 %v814, %v1360
  %1362 = vmatmul.mubr.f32.gmra.mxu0 %v1361
  %v1363 = vpop.f32.mrf.mxu0
  %v1364 = vadd.f32 %v1190, %v1363
  %v1365 = vpop.f32.mrf.mxu0
  %1366 = vmatprep.mubr.f32.mxu0 0.0
  %v1367 = vand.u32 %v817, 4294901760
  %v1368 = vsub.f32 %v817, %v1367
  %1369 = vmatmul.mubr.f32.gmra.mxu0 %v1368
  %v1370 = vpop.f32.mrf.mxu0
  %v1371 = vadd.f32 %v1196, %v1370
  %v1372 = vpop.f32.mrf.mxu0
  %1373 = vmatprep.mubr.f32.mxu0 0.0
  %v1374 = vand.u32 %v820, 4294901760
  %v1375 = vsub.f32 %v820, %v1374
  %1376 = vmatmul.mubr.f32.gmra.mxu0 %v1375
  %v1377 = vpop.f32.mrf.mxu0
  %v1378 = vadd.f32 %v1202, %v1377
  %v1379 = vpop.f32.mrf.mxu0
  %1380 = vmatprep.mubr.f32.mxu0 0.0
  %v1381 = vand.u32 %v823, 4294901760
  %v1382 = vsub.f32 %v823, %v1381
  %1383 = vmatmul.mubr.f32.gmra.mxu0 %v1382
  %v1384 = vpop.f32.mrf.mxu0
  %v1385 = vadd.f32 %v1208, %v1384
  %v1386 = vpop.f32.mrf.mxu0
  %1387 = vmatprep.mubr.f32.mxu0 0.0
  %v1388 = vand.u32 %v826, 4294901760
  %v1389 = vsub.f32 %v826, %v1388
  %1390 = vmatmul.mubr.f32.gmra.mxu0 %v1389
  %v1391 = vpop.f32.mrf.mxu0
  %v1392 = vadd.f32 %v1214, %v1391
  %v1393 = vpop.f32.mrf.mxu0
  %1394 = vmatprep.mubr.f32.mxu0 0.0
  %v1395 = vand.u32 %v829, 4294901760
  %v1396 = vsub.f32 %v829, %v1395
  %1397 = vmatmul.mubr.f32.gmra.mxu0 %v1396
  %v1398 = vpop.f32.mrf.mxu0
  %v1399 = vadd.f32 %v1220, %v1398
  %v1400 = vpop.f32.mrf.mxu0
  %1401 = vdwg.mxu0
  %1402 = vmatprep.subr.mxu0 0.0
  %1403 = vmatpush1.msra.mxu0 0.0
  %1404 = vmatprep.subr.mxu0 0.0
  %1405 = vmatpush1.msra.mxu0 0.0
  %1406 = vmatprep.subr.mxu0 0.0
  %1407 = vmatpush1.msra.mxu0 0.0
  %1408 = vmatprep.subr.mxu0 0.0
  %1409 = vmatpush1.msra.mxu0 0.0
  %1410 = vmatprep.subr.mxu0 0.0
  %1411 = vmatpush1.msra.mxu0 0.0
  %1412 = vmatprep.subr.mxu0 0.0
  %1413 = vmatpush1.msra.mxu0 0.0
  %1414 = vmatprep.subr.mxu0 0.0
  %1415 = vmatpush1.msra.mxu0 0.0
  %1416 = vmatprep.subr.mxu0 0.0
  %1417 = vmatpush1.msra.mxu0 0.0
  %1418 = vmatprep.subr.mxu0 0.0
  %1419 = vmatpush1.msra.mxu0 0.0
  %1420 = vmatprep.subr.mxu0 0.0
  %1421 = vmatpush1.msra.mxu0 0.0
  %1422 = vmatprep.subr.mxu0 0.0
  %1423 = vmatpush1.msra.mxu0 0.0
  %1424 = vmatprep.subr.mxu0 0.0
  %1425 = vmatpush1.msra.mxu0 0.0
  %1426 = vmatprep.subr.mxu0 0.0
  %1427 = vmatpush1.msra.mxu0 0.0
  %1428 = vmatprep.subr.mxu0 0.0
  %1429 = vmatpush1.msra.mxu0 0.0
  %1430 = vmatprep.subr.mxu0 0.0
  %1431 = vmatpush1.msra.mxu0 0.0
  %1432 = vmatprep.subr.mxu0 0.0
  %v1433 = vand.u32 %v701, 4294901760
  %1434 = vmatpush1.msra.mxu0 %v1433
  %1435 = vmatprep.subr.mxu0 0.0
  %1436 = vmatpush2.msra.mxu0 0.0
  %1437 = vmatprep.subr.mxu0 0.0
  %1438 = vmatpush2.msra.mxu0 0.0
  %1439 = vmatprep.subr.mxu0 0.0
  %1440 = vmatpush2.msra.mxu0 0.0
  %1441 = vmatprep.subr.mxu0 0.0
  %1442 = vmatpush2.msra.mxu0 0.0
  %1443 = vmatprep.subr.mxu0 0.0
  %1444 = vmatpush2.msra.mxu0 0.0
  %1445 = vmatprep.subr.mxu0 0.0
  %1446 = vmatpush2.msra.mxu0 0.0
  %1447 = vmatprep.subr.mxu0 0.0
  %1448 = vmatpush2.msra.mxu0 0.0
  %1449 = vmatprep.subr.mxu0 0.0
  %1450 = vmatpush2.msra.mxu0 0.0
  %1451 = vmatprep.subr.mxu0 0.0
  %1452 = vmatpush2.msra.mxu0 0.0
  %1453 = vmatprep.subr.mxu0 0.0
  %1454 = vmatpush2.msra.mxu0 0.0
  %1455 = vmatprep.subr.mxu0 0.0
  %1456 = vmatpush2.msra.mxu0 0.0
  %1457 = vmatprep.subr.mxu0 0.0
  %1458 = vmatpush2.msra.mxu0 0.0
  %1459 = vmatprep.subr.mxu0 0.0
  %1460 = vmatpush2.msra.mxu0 0.0
  %1461 = vmatprep.subr.mxu0 0.0
  %1462 = vmatpush2.msra.mxu0 0.0
  %1463 = vmatprep.subr.mxu0 0.0
  %1464 = vmatpush2.msra.mxu0 0.0
  %1465 = vmatprep.subr.mxu0 0.0
  %1466 = vmatpush2.msra.mxu0 0.0
  %1467 = vmatprep.mubr.f32.mxu0 0.0
  %v1468 = vand.u32 %v784, 4294901760
  %v1469 = vsub.f32 %v784, %v1468
  %v1470 = vand.u32 %v1469, 4294901760
  %1471 = vmatmul.mubr.f32.gmra.mxu0 %v1470
  %v1472 = vpop.f32.mrf.mxu0
  %v1473 = vadd.f32 %v1294, %v1472
  %v1474 = vpop.f32.mrf.mxu0
  %1475 = vmatprep.mubr.f32.mxu0 0.0
  %v1476 = vand.u32 %v787, 4294901760
  %v1477 = vsub.f32 %v787, %v1476
  %v1478 = vand.u32 %v1477, 4294901760
  %1479 = vmatmul.mubr.f32.gmra.mxu0 %v1478
  %v1480 = vpop.f32.mrf.mxu0
  %v1481 = vadd.f32 %v1301, %v1480
  %v1482 = vpop.f32.mrf.mxu0
  %1483 = vmatprep.mubr.f32.mxu0 0.0
  %v1484 = vand.u32 %v790, 4294901760
  %v1485 = vsub.f32 %v790, %v1484
  %v1486 = vand.u32 %v1485, 4294901760
  %1487 = vmatmul.mubr.f32.gmra.mxu0 %v1486
  %v1488 = vpop.f32.mrf.mxu0
  %v1489 = vadd.f32 %v1308, %v1488
  %v1490 = vpop.f32.mrf.mxu0
  %1491 = vmatprep.mubr.f32.mxu0 0.0
  %v1492 = vand.u32 %v793, 4294901760
  %v1493 = vsub.f32 %v793, %v1492
  %v1494 = vand.u32 %v1493, 4294901760
  %1495 = vmatmul.mubr.f32.gmra.mxu0 %v1494
  %v1496 = vpop.f32.mrf.mxu0
  %v1497 = vadd.f32 %v1315, %v1496
  %v1498 = vpop.f32.mrf.mxu0
  %1499 = vmatprep.mubr.f32.mxu0 0.0
  %v1500 = vand.u32 %v796, 4294901760
  %v1501 = vsub.f32 %v796, %v1500
  %v1502 = vand.u32 %v1501, 4294901760
  %1503 = vmatmul.mubr.f32.gmra.mxu0 %v1502
  %v1504 = vpop.f32.mrf.mxu0
  %v1505 = vadd.f32 %v1322, %v1504
  %v1506 = vpop.f32.mrf.mxu0
  %1507 = vmatprep.mubr.f32.mxu0 0.0
  %v1508 = vand.u32 %v799, 4294901760
  %v1509 = vsub.f32 %v799, %v1508
  %v1510 = vand.u32 %v1509, 4294901760
  %1511 = vmatmul.mubr.f32.gmra.mxu0 %v1510
  %v1512 = vpop.f32.mrf.mxu0
  %v1513 = vadd.f32 %v1329, %v1512
  %v1514 = vpop.f32.mrf.mxu0
  %1515 = vmatprep.mubr.f32.mxu0 0.0
  %v1516 = vand.u32 %v802, 4294901760
  %v1517 = vsub.f32 %v802, %v1516
  %v1518 = vand.u32 %v1517, 4294901760
  %1519 = vmatmul.mubr.f32.gmra.mxu0 %v1518
  %v1520 = vpop.f32.mrf.mxu0
  %v1521 = vadd.f32 %v1336, %v1520
  %v1522 = vpop.f32.mrf.mxu0
  %1523 = vmatprep.mubr.f32.mxu0 0.0
  %v1524 = vand.u32 %v805, 4294901760
  %v1525 = vsub.f32 %v805, %v1524
  %v1526 = vand.u32 %v1525, 4294901760
  %1527 = vmatmul.mubr.f32.gmra.mxu0 %v1526
  %v1528 = vpop.f32.mrf.mxu0
  %v1529 = vadd.f32 %v1343, %v1528
  %v1530 = vpop.f32.mrf.mxu0
  %1531 = vmatprep.mubr.f32.mxu0 0.0
  %v1532 = vand.u32 %v808, 4294901760
  %v1533 = vsub.f32 %v808, %v1532
  %v1534 = vand.u32 %v1533, 4294901760
  %1535 = vmatmul.mubr.f32.gmra.mxu0 %v1534
  %v1536 = vpop.f32.mrf.mxu0
  %v1537 = vadd.f32 %v1350, %v1536
  %v1538 = vpop.f32.mrf.mxu0
  %1539 = vmatprep.mubr.f32.mxu0 0.0
  %v1540 = vand.u32 %v811, 4294901760
  %v1541 = vsub.f32 %v811, %v1540
  %v1542 = vand.u32 %v1541, 4294901760
  %1543 = vmatmul.mubr.f32.gmra.mxu0 %v1542
  %v1544 = vpop.f32.mrf.mxu0
  %v1545 = vadd.f32 %v1357, %v1544
  %v1546 = vpop.f32.mrf.mxu0
  %1547 = vmatprep.mubr.f32.mxu0 0.0
  %v1548 = vand.u32 %v814, 4294901760
  %v1549 = vsub.f32 %v814, %v1548
  %v1550 = vand.u32 %v1549, 4294901760
  %1551 = vmatmul.mubr.f32.gmra.mxu0 %v1550
  %v1552 = vpop.f32.mrf.mxu0
  %v1553 = vadd.f32 %v1364, %v1552
  %v1554 = vpop.f32.mrf.mxu0
  %1555 = vmatprep.mubr.f32.mxu0 0.0
  %v1556 = vand.u32 %v817, 4294901760
  %v1557 = vsub.f32 %v817, %v1556
  %v1558 = vand.u32 %v1557, 4294901760
  %1559 = vmatmul.mubr.f32.gmra.mxu0 %v1558
  %v1560 = vpop.f32.mrf.mxu0
  %v1561 = vadd.f32 %v1371, %v1560
  %v1562 = vpop.f32.mrf.mxu0
  %1563 = vmatprep.mubr.f32.mxu0 0.0
  %v1564 = vand.u32 %v820, 4294901760
  %v1565 = vsub.f32 %v820, %v1564
  %v1566 = vand.u32 %v1565, 4294901760
  %1567 = vmatmul.mubr.f32.gmra.mxu0 %v1566
  %v1568 = vpop.f32.mrf.mxu0
  %v1569 = vadd.f32 %v1378, %v1568
  %v1570 = vpop.f32.mrf.mxu0
  %1571 = vmatprep.mubr.f32.mxu0 0.0
  %v1572 = vand.u32 %v823, 4294901760
  %v1573 = vsub.f32 %v823, %v1572
  %v1574 = vand.u32 %v1573, 4294901760
  %1575 = vmatmul.mubr.f32.gmra.mxu0 %v1574
  %v1576 = vpop.f32.mrf.mxu0
  %v1577 = vadd.f32 %v1385, %v1576
  %v1578 = vpop.f32.mrf.mxu0
  %1579 = vmatprep.mubr.f32.mxu0 0.0
  %v1580 = vand.u32 %v826, 4294901760
  %v1581 = vsub.f32 %v826, %v1580
  %v1582 = vand.u32 %v1581, 4294901760
  %1583 = vmatmul.mubr.f32.gmra.mxu0 %v1582
  %v1584 = vpop.f32.mrf.mxu0
  %v1585 = vadd.f32 %v1392, %v1584
  %v1586 = vpop.f32.mrf.mxu0
  %1587 = vmatprep.mubr.f32.mxu0 0.0
  %v1588 = vand.u32 %v829, 4294901760
  %v1589 = vsub.f32 %v829, %v1588
  %v1590 = vand.u32 %v1589, 4294901760
  %1591 = vmatmul.mubr.f32.gmra.mxu0 %v1590
  %v1592 = vpop.f32.mrf.mxu0
  %v1593 = vadd.f32 %v1399, %v1592
  %v1594 = vpop.f32.mrf.mxu0
  %1595 = vdwg.mxu0
  %1596 = vmatprep.subr.mxu0 0.0
  %1597 = vmatpush1.msra.mxu0 0.0
  %1598 = vmatprep.subr.mxu0 0.0
  %1599 = vmatpush1.msra.mxu0 0.0
  %1600 = vmatprep.subr.mxu0 0.0
  %1601 = vmatpush1.msra.mxu0 0.0
  %1602 = vmatprep.subr.mxu0 0.0
  %1603 = vmatpush1.msra.mxu0 0.0
  %1604 = vmatprep.subr.mxu0 0.0
  %1605 = vmatpush1.msra.mxu0 0.0
  %1606 = vmatprep.subr.mxu0 0.0
  %1607 = vmatpush1.msra.mxu0 0.0
  %1608 = vmatprep.subr.mxu0 0.0
  %1609 = vmatpush1.msra.mxu0 0.0
  %1610 = vmatprep.subr.mxu0 0.0
  %1611 = vmatpush1.msra.mxu0 0.0
  %1612 = vmatprep.subr.mxu0 0.0
  %1613 = vmatpush1.msra.mxu0 0.0
  %1614 = vmatprep.subr.mxu0 0.0
  %1615 = vmatpush1.msra.mxu0 0.0
  %1616 = vmatprep.subr.mxu0 0.0
  %1617 = vmatpush1.msra.mxu0 0.0
  %1618 = vmatprep.subr.mxu0 0.0
  %1619 = vmatpush1.msra.mxu0 0.0
  %1620 = vmatprep.subr.mxu0 0.0
  %1621 = vmatpush1.msra.mxu0 0.0
  %1622 = vmatprep.subr.mxu0 0.0
  %1623 = vmatpush1.msra.mxu0 0.0
  %1624 = vmatprep.subr.mxu0 0.0
  %1625 = vmatpush1.msra.mxu0 0.0
  %1626 = vmatprep.subr.mxu0 0.0
  %v1627 = vand.u32 %v701, 4294901760
  %v1628 = vsub.f32 %v701, %v1627
  %v1629 = vand.u32 %v1628, 4294901760
  %1630 = vmatpush1.msra.mxu0 %v1629
  %1631 = vmatprep.subr.mxu0 0.0
  %1632 = vmatpush2.msra.mxu0 0.0
  %1633 = vmatprep.subr.mxu0 0.0
  %1634 = vmatpush2.msra.mxu0 0.0
  %1635 = vmatprep.subr.mxu0 0.0
  %1636 = vmatpush2.msra.mxu0 0.0
  %1637 = vmatprep.subr.mxu0 0.0
  %1638 = vmatpush2.msra.mxu0 0.0
  %1639 = vmatprep.subr.mxu0 0.0
  %1640 = vmatpush2.msra.mxu0 0.0
  %1641 = vmatprep.subr.mxu0 0.0
  %1642 = vmatpush2.msra.mxu0 0.0
  %1643 = vmatprep.subr.mxu0 0.0
  %1644 = vmatpush2.msra.mxu0 0.0
  %1645 = vmatprep.subr.mxu0 0.0
  %1646 = vmatpush2.msra.mxu0 0.0
  %1647 = vmatprep.subr.mxu0 0.0
  %1648 = vmatpush2.msra.mxu0 0.0
  %1649 = vmatprep.subr.mxu0 0.0
  %1650 = vmatpush2.msra.mxu0 0.0
  %1651 = vmatprep.subr.mxu0 0.0
  %1652 = vmatpush2.msra.mxu0 0.0
  %1653 = vmatprep.subr.mxu0 0.0
  %1654 = vmatpush2.msra.mxu0 0.0
  %1655 = vmatprep.subr.mxu0 0.0
  %1656 = vmatpush2.msra.mxu0 0.0
  %1657 = vmatprep.subr.mxu0 0.0
  %1658 = vmatpush2.msra.mxu0 0.0
  %1659 = vmatprep.subr.mxu0 0.0
  %1660 = vmatpush2.msra.mxu0 0.0
  %1661 = vmatprep.subr.mxu0 0.0
  %1662 = vmatpush2.msra.mxu0 0.0
  %1663 = vmatprep.mubr.f32.mxu0 0.0
  %v1664 = vand.u32 %v784, 4294901760
  %1665 = vmatmul.mubr.f32.gmra.mxu0 %v1664
  %v1666 = vpop.f32.mrf.mxu0
  %v1667 = vadd.f32 %v1473, %v1666
  %v1668 = vpop.f32.mrf.mxu0
  %1669 = vmatprep.mubr.f32.mxu0 0.0
  %v1670 = vand.u32 %v787, 4294901760
  %1671 = vmatmul.mubr.f32.gmra.mxu0 %v1670
  %v1672 = vpop.f32.mrf.mxu0
  %v1673 = vadd.f32 %v1481, %v1672
  %v1674 = vpop.f32.mrf.mxu0
  %1675 = vmatprep.mubr.f32.mxu0 0.0
  %v1676 = vand.u32 %v790, 4294901760
  %1677 = vmatmul.mubr.f32.gmra.mxu0 %v1676
  %v1678 = vpop.f32.mrf.mxu0
  %v1679 = vadd.f32 %v1489, %v1678
  %v1680 = vpop.f32.mrf.mxu0
  %1681 = vmatprep.mubr.f32.mxu0 0.0
  %v1682 = vand.u32 %v793, 4294901760
  %1683 = vmatmul.mubr.f32.gmra.mxu0 %v1682
  %v1684 = vpop.f32.mrf.mxu0
  %v1685 = vadd.f32 %v1497, %v1684
  %v1686 = vpop.f32.mrf.mxu0
  %1687 = vmatprep.mubr.f32.mxu0 0.0
  %v1688 = vand.u32 %v796, 4294901760
  %1689 = vmatmul.mubr.f32.gmra.mxu0 %v1688
  %v1690 = vpop.f32.mrf.mxu0
  %v1691 = vadd.f32 %v1505, %v1690
  %v1692 = vpop.f32.mrf.mxu0
  %1693 = vmatprep.mubr.f32.mxu0 0.0
  %v1694 = vand.u32 %v799, 4294901760
  %1695 = vmatmul.mubr.f32.gmra.mxu0 %v1694
  %v1696 = vpop.f32.mrf.mxu0
  %v1697 = vadd.f32 %v1513, %v1696
  %v1698 = vpop.f32.mrf.mxu0
  %1699 = vmatprep.mubr.f32.mxu0 0.0
  %v1700 = vand.u32 %v802, 4294901760
  %1701 = vmatmul.mubr.f32.gmra.mxu0 %v1700
  %v1702 = vpop.f32.mrf.mxu0
  %v1703 = vadd.f32 %v1521, %v1702
  %v1704 = vpop.f32.mrf.mxu0
  %1705 = vmatprep.mubr.f32.mxu0 0.0
  %v1706 = vand.u32 %v805, 4294901760
  %1707 = vmatmul.mubr.f32.gmra.mxu0 %v1706
  %v1708 = vpop.f32.mrf.mxu0
  %v1709 = vadd.f32 %v1529, %v1708
  %v1710 = vpop.f32.mrf.mxu0
  %1711 = vmatprep.mubr.f32.mxu0 0.0
  %v1712 = vand.u32 %v808, 4294901760
  %1713 = vmatmul.mubr.f32.gmra.mxu0 %v1712
  %v1714 = vpop.f32.mrf.mxu0
  %v1715 = vadd.f32 %v1537, %v1714
  %v1716 = vpop.f32.mrf.mxu0
  %1717 = vmatprep.mubr.f32.mxu0 0.0
  %v1718 = vand.u32 %v811, 4294901760
  %1719 = vmatmul.mubr.f32.gmra.mxu0 %v1718
  %v1720 = vpop.f32.mrf.mxu0
  %v1721 = vadd.f32 %v1545, %v1720
  %v1722 = vpop.f32.mrf.mxu0
  %1723 = vmatprep.mubr.f32.mxu0 0.0
  %v1724 = vand.u32 %v814, 4294901760
  %1725 = vmatmul.mubr.f32.gmra.mxu0 %v1724
  %v1726 = vpop.f32.mrf.mxu0
  %v1727 = vadd.f32 %v1553, %v1726
  %v1728 = vpop.f32.mrf.mxu0
  %1729 = vmatprep.mubr.f32.mxu0 0.0
  %v1730 = vand.u32 %v817, 4294901760
  %1731 = vmatmul.mubr.f32.gmra.mxu0 %v1730
  %v1732 = vpop.f32.mrf.mxu0
  %v1733 = vadd.f32 %v1561, %v1732
  %v1734 = vpop.f32.mrf.mxu0
  %1735 = vmatprep.mubr.f32.mxu0 0.0
  %v1736 = vand.u32 %v820, 4294901760
  %1737 = vmatmul.mubr.f32.gmra.mxu0 %v1736
  %v1738 = vpop.f32.mrf.mxu0
  %v1739 = vadd.f32 %v1569, %v1738
  %v1740 = vpop.f32.mrf.mxu0
  %1741 = vmatprep.mubr.f32.mxu0 0.0
  %v1742 = vand.u32 %v823, 4294901760
  %1743 = vmatmul.mubr.f32.gmra.mxu0 %v1742
  %v1744 = vpop.f32.mrf.mxu0
  %v1745 = vadd.f32 %v1577, %v1744
  %v1746 = vpop.f32.mrf.mxu0
  %1747 = vmatprep.mubr.f32.mxu0 0.0
  %v1748 = vand.u32 %v826, 4294901760
  %1749 = vmatmul.mubr.f32.gmra.mxu0 %v1748
  %v1750 = vpop.f32.mrf.mxu0
  %v1751 = vadd.f32 %v1585, %v1750
  %v1752 = vpop.f32.mrf.mxu0
  %1753 = vmatprep.mubr.f32.mxu0 0.0
  %v1754 = vand.u32 %v829, 4294901760
  %1755 = vmatmul.mubr.f32.gmra.mxu0 %v1754
  %v1756 = vpop.f32.mrf.mxu0
  %v1757 = vadd.f32 %v1593, %v1756
  %v1758 = vpop.f32.mrf.mxu0
  %1759 = vdwg.mxu0
  %1760 = vmatprep.subr.mxu0 0.0
  %1761 = vmatpush1.msra.mxu0 0.0
  %1762 = vmatprep.subr.mxu0 0.0
  %1763 = vmatpush1.msra.mxu0 0.0
  %1764 = vmatprep.subr.mxu0 0.0
  %1765 = vmatpush1.msra.mxu0 0.0
  %1766 = vmatprep.subr.mxu0 0.0
  %1767 = vmatpush1.msra.mxu0 0.0
  %1768 = vmatprep.subr.mxu0 0.0
  %1769 = vmatpush1.msra.mxu0 0.0
  %1770 = vmatprep.subr.mxu0 0.0
  %1771 = vmatpush1.msra.mxu0 0.0
  %1772 = vmatprep.subr.mxu0 0.0
  %1773 = vmatpush1.msra.mxu0 0.0
  %1774 = vmatprep.subr.mxu0 0.0
  %1775 = vmatpush1.msra.mxu0 0.0
  %1776 = vmatprep.subr.mxu0 0.0
  %1777 = vmatpush1.msra.mxu0 0.0
  %1778 = vmatprep.subr.mxu0 0.0
  %1779 = vmatpush1.msra.mxu0 0.0
  %1780 = vmatprep.subr.mxu0 0.0
  %1781 = vmatpush1.msra.mxu0 0.0
  %1782 = vmatprep.subr.mxu0 0.0
  %1783 = vmatpush1.msra.mxu0 0.0
  %1784 = vmatprep.subr.mxu0 0.0
  %1785 = vmatpush1.msra.mxu0 0.0
  %1786 = vmatprep.subr.mxu0 0.0
  %1787 = vmatpush1.msra.mxu0 0.0
  %1788 = vmatprep.subr.mxu0 0.0
  %1789 = vmatpush1.msra.mxu0 0.0
  %1790 = vmatprep.subr.mxu0 0.0
  %v1791 = vand.u32 %v701, 4294901760
  %1792 = vmatpush1.msra.mxu0 %v1791
  %1793 = vmatprep.subr.mxu0 0.0
  %1794 = vmatpush2.msra.mxu0 0.0
  %1795 = vmatprep.subr.mxu0 0.0
  %1796 = vmatpush2.msra.mxu0 0.0
  %1797 = vmatprep.subr.mxu0 0.0
  %1798 = vmatpush2.msra.mxu0 0.0
  %1799 = vmatprep.subr.mxu0 0.0
  %1800 = vmatpush2.msra.mxu0 0.0
  %1801 = vmatprep.subr.mxu0 0.0
  %1802 = vmatpush2.msra.mxu0 0.0
  %1803 = vmatprep.subr.mxu0 0.0
  %1804 = vmatpush2.msra.mxu0 0.0
  %1805 = vmatprep.subr.mxu0 0.0
  %1806 = vmatpush2.msra.mxu0 0.0
  %1807 = vmatprep.subr.mxu0 0.0
  %1808 = vmatpush2.msra.mxu0 0.0
  %1809 = vmatprep.subr.mxu0 0.0
  %1810 = vmatpush2.msra.mxu0 0.0
  %1811 = vmatprep.subr.mxu0 0.0
  %1812 = vmatpush2.msra.mxu0 0.0
  %1813 = vmatprep.subr.mxu0 0.0
  %1814 = vmatpush2.msra.mxu0 0.0
  %1815 = vmatprep.subr.mxu0 0.0
  %1816 = vmatpush2.msra.mxu0 0.0
  %1817 = vmatprep.subr.mxu0 0.0
  %1818 = vmatpush2.msra.mxu0 0.0
  %1819 = vmatprep.subr.mxu0 0.0
  %1820 = vmatpush2.msra.mxu0 0.0
  %1821 = vmatprep.subr.mxu0 0.0
  %1822 = vmatpush2.msra.mxu0 0.0
  %1823 = vmatprep.subr.mxu0 0.0
  %1824 = vmatpush2.msra.mxu0 0.0
  %1825 = vmatprep.mubr.f32.mxu0 0.0
  %v1826 = vand.u32 %v784, 4294901760
  %1827 = vmatmul.mubr.f32.gmra.mxu0 %v1826
  %v1828 = vpop.f32.mrf.mxu0
  %v1829 = vadd.f32 %v1667, %v1828
  %v1830 = vpop.f32.mrf.mxu0
  %1831 = vmatprep.mubr.f32.mxu0 0.0
  %v1832 = vand.u32 %v787, 4294901760
  %1833 = vmatmul.mubr.f32.gmra.mxu0 %v1832
  %v1834 = vpop.f32.mrf.mxu0
  %v1835 = vadd.f32 %v1673, %v1834
  %v1836 = vpop.f32.mrf.mxu0
  %1837 = vmatprep.mubr.f32.mxu0 0.0
  %v1838 = vand.u32 %v790, 4294901760
  %1839 = vmatmul.mubr.f32.gmra.mxu0 %v1838
  %v1840 = vpop.f32.mrf.mxu0
  %v1841 = vadd.f32 %v1679, %v1840
  %v1842 = vpop.f32.mrf.mxu0
  %1843 = vmatprep.mubr.f32.mxu0 0.0
  %v1844 = vand.u32 %v793, 4294901760
  %1845 = vmatmul.mubr.f32.gmra.mxu0 %v1844
  %v1846 = vpop.f32.mrf.mxu0
  %v1847 = vadd.f32 %v1685, %v1846
  %v1848 = vpop.f32.mrf.mxu0
  %1849 = vmatprep.mubr.f32.mxu0 0.0
  %v1850 = vand.u32 %v796, 4294901760
  %1851 = vmatmul.mubr.f32.gmra.mxu0 %v1850
  %v1852 = vpop.f32.mrf.mxu0
  %v1853 = vadd.f32 %v1691, %v1852
  %v1854 = vpop.f32.mrf.mxu0
  %1855 = vmatprep.mubr.f32.mxu0 0.0
  %v1856 = vand.u32 %v799, 4294901760
  %1857 = vmatmul.mubr.f32.gmra.mxu0 %v1856
  %v1858 = vpop.f32.mrf.mxu0
  %v1859 = vadd.f32 %v1697, %v1858
  %v1860 = vpop.f32.mrf.mxu0
  %1861 = vmatprep.mubr.f32.mxu0 0.0
  %v1862 = vand.u32 %v802, 4294901760
  %1863 = vmatmul.mubr.f32.gmra.mxu0 %v1862
  %v1864 = vpop.f32.mrf.mxu0
  %v1865 = vadd.f32 %v1703, %v1864
  %v1866 = vpop.f32.mrf.mxu0
  %1867 = vmatprep.mubr.f32.mxu0 0.0
  %v1868 = vand.u32 %v805, 4294901760
  %1869 = vmatmul.mubr.f32.gmra.mxu0 %v1868
  %v1870 = vpop.f32.mrf.mxu0
  %v1871 = vadd.f32 %v1709, %v1870
  %v1872 = vpop.f32.mrf.mxu0
  %1873 = vmatprep.mubr.f32.mxu0 0.0
  %v1874 = vand.u32 %v808, 4294901760
  %1875 = vmatmul.mubr.f32.gmra.mxu0 %v1874
  %v1876 = vpop.f32.mrf.mxu0
  %v1877 = vadd.f32 %v1715, %v1876
  %v1878 = vpop.f32.mrf.mxu0
  %1879 = vmatprep.mubr.f32.mxu0 0.0
  %v1880 = vand.u32 %v811, 4294901760
  %1881 = vmatmul.mubr.f32.gmra.mxu0 %v1880
  %v1882 = vpop.f32.mrf.mxu0
  %v1883 = vadd.f32 %v1721, %v1882
  %v1884 = vpop.f32.mrf.mxu0
  %1885 = vmatprep.mubr.f32.mxu0 0.0
  %v1886 = vand.u32 %v814, 4294901760
  %1887 = vmatmul.mubr.f32.gmra.mxu0 %v1886
  %v1888 = vpop.f32.mrf.mxu0
  %v1889 = vadd.f32 %v1727, %v1888
  %v1890 = vpop.f32.mrf.mxu0
  %1891 = vmatprep.mubr.f32.mxu0 0.0
  %v1892 = vand.u32 %v817, 4294901760
  %1893 = vmatmul.mubr.f32.gmra.mxu0 %v1892
  %v1894 = vpop.f32.mrf.mxu0
  %v1895 = vadd.f32 %v1733, %v1894
  %v1896 = vpop.f32.mrf.mxu0
  %1897 = vmatprep.mubr.f32.mxu0 0.0
  %v1898 = vand.u32 %v820, 4294901760
  %1899 = vmatmul.mubr.f32.gmra.mxu0 %v1898
  %v1900 = vpop.f32.mrf.mxu0
  %v1901 = vadd.f32 %v1739, %v1900
  %v1902 = vpop.f32.mrf.mxu0
  %1903 = vmatprep.mubr.f32.mxu0 0.0
  %v1904 = vand.u32 %v823, 4294901760
  %1905 = vmatmul.mubr.f32.gmra.mxu0 %v1904
  %v1906 = vpop.f32.mrf.mxu0
  %v1907 = vadd.f32 %v1745, %v1906
  %v1908 = vpop.f32.mrf.mxu0
  %1909 = vmatprep.mubr.f32.mxu0 0.0
  %v1910 = vand.u32 %v826, 4294901760
  %1911 = vmatmul.mubr.f32.gmra.mxu0 %v1910
  %v1912 = vpop.f32.mrf.mxu0
  %v1913 = vadd.f32 %v1751, %v1912
  %v1914 = vpop.f32.mrf.mxu0
  %1915 = vmatprep.mubr.f32.mxu0 0.0
  %v1916 = vand.u32 %v829, 4294901760
  %1917 = vmatmul.mubr.f32.gmra.mxu0 %v1916
  %v1918 = vpop.f32.mrf.mxu0
  %v1919 = vadd.f32 %v1757, %v1918
  %v1920 = vpop.f32.mrf.mxu0
  %1921 = vdwg.mxu0
  %v1922 = vmax.f32 %v1829, %v1853
  %v1923 = vmax.f32 %v1835, %v1859
  %v1924 = vmax.f32 %v1841, %v1865
  %v1925 = vmax.f32 %v1847, %v1871
  %v1926 = vmax.f32 %v1922, %v1877
  %v1927 = vmax.f32 %v1923, %v1883
  %v1928 = vmax.f32 %v1924, %v1889
  %v1929 = vmax.f32 %v1925, %v1895
  %v1930 = vmax.f32 %v1926, %v1901
  %v1931 = vmax.f32 %v1927, %v1907
  %v1932 = vmax.f32 %v1928, %v1913
  %v1933 = vmax.f32 %v1929, %v1919
  %v1934 = vmax.f32 %v1930, %v1931
  %v1935 = vmax.f32 %v1932, %v1933
  %v1936 = vmax.f32 %v1934, %v1935
  %v1937 = vrot.slane %v1936, 4
  %v1938 = vmax.f32 %v1936, %v1937
  %v1939 = vrot.slane %v1938, 2
  %v1940 = vmax.f32 %v1938, %v1939
  %v1941 = vrot.slane %v1940, 1
  %v1942 = vmax.f32 %v1940, %v1941
  %v1943 = vsub.f32 %v1829, %v1942
  %v1944 = vsub.f32 %v1835, %v1942
  %v1945 = vsub.f32 %v1841, %v1942
  %v1946 = vsub.f32 %v1847, %v1942
  %v1947 = vsub.f32 %v1853, %v1942
  %v1948 = vsub.f32 %v1859, %v1942
  %v1949 = vsub.f32 %v1865, %v1942
  %v1950 = vsub.f32 %v1871, %v1942
  %v1951 = vsub.f32 %v1877, %v1942
  %v1952 = vsub.f32 %v1883, %v1942
  %v1953 = vsub.f32 %v1889, %v1942
  %v1954 = vsub.f32 %v1895, %v1942
  %v1955 = vsub.f32 %v1901, %v1942
  %v1956 = vsub.f32 %v1907, %v1942
  %v1957 = vsub.f32 %v1913, %v1942
  %v1958 = vsub.f32 %v1919, %v1942
  %v1959 = vmul.f32 %v1943, 1.442695
  %v1960 = vpow.pop %v1959
  %v1961 = vmul.f32 %v1944, 1.442695
  %v1962 = vpow.pop %v1961
  %v1963 = vmul.f32 %v1945, 1.442695
  %v1964 = vpow.pop %v1963
  %v1965 = vmul.f32 %v1946, 1.442695
  %v1966 = vpow.pop %v1965
  %v1967 = vmul.f32 %v1947, 1.442695
  %v1968 = vpow.pop %v1967
  %v1969 = vmul.f32 %v1948, 1.442695
  %v1970 = vpow.pop %v1969
  %v1971 = vmul.f32 %v1949, 1.442695
  %v1972 = vpow.pop %v1971
  %v1973 = vmul.f32 %v1950, 1.442695
  %v1974 = vpow.pop %v1973
  %v1975 = vmul.f32 %v1951, 1.442695
  %v1976 = vpow.pop %v1975
  %v1977 = vmul.f32 %v1952, 1.442695
  %v1978 = vpow.pop %v1977
  %v1979 = vmul.f32 %v1953, 1.442695
  %v1980 = vpow.pop %v1979
  %v1981 = vmul.f32 %v1954, 1.442695
  %v1982 = vpow.pop %v1981
  %v1983 = vmul.f32 %v1955, 1.442695
  %v1984 = vpow.pop %v1983
  %v1985 = vmul.f32 %v1956, 1.442695
  %v1986 = vpow.pop %v1985
  %v1987 = vmul.f32 %v1957, 1.442695
  %v1988 = vpow.pop %v1987
  %v1989 = vmul.f32 %v1958, 1.442695
  %v1990 = vpow.pop %v1989
  %v1991 = vadd.f32 %v1960, %v1962
  %v1992 = vadd.f32 %v1991, %v1964
  %v1993 = vadd.f32 %v1992, %v1966
  %v1994 = vadd.f32 %v1993, %v1968
  %v1995 = vadd.f32 %v1994, %v1970
  %v1996 = vadd.f32 %v1995, %v1972
  %v1997 = vadd.f32 %v1996, %v1974
  %v1998 = vadd.f32 %v1997, %v1976
  %v1999 = vadd.f32 %v1998, %v1978
  %v2000 = vadd.f32 %v1999, %v1980
  %v2001 = vadd.f32 %v2000, %v1982
  %v2002 = vadd.f32 %v2001, %v1984
  %v2003 = vadd.f32 %v2002, %v1986
  %v2004 = vadd.f32 %v2003, %v1988
  %v2005 = vadd.f32 %v2004, %v1990
  %v2006 = vrot.slane %v2005, 4
  %v2007 = vadd.f32 %v2005, %v2006
  %v2008 = vrot.slane %v2007, 2
  %v2009 = vadd.f32 %v2007, %v2008
  %v2010 = vrot.slane %v2009, 1
  %v2011 = vadd.f32 %v2009, %v2010
  %2012 = vmatprep.subr.mxu0 0.0
  %v2013 = vand.u32 %v1990, 4294901760
  %2014 = vmatpush1.msra.mxu0 %v2013
  %2015 = vmatprep.subr.mxu0 0.0
  %v2016 = vand.u32 %v1988, 4294901760
  %2017 = vmatpush1.msra.mxu0 %v2016
  %2018 = vmatprep.subr.mxu0 0.0
  %v2019 = vand.u32 %v1986, 4294901760
  %2020 = vmatpush1.msra.mxu0 %v2019
  %2021 = vmatprep.subr.mxu0 0.0
  %v2022 = vand.u32 %v1984, 4294901760
  %2023 = vmatpush1.msra.mxu0 %v2022
  %2024 = vmatprep.subr.mxu0 0.0
  %v2025 = vand.u32 %v1982, 4294901760
  %2026 = vmatpush1.msra.mxu0 %v2025
  %2027 = vmatprep.subr.mxu0 0.0
  %v2028 = vand.u32 %v1980, 4294901760
  %2029 = vmatpush1.msra.mxu0 %v2028
  %2030 = vmatprep.subr.mxu0 0.0
  %v2031 = vand.u32 %v1978, 4294901760
  %2032 = vmatpush1.msra.mxu0 %v2031
  %2033 = vmatprep.subr.mxu0 0.0
  %v2034 = vand.u32 %v1976, 4294901760
  %2035 = vmatpush1.msra.mxu0 %v2034
  %2036 = vmatprep.subr.mxu0 0.0
  %v2037 = vand.u32 %v1974, 4294901760
  %2038 = vmatpush1.msra.mxu0 %v2037
  %2039 = vmatprep.subr.mxu0 0.0
  %v2040 = vand.u32 %v1972, 4294901760
  %2041 = vmatpush1.msra.mxu0 %v2040
  %2042 = vmatprep.subr.mxu0 0.0
  %v2043 = vand.u32 %v1970, 4294901760
  %2044 = vmatpush1.msra.mxu0 %v2043
  %2045 = vmatprep.subr.mxu0 0.0
  %v2046 = vand.u32 %v1968, 4294901760
  %2047 = vmatpush1.msra.mxu0 %v2046
  %2048 = vmatprep.subr.mxu0 0.0
  %v2049 = vand.u32 %v1966, 4294901760
  %2050 = vmatpush1.msra.mxu0 %v2049
  %2051 = vmatprep.subr.mxu0 0.0
  %v2052 = vand.u32 %v1964, 4294901760
  %2053 = vmatpush1.msra.mxu0 %v2052
  %2054 = vmatprep.subr.mxu0 0.0
  %v2055 = vand.u32 %v1962, 4294901760
  %2056 = vmatpush1.msra.mxu0 %v2055
  %2057 = vmatprep.subr.mxu0 0.0
  %v2058 = vand.u32 %v1960, 4294901760
  %2059 = vmatpush1.msra.mxu0 %v2058
  %2060 = vmatprep.subr.mxu0 0.0
  %2061 = vmatpush2.msra.mxu0 0.0
  %2062 = vmatprep.subr.mxu0 0.0
  %2063 = vmatpush2.msra.mxu0 0.0
  %2064 = vmatprep.subr.mxu0 0.0
  %2065 = vmatpush2.msra.mxu0 0.0
  %2066 = vmatprep.subr.mxu0 0.0
  %2067 = vmatpush2.msra.mxu0 0.0
  %2068 = vmatprep.subr.mxu0 0.0
  %2069 = vmatpush2.msra.mxu0 0.0
  %2070 = vmatprep.subr.mxu0 0.0
  %2071 = vmatpush2.msra.mxu0 0.0
  %2072 = vmatprep.subr.mxu0 0.0
  %2073 = vmatpush2.msra.mxu0 0.0
  %2074 = vmatprep.subr.mxu0 0.0
  %2075 = vmatpush2.msra.mxu0 0.0
  %2076 = vmatprep.subr.mxu0 0.0
  %2077 = vmatpush2.msra.mxu0 0.0
  %2078 = vmatprep.subr.mxu0 0.0
  %2079 = vmatpush2.msra.mxu0 0.0
  %2080 = vmatprep.subr.mxu0 0.0
  %2081 = vmatpush2.msra.mxu0 0.0
  %2082 = vmatprep.subr.mxu0 0.0
  %2083 = vmatpush2.msra.mxu0 0.0
  %2084 = vmatprep.subr.mxu0 0.0
  %2085 = vmatpush2.msra.mxu0 0.0
  %2086 = vmatprep.subr.mxu0 0.0
  %2087 = vmatpush2.msra.mxu0 0.0
  %2088 = vmatprep.subr.mxu0 0.0
  %2089 = vmatpush2.msra.mxu0 0.0
  %2090 = vmatprep.subr.mxu0 0.0
  %2091 = vmatpush2.msra.mxu0 0.0
  %2092 = vmatprep.mubr.f32.mxu0 0.0
  %v2093 = vand.u32 %v725, 4294901760
  %v2094 = vsub.f32 %v725, %v2093
  %v2095 = vand.u32 %v2094, 4294901760
  %v2096 = vsub.f32 %v2094, %v2095
  %v2097 = vand.u32 %v2096, 4294901760
  %2098 = vmatmul.mubr.f32.gmra.mxu0 %v2097
  %v2099 = vpop.f32.mrf.mxu0
  %v2100 = vadd.f32 0.0, %v2099
  %v2101 = vpop.f32.mrf.mxu0
  %2102 = vdwg.mxu0
  %2103 = vmatprep.subr.mxu0 0.0
  %v2104 = vand.u32 %v1990, 4294901760
  %v2105 = vsub.f32 %v1990, %v2104
  %v2106 = vand.u32 %v2105, 4294901760
  %v2107 = vsub.f32 %v2105, %v2106
  %v2108 = vand.u32 %v2107, 4294901760
  %2109 = vmatpush1.msra.mxu0 %v2108
  %2110 = vmatprep.subr.mxu0 0.0
  %v2111 = vand.u32 %v1988, 4294901760
  %v2112 = vsub.f32 %v1988, %v2111
  %v2113 = vand.u32 %v2112, 4294901760
  %v2114 = vsub.f32 %v2112, %v2113
  %v2115 = vand.u32 %v2114, 4294901760
  %2116 = vmatpush1.msra.mxu0 %v2115
  %2117 = vmatprep.subr.mxu0 0.0
  %v2118 = vand.u32 %v1986, 4294901760
  %v2119 = vsub.f32 %v1986, %v2118
  %v2120 = vand.u32 %v2119, 4294901760
  %v2121 = vsub.f32 %v2119, %v2120
  %v2122 = vand.u32 %v2121, 4294901760
  %2123 = vmatpush1.msra.mxu0 %v2122
  %2124 = vmatprep.subr.mxu0 0.0
  %v2125 = vand.u32 %v1984, 4294901760
  %v2126 = vsub.f32 %v1984, %v2125
  %v2127 = vand.u32 %v2126, 4294901760
  %v2128 = vsub.f32 %v2126, %v2127
  %v2129 = vand.u32 %v2128, 4294901760
  %2130 = vmatpush1.msra.mxu0 %v2129
  %2131 = vmatprep.subr.mxu0 0.0
  %v2132 = vand.u32 %v1982, 4294901760
  %v2133 = vsub.f32 %v1982, %v2132
  %v2134 = vand.u32 %v2133, 4294901760
  %v2135 = vsub.f32 %v2133, %v2134
  %v2136 = vand.u32 %v2135, 4294901760
  %2137 = vmatpush1.msra.mxu0 %v2136
  %2138 = vmatprep.subr.mxu0 0.0
  %v2139 = vand.u32 %v1980, 4294901760
  %v2140 = vsub.f32 %v1980, %v2139
  %v2141 = vand.u32 %v2140, 4294901760
  %v2142 = vsub.f32 %v2140, %v2141
  %v2143 = vand.u32 %v2142, 4294901760
  %2144 = vmatpush1.msra.mxu0 %v2143
  %2145 = vmatprep.subr.mxu0 0.0
  %v2146 = vand.u32 %v1978, 4294901760
  %v2147 = vsub.f32 %v1978, %v2146
  %v2148 = vand.u32 %v2147, 4294901760
  %v2149 = vsub.f32 %v2147, %v2148
  %v2150 = vand.u32 %v2149, 4294901760
  %2151 = vmatpush1.msra.mxu0 %v2150
  %2152 = vmatprep.subr.mxu0 0.0
  %v2153 = vand.u32 %v1976, 4294901760
  %v2154 = vsub.f32 %v1976, %v2153
  %v2155 = vand.u32 %v2154, 4294901760
  %v2156 = vsub.f32 %v2154, %v2155
  %v2157 = vand.u32 %v2156, 4294901760
  %2158 = vmatpush1.msra.mxu0 %v2157
  %2159 = vmatprep.subr.mxu0 0.0
  %v2160 = vand.u32 %v1974, 4294901760
  %v2161 = vsub.f32 %v1974, %v2160
  %v2162 = vand.u32 %v2161, 4294901760
  %v2163 = vsub.f32 %v2161, %v2162
  %v2164 = vand.u32 %v2163, 4294901760
  %2165 = vmatpush1.msra.mxu0 %v2164
  %2166 = vmatprep.subr.mxu0 0.0
  %v2167 = vand.u32 %v1972, 4294901760
  %v2168 = vsub.f32 %v1972, %v2167
  %v2169 = vand.u32 %v2168, 4294901760
  %v2170 = vsub.f32 %v2168, %v2169
  %v2171 = vand.u32 %v2170, 4294901760
  %2172 = vmatpush1.msra.mxu0 %v2171
  %2173 = vmatprep.subr.mxu0 0.0
  %v2174 = vand.u32 %v1970, 4294901760
  %v2175 = vsub.f32 %v1970, %v2174
  %v2176 = vand.u32 %v2175, 4294901760
  %v2177 = vsub.f32 %v2175, %v2176
  %v2178 = vand.u32 %v2177, 4294901760
  %2179 = vmatpush1.msra.mxu0 %v2178
  %2180 = vmatprep.subr.mxu0 0.0
  %v2181 = vand.u32 %v1968, 4294901760
  %v2182 = vsub.f32 %v1968, %v2181
  %v2183 = vand.u32 %v2182, 4294901760
  %v2184 = vsub.f32 %v2182, %v2183
  %v2185 = vand.u32 %v2184, 4294901760
  %2186 = vmatpush1.msra.mxu0 %v2185
  %2187 = vmatprep.subr.mxu0 0.0
  %v2188 = vand.u32 %v1966, 4294901760
  %v2189 = vsub.f32 %v1966, %v2188
  %v2190 = vand.u32 %v2189, 4294901760
  %v2191 = vsub.f32 %v2189, %v2190
  %v2192 = vand.u32 %v2191, 4294901760
  %2193 = vmatpush1.msra.mxu0 %v2192
  %2194 = vmatprep.subr.mxu0 0.0
  %v2195 = vand.u32 %v1964, 4294901760
  %v2196 = vsub.f32 %v1964, %v2195
  %v2197 = vand.u32 %v2196, 4294901760
  %v2198 = vsub.f32 %v2196, %v2197
  %v2199 = vand.u32 %v2198, 4294901760
  %2200 = vmatpush1.msra.mxu0 %v2199
  %2201 = vmatprep.subr.mxu0 0.0
  %v2202 = vand.u32 %v1962, 4294901760
  %v2203 = vsub.f32 %v1962, %v2202
  %v2204 = vand.u32 %v2203, 4294901760
  %v2205 = vsub.f32 %v2203, %v2204
  %v2206 = vand.u32 %v2205, 4294901760
  %2207 = vmatpush1.msra.mxu0 %v2206
  %2208 = vmatprep.subr.mxu0 0.0
  %v2209 = vand.u32 %v1960, 4294901760
  %v2210 = vsub.f32 %v1960, %v2209
  %v2211 = vand.u32 %v2210, 4294901760
  %v2212 = vsub.f32 %v2210, %v2211
  %v2213 = vand.u32 %v2212, 4294901760
  %2214 = vmatpush1.msra.mxu0 %v2213
  %2215 = vmatprep.subr.mxu0 0.0
  %2216 = vmatpush2.msra.mxu0 0.0
  %2217 = vmatprep.subr.mxu0 0.0
  %2218 = vmatpush2.msra.mxu0 0.0
  %2219 = vmatprep.subr.mxu0 0.0
  %2220 = vmatpush2.msra.mxu0 0.0
  %2221 = vmatprep.subr.mxu0 0.0
  %2222 = vmatpush2.msra.mxu0 0.0
  %2223 = vmatprep.subr.mxu0 0.0
  %2224 = vmatpush2.msra.mxu0 0.0
  %2225 = vmatprep.subr.mxu0 0.0
  %2226 = vmatpush2.msra.mxu0 0.0
  %2227 = vmatprep.subr.mxu0 0.0
  %2228 = vmatpush2.msra.mxu0 0.0
  %2229 = vmatprep.subr.mxu0 0.0
  %2230 = vmatpush2.msra.mxu0 0.0
  %2231 = vmatprep.subr.mxu0 0.0
  %2232 = vmatpush2.msra.mxu0 0.0
  %2233 = vmatprep.subr.mxu0 0.0
  %2234 = vmatpush2.msra.mxu0 0.0
  %2235 = vmatprep.subr.mxu0 0.0
  %2236 = vmatpush2.msra.mxu0 0.0
  %2237 = vmatprep.subr.mxu0 0.0
  %2238 = vmatpush2.msra.mxu0 0.0
  %2239 = vmatprep.subr.mxu0 0.0
  %2240 = vmatpush2.msra.mxu0 0.0
  %2241 = vmatprep.subr.mxu0 0.0
  %2242 = vmatpush2.msra.mxu0 0.0
  %2243 = vmatprep.subr.mxu0 0.0
  %2244 = vmatpush2.msra.mxu0 0.0
  %2245 = vmatprep.subr.mxu0 0.0
  %2246 = vmatpush2.msra.mxu0 0.0
  %2247 = vmatprep.mubr.f32.mxu0 0.0
  %v2248 = vand.u32 %v725, 4294901760
  %2249 = vmatmul.mubr.f32.gmra.mxu0 %v2248
  %v2250 = vpop.f32.mrf.mxu0
  %v2251 = vadd.f32 %v2100, %v2250
  %v2252 = vpop.f32.mrf.mxu0
  %2253 = vdwg.mxu0
  %2254 = vmatprep.subr.mxu0 0.0
  %v2255 = vand.u32 %v1990, 4294901760
  %v2256 = vsub.f32 %v1990, %v2255
  %2257 = vmatpush1.msra.mxu0 %v2256
  %2258 = vmatprep.subr.mxu0 0.0
  %v2259 = vand.u32 %v1988, 4294901760
  %v2260 = vsub.f32 %v1988, %v2259
  %2261 = vmatpush1.msra.mxu0 %v2260
  %2262 = vmatprep.subr.mxu0 0.0
  %v2263 = vand.u32 %v1986, 4294901760
  %v2264 = vsub.f32 %v1986, %v2263
  %2265 = vmatpush1.msra.mxu0 %v2264
  %2266 = vmatprep.subr.mxu0 0.0
  %v2267 = vand.u32 %v1984, 4294901760
  %v2268 = vsub.f32 %v1984, %v2267
  %2269 = vmatpush1.msra.mxu0 %v2268
  %2270 = vmatprep.subr.mxu0 0.0
  %v2271 = vand.u32 %v1982, 4294901760
  %v2272 = vsub.f32 %v1982, %v2271
  %2273 = vmatpush1.msra.mxu0 %v2272
  %2274 = vmatprep.subr.mxu0 0.0
  %v2275 = vand.u32 %v1980, 4294901760
  %v2276 = vsub.f32 %v1980, %v2275
  %2277 = vmatpush1.msra.mxu0 %v2276
  %2278 = vmatprep.subr.mxu0 0.0
  %v2279 = vand.u32 %v1978, 4294901760
  %v2280 = vsub.f32 %v1978, %v2279
  %2281 = vmatpush1.msra.mxu0 %v2280
  %2282 = vmatprep.subr.mxu0 0.0
  %v2283 = vand.u32 %v1976, 4294901760
  %v2284 = vsub.f32 %v1976, %v2283
  %2285 = vmatpush1.msra.mxu0 %v2284
  %2286 = vmatprep.subr.mxu0 0.0
  %v2287 = vand.u32 %v1974, 4294901760
  %v2288 = vsub.f32 %v1974, %v2287
  %2289 = vmatpush1.msra.mxu0 %v2288
  %2290 = vmatprep.subr.mxu0 0.0
  %v2291 = vand.u32 %v1972, 4294901760
  %v2292 = vsub.f32 %v1972, %v2291
  %2293 = vmatpush1.msra.mxu0 %v2292
  %2294 = vmatprep.subr.mxu0 0.0
  %v2295 = vand.u32 %v1970, 4294901760
  %v2296 = vsub.f32 %v1970, %v2295
  %2297 = vmatpush1.msra.mxu0 %v2296
  %2298 = vmatprep.subr.mxu0 0.0
  %v2299 = vand.u32 %v1968, 4294901760
  %v2300 = vsub.f32 %v1968, %v2299
  %2301 = vmatpush1.msra.mxu0 %v2300
  %2302 = vmatprep.subr.mxu0 0.0
  %v2303 = vand.u32 %v1966, 4294901760
  %v2304 = vsub.f32 %v1966, %v2303
  %2305 = vmatpush1.msra.mxu0 %v2304
  %2306 = vmatprep.subr.mxu0 0.0
  %v2307 = vand.u32 %v1964, 4294901760
  %v2308 = vsub.f32 %v1964, %v2307
  %2309 = vmatpush1.msra.mxu0 %v2308
  %2310 = vmatprep.subr.mxu0 0.0
  %v2311 = vand.u32 %v1962, 4294901760
  %v2312 = vsub.f32 %v1962, %v2311
  %2313 = vmatpush1.msra.mxu0 %v2312
  %2314 = vmatprep.subr.mxu0 0.0
  %v2315 = vand.u32 %v1960, 4294901760
  %v2316 = vsub.f32 %v1960, %v2315
  %2317 = vmatpush1.msra.mxu0 %v2316
  %2318 = vmatprep.subr.mxu0 0.0
  %2319 = vmatpush2.msra.mxu0 0.0
  %2320 = vmatprep.subr.mxu0 0.0
  %2321 = vmatpush2.msra.mxu0 0.0
  %2322 = vmatprep.subr.mxu0 0.0
  %2323 = vmatpush2.msra.mxu0 0.0
  %2324 = vmatprep.subr.mxu0 0.0
  %2325 = vmatpush2.msra.mxu0 0.0
  %2326 = vmatprep.subr.mxu0 0.0
  %2327 = vmatpush2.msra.mxu0 0.0
  %2328 = vmatprep.subr.mxu0 0.0
  %2329 = vmatpush2.msra.mxu0 0.0
  %2330 = vmatprep.subr.mxu0 0.0
  %2331 = vmatpush2.msra.mxu0 0.0
  %2332 = vmatprep.subr.mxu0 0.0
  %2333 = vmatpush2.msra.mxu0 0.0
  %2334 = vmatprep.subr.mxu0 0.0
  %2335 = vmatpush2.msra.mxu0 0.0
  %2336 = vmatprep.subr.mxu0 0.0
  %2337 = vmatpush2.msra.mxu0 0.0
  %2338 = vmatprep.subr.mxu0 0.0
  %2339 = vmatpush2.msra.mxu0 0.0
  %2340 = vmatprep.subr.mxu0 0.0
  %2341 = vmatpush2.msra.mxu0 0.0
  %2342 = vmatprep.subr.mxu0 0.0
  %2343 = vmatpush2.msra.mxu0 0.0
  %2344 = vmatprep.subr.mxu0 0.0
  %2345 = vmatpush2.msra.mxu0 0.0
  %2346 = vmatprep.subr.mxu0 0.0
  %2347 = vmatpush2.msra.mxu0 0.0
  %2348 = vmatprep.subr.mxu0 0.0
  %2349 = vmatpush2.msra.mxu0 0.0
  %2350 = vmatprep.mubr.f32.mxu0 0.0
  %v2351 = vand.u32 %v725, 4294901760
  %v2352 = vsub.f32 %v725, %v2351
  %2353 = vmatmul.mubr.f32.gmra.mxu0 %v2352
  %v2354 = vpop.f32.mrf.mxu0
  %v2355 = vadd.f32 %v2251, %v2354
  %v2356 = vpop.f32.mrf.mxu0
  %2357 = vdwg.mxu0
  %2358 = vmatprep.subr.mxu0 0.0
  %v2359 = vand.u32 %v1990, 4294901760
  %2360 = vmatpush1.msra.mxu0 %v2359
  %2361 = vmatprep.subr.mxu0 0.0
  %v2362 = vand.u32 %v1988, 4294901760
  %2363 = vmatpush1.msra.mxu0 %v2362
  %2364 = vmatprep.subr.mxu0 0.0
  %v2365 = vand.u32 %v1986, 4294901760
  %2366 = vmatpush1.msra.mxu0 %v2365
  %2367 = vmatprep.subr.mxu0 0.0
  %v2368 = vand.u32 %v1984, 4294901760
  %2369 = vmatpush1.msra.mxu0 %v2368
  %2370 = vmatprep.subr.mxu0 0.0
  %v2371 = vand.u32 %v1982, 4294901760
  %2372 = vmatpush1.msra.mxu0 %v2371
  %2373 = vmatprep.subr.mxu0 0.0
  %v2374 = vand.u32 %v1980, 4294901760
  %2375 = vmatpush1.msra.mxu0 %v2374
  %2376 = vmatprep.subr.mxu0 0.0
  %v2377 = vand.u32 %v1978, 4294901760
  %2378 = vmatpush1.msra.mxu0 %v2377
  %2379 = vmatprep.subr.mxu0 0.0
  %v2380 = vand.u32 %v1976, 4294901760
  %2381 = vmatpush1.msra.mxu0 %v2380
  %2382 = vmatprep.subr.mxu0 0.0
  %v2383 = vand.u32 %v1974, 4294901760
  %2384 = vmatpush1.msra.mxu0 %v2383
  %2385 = vmatprep.subr.mxu0 0.0
  %v2386 = vand.u32 %v1972, 4294901760
  %2387 = vmatpush1.msra.mxu0 %v2386
  %2388 = vmatprep.subr.mxu0 0.0
  %v2389 = vand.u32 %v1970, 4294901760
  %2390 = vmatpush1.msra.mxu0 %v2389
  %2391 = vmatprep.subr.mxu0 0.0
  %v2392 = vand.u32 %v1968, 4294901760
  %2393 = vmatpush1.msra.mxu0 %v2392
  %2394 = vmatprep.subr.mxu0 0.0
  %v2395 = vand.u32 %v1966, 4294901760
  %2396 = vmatpush1.msra.mxu0 %v2395
  %2397 = vmatprep.subr.mxu0 0.0
  %v2398 = vand.u32 %v1964, 4294901760
  %2399 = vmatpush1.msra.mxu0 %v2398
  %2400 = vmatprep.subr.mxu0 0.0
  %v2401 = vand.u32 %v1962, 4294901760
  %2402 = vmatpush1.msra.mxu0 %v2401
  %2403 = vmatprep.subr.mxu0 0.0
  %v2404 = vand.u32 %v1960, 4294901760
  %2405 = vmatpush1.msra.mxu0 %v2404
  %2406 = vmatprep.subr.mxu0 0.0
  %2407 = vmatpush2.msra.mxu0 0.0
  %2408 = vmatprep.subr.mxu0 0.0
  %2409 = vmatpush2.msra.mxu0 0.0
  %2410 = vmatprep.subr.mxu0 0.0
  %2411 = vmatpush2.msra.mxu0 0.0
  %2412 = vmatprep.subr.mxu0 0.0
  %2413 = vmatpush2.msra.mxu0 0.0
  %2414 = vmatprep.subr.mxu0 0.0
  %2415 = vmatpush2.msra.mxu0 0.0
  %2416 = vmatprep.subr.mxu0 0.0
  %2417 = vmatpush2.msra.mxu0 0.0
  %2418 = vmatprep.subr.mxu0 0.0
  %2419 = vmatpush2.msra.mxu0 0.0
  %2420 = vmatprep.subr.mxu0 0.0
  %2421 = vmatpush2.msra.mxu0 0.0
  %2422 = vmatprep.subr.mxu0 0.0
  %2423 = vmatpush2.msra.mxu0 0.0
  %2424 = vmatprep.subr.mxu0 0.0
  %2425 = vmatpush2.msra.mxu0 0.0
  %2426 = vmatprep.subr.mxu0 0.0
  %2427 = vmatpush2.msra.mxu0 0.0
  %2428 = vmatprep.subr.mxu0 0.0
  %2429 = vmatpush2.msra.mxu0 0.0
  %2430 = vmatprep.subr.mxu0 0.0
  %2431 = vmatpush2.msra.mxu0 0.0
  %2432 = vmatprep.subr.mxu0 0.0
  %2433 = vmatpush2.msra.mxu0 0.0
  %2434 = vmatprep.subr.mxu0 0.0
  %2435 = vmatpush2.msra.mxu0 0.0
  %2436 = vmatprep.subr.mxu0 0.0
  %2437 = vmatpush2.msra.mxu0 0.0
  %2438 = vmatprep.mubr.f32.mxu0 0.0
  %v2439 = vand.u32 %v725, 4294901760
  %v2440 = vsub.f32 %v725, %v2439
  %v2441 = vand.u32 %v2440, 4294901760
  %2442 = vmatmul.mubr.f32.gmra.mxu0 %v2441
  %v2443 = vpop.f32.mrf.mxu0
  %v2444 = vadd.f32 %v2355, %v2443
  %v2445 = vpop.f32.mrf.mxu0
  %2446 = vdwg.mxu0
  %2447 = vmatprep.subr.mxu0 0.0
  %v2448 = vand.u32 %v1990, 4294901760
  %v2449 = vsub.f32 %v1990, %v2448
  %v2450 = vand.u32 %v2449, 4294901760
  %2451 = vmatpush1.msra.mxu0 %v2450
  %2452 = vmatprep.subr.mxu0 0.0
  %v2453 = vand.u32 %v1988, 4294901760
  %v2454 = vsub.f32 %v1988, %v2453
  %v2455 = vand.u32 %v2454, 4294901760
  %2456 = vmatpush1.msra.mxu0 %v2455
  %2457 = vmatprep.subr.mxu0 0.0
  %v2458 = vand.u32 %v1986, 4294901760
  %v2459 = vsub.f32 %v1986, %v2458
  %v2460 = vand.u32 %v2459, 4294901760
  %2461 = vmatpush1.msra.mxu0 %v2460
  %2462 = vmatprep.subr.mxu0 0.0
  %v2463 = vand.u32 %v1984, 4294901760
  %v2464 = vsub.f32 %v1984, %v2463
  %v2465 = vand.u32 %v2464, 4294901760
  %2466 = vmatpush1.msra.mxu0 %v2465
  %2467 = vmatprep.subr.mxu0 0.0
  %v2468 = vand.u32 %v1982, 4294901760
  %v2469 = vsub.f32 %v1982, %v2468
  %v2470 = vand.u32 %v2469, 4294901760
  %2471 = vmatpush1.msra.mxu0 %v2470
  %2472 = vmatprep.subr.mxu0 0.0
  %v2473 = vand.u32 %v1980, 4294901760
  %v2474 = vsub.f32 %v1980, %v2473
  %v2475 = vand.u32 %v2474, 4294901760
  %2476 = vmatpush1.msra.mxu0 %v2475
  %2477 = vmatprep.subr.mxu0 0.0
  %v2478 = vand.u32 %v1978, 4294901760
  %v2479 = vsub.f32 %v1978, %v2478
  %v2480 = vand.u32 %v2479, 4294901760
  %2481 = vmatpush1.msra.mxu0 %v2480
  %2482 = vmatprep.subr.mxu0 0.0
  %v2483 = vand.u32 %v1976, 4294901760
  %v2484 = vsub.f32 %v1976, %v2483
  %v2485 = vand.u32 %v2484, 4294901760
  %2486 = vmatpush1.msra.mxu0 %v2485
  %2487 = vmatprep.subr.mxu0 0.0
  %v2488 = vand.u32 %v1974, 4294901760
  %v2489 = vsub.f32 %v1974, %v2488
  %v2490 = vand.u32 %v2489, 4294901760
  %2491 = vmatpush1.msra.mxu0 %v2490
  %2492 = vmatprep.subr.mxu0 0.0
  %v2493 = vand.u32 %v1972, 4294901760
  %v2494 = vsub.f32 %v1972, %v2493
  %v2495 = vand.u32 %v2494, 4294901760
  %2496 = vmatpush1.msra.mxu0 %v2495
  %2497 = vmatprep.subr.mxu0 0.0
  %v2498 = vand.u32 %v1970, 4294901760
  %v2499 = vsub.f32 %v1970, %v2498
  %v2500 = vand.u32 %v2499, 4294901760
  %2501 = vmatpush1.msra.mxu0 %v2500
  %2502 = vmatprep.subr.mxu0 0.0
  %v2503 = vand.u32 %v1968, 4294901760
  %v2504 = vsub.f32 %v1968, %v2503
  %v2505 = vand.u32 %v2504, 4294901760
  %2506 = vmatpush1.msra.mxu0 %v2505
  %2507 = vmatprep.subr.mxu0 0.0
  %v2508 = vand.u32 %v1966, 4294901760
  %v2509 = vsub.f32 %v1966, %v2508
  %v2510 = vand.u32 %v2509, 4294901760
  %2511 = vmatpush1.msra.mxu0 %v2510
  %2512 = vmatprep.subr.mxu0 0.0
  %v2513 = vand.u32 %v1964, 4294901760
  %v2514 = vsub.f32 %v1964, %v2513
  %v2515 = vand.u32 %v2514, 4294901760
  %2516 = vmatpush1.msra.mxu0 %v2515
  %2517 = vmatprep.subr.mxu0 0.0
  %v2518 = vand.u32 %v1962, 4294901760
  %v2519 = vsub.f32 %v1962, %v2518
  %v2520 = vand.u32 %v2519, 4294901760
  %2521 = vmatpush1.msra.mxu0 %v2520
  %2522 = vmatprep.subr.mxu0 0.0
  %v2523 = vand.u32 %v1960, 4294901760
  %v2524 = vsub.f32 %v1960, %v2523
  %v2525 = vand.u32 %v2524, 4294901760
  %2526 = vmatpush1.msra.mxu0 %v2525
  %2527 = vmatprep.subr.mxu0 0.0
  %2528 = vmatpush2.msra.mxu0 0.0
  %2529 = vmatprep.subr.mxu0 0.0
  %2530 = vmatpush2.msra.mxu0 0.0
  %2531 = vmatprep.subr.mxu0 0.0
  %2532 = vmatpush2.msra.mxu0 0.0
  %2533 = vmatprep.subr.mxu0 0.0
  %2534 = vmatpush2.msra.mxu0 0.0
  %2535 = vmatprep.subr.mxu0 0.0
  %2536 = vmatpush2.msra.mxu0 0.0
  %2537 = vmatprep.subr.mxu0 0.0
  %2538 = vmatpush2.msra.mxu0 0.0
  %2539 = vmatprep.subr.mxu0 0.0
  %2540 = vmatpush2.msra.mxu0 0.0
  %2541 = vmatprep.subr.mxu0 0.0
  %2542 = vmatpush2.msra.mxu0 0.0
  %2543 = vmatprep.subr.mxu0 0.0
  %2544 = vmatpush2.msra.mxu0 0.0
  %2545 = vmatprep.subr.mxu0 0.0
  %2546 = vmatpush2.msra.mxu0 0.0
  %2547 = vmatprep.subr.mxu0 0.0
  %2548 = vmatpush2.msra.mxu0 0.0
  %2549 = vmatprep.subr.mxu0 0.0
  %2550 = vmatpush2.msra.mxu0 0.0
  %2551 = vmatprep.subr.mxu0 0.0
  %2552 = vmatpush2.msra.mxu0 0.0
  %2553 = vmatprep.subr.mxu0 0.0
  %2554 = vmatpush2.msra.mxu0 0.0
  %2555 = vmatprep.subr.mxu0 0.0
  %2556 = vmatpush2.msra.mxu0 0.0
  %2557 = vmatprep.subr.mxu0 0.0
  %2558 = vmatpush2.msra.mxu0 0.0
  %2559 = vmatprep.mubr.f32.mxu0 0.0
  %v2560 = vand.u32 %v725, 4294901760
  %2561 = vmatmul.mubr.f32.gmra.mxu0 %v2560
  %v2562 = vpop.f32.mrf.mxu0
  %v2563 = vadd.f32 %v2444, %v2562
  %v2564 = vpop.f32.mrf.mxu0
  %2565 = vdwg.mxu0
  %2566 = vmatprep.subr.mxu0 0.0
  %v2567 = vand.u32 %v1990, 4294901760
  %2568 = vmatpush1.msra.mxu0 %v2567
  %2569 = vmatprep.subr.mxu0 0.0
  %v2570 = vand.u32 %v1988, 4294901760
  %2571 = vmatpush1.msra.mxu0 %v2570
  %2572 = vmatprep.subr.mxu0 0.0
  %v2573 = vand.u32 %v1986, 4294901760
  %2574 = vmatpush1.msra.mxu0 %v2573
  %2575 = vmatprep.subr.mxu0 0.0
  %v2576 = vand.u32 %v1984, 4294901760
  %2577 = vmatpush1.msra.mxu0 %v2576
  %2578 = vmatprep.subr.mxu0 0.0
  %v2579 = vand.u32 %v1982, 4294901760
  %2580 = vmatpush1.msra.mxu0 %v2579
  %2581 = vmatprep.subr.mxu0 0.0
  %v2582 = vand.u32 %v1980, 4294901760
  %2583 = vmatpush1.msra.mxu0 %v2582
  %2584 = vmatprep.subr.mxu0 0.0
  %v2585 = vand.u32 %v1978, 4294901760
  %2586 = vmatpush1.msra.mxu0 %v2585
  %2587 = vmatprep.subr.mxu0 0.0
  %v2588 = vand.u32 %v1976, 4294901760
  %2589 = vmatpush1.msra.mxu0 %v2588
  %2590 = vmatprep.subr.mxu0 0.0
  %v2591 = vand.u32 %v1974, 4294901760
  %2592 = vmatpush1.msra.mxu0 %v2591
  %2593 = vmatprep.subr.mxu0 0.0
  %v2594 = vand.u32 %v1972, 4294901760
  %2595 = vmatpush1.msra.mxu0 %v2594
  %2596 = vmatprep.subr.mxu0 0.0
  %v2597 = vand.u32 %v1970, 4294901760
  %2598 = vmatpush1.msra.mxu0 %v2597
  %2599 = vmatprep.subr.mxu0 0.0
  %v2600 = vand.u32 %v1968, 4294901760
  %2601 = vmatpush1.msra.mxu0 %v2600
  %2602 = vmatprep.subr.mxu0 0.0
  %v2603 = vand.u32 %v1966, 4294901760
  %2604 = vmatpush1.msra.mxu0 %v2603
  %2605 = vmatprep.subr.mxu0 0.0
  %v2606 = vand.u32 %v1964, 4294901760
  %2607 = vmatpush1.msra.mxu0 %v2606
  %2608 = vmatprep.subr.mxu0 0.0
  %v2609 = vand.u32 %v1962, 4294901760
  %2610 = vmatpush1.msra.mxu0 %v2609
  %2611 = vmatprep.subr.mxu0 0.0
  %v2612 = vand.u32 %v1960, 4294901760
  %2613 = vmatpush1.msra.mxu0 %v2612
  %2614 = vmatprep.subr.mxu0 0.0
  %2615 = vmatpush2.msra.mxu0 0.0
  %2616 = vmatprep.subr.mxu0 0.0
  %2617 = vmatpush2.msra.mxu0 0.0
  %2618 = vmatprep.subr.mxu0 0.0
  %2619 = vmatpush2.msra.mxu0 0.0
  %2620 = vmatprep.subr.mxu0 0.0
  %2621 = vmatpush2.msra.mxu0 0.0
  %2622 = vmatprep.subr.mxu0 0.0
  %2623 = vmatpush2.msra.mxu0 0.0
  %2624 = vmatprep.subr.mxu0 0.0
  %2625 = vmatpush2.msra.mxu0 0.0
  %2626 = vmatprep.subr.mxu0 0.0
  %2627 = vmatpush2.msra.mxu0 0.0
  %2628 = vmatprep.subr.mxu0 0.0
  %2629 = vmatpush2.msra.mxu0 0.0
  %2630 = vmatprep.subr.mxu0 0.0
  %2631 = vmatpush2.msra.mxu0 0.0
  %2632 = vmatprep.subr.mxu0 0.0
  %2633 = vmatpush2.msra.mxu0 0.0
  %2634 = vmatprep.subr.mxu0 0.0
  %2635 = vmatpush2.msra.mxu0 0.0
  %2636 = vmatprep.subr.mxu0 0.0
  %2637 = vmatpush2.msra.mxu0 0.0
  %2638 = vmatprep.subr.mxu0 0.0
  %2639 = vmatpush2.msra.mxu0 0.0
  %2640 = vmatprep.subr.mxu0 0.0
  %2641 = vmatpush2.msra.mxu0 0.0
  %2642 = vmatprep.subr.mxu0 0.0
  %2643 = vmatpush2.msra.mxu0 0.0
  %2644 = vmatprep.subr.mxu0 0.0
  %2645 = vmatpush2.msra.mxu0 0.0
  %2646 = vmatprep.mubr.f32.mxu0 0.0
  %v2647 = vand.u32 %v725, 4294901760
  %2648 = vmatmul.mubr.f32.gmra.mxu0 %v2647
  %v2649 = vpop.f32.mrf.mxu0
  %v2650 = vadd.f32 %v2563, %v2649
  %v2651 = vpop.f32.mrf.mxu0
  %2652 = vdwg.mxu0
  %v2653 = vrcp.pop %v2011
  %v2654 = vmul.f32 %v2650, %v2653
  %s2655 = scalar_lea.vmem %s2, 128
  %v2656 = vld [vmem:[%s2655] sm:$0xff]
  %v2657 = vld [vmem:[%s2655 + $0x8] sm:$0xff]
  %v2658 = vld [vmem:[%s2655 + $0x10] sm:$0xff]
  %v2659 = vld [vmem:[%s2655 + $0x18] sm:$0xff]
  %v2660 = vld [vmem:[%s2655 + $0x20] sm:$0xff]
  %v2661 = vld [vmem:[%s2655 + $0x28] sm:$0xff]
  %v2662 = vld [vmem:[%s2655 + $0x30] sm:$0xff]
  %v2663 = vld [vmem:[%s2655 + $0x38] sm:$0xff]
  %v2664 = vld [vmem:[%s2655 + $0x40] sm:$0xff]
  %v2665 = vld [vmem:[%s2655 + $0x48] sm:$0xff]
  %v2666 = vld [vmem:[%s2655 + $0x50] sm:$0xff]
  %v2667 = vld [vmem:[%s2655 + $0x58] sm:$0xff]
  %v2668 = vld [vmem:[%s2655 + $0x60] sm:$0xff]
  %v2669 = vld [vmem:[%s2655 + $0x68] sm:$0xff]
  %v2670 = vld [vmem:[%s2655 + $0x70] sm:$0xff]
  %v2671 = vld [vmem:[%s2655 + $0x78] sm:$0xff]
  %2672 = vxpose.xlu0.b32.start [1/16] %v719, 128
  %2673 = vxpose.xlu0.b32.cont [2/16] 0.0, 128
  %2674 = vxpose.xlu0.b32.cont [3/16] 0.0, 128
  %2675 = vxpose.xlu0.b32.cont [4/16] 0.0, 128
  %2676 = vxpose.xlu0.b32.cont [5/16] 0.0, 128
  %2677 = vxpose.xlu0.b32.cont [6/16] 0.0, 128
  %2678 = vxpose.xlu0.b32.cont [7/16] 0.0, 128
  %2679 = vxpose.xlu0.b32.cont [8/16] 0.0, 128
  %2680 = vxpose.xlu0.b32.cont [9/16] 0.0, 128
  %2681 = vxpose.xlu0.b32.cont [10/16] 0.0, 128
  %2682 = vxpose.xlu0.b32.cont [11/16] 0.0, 128
  %2683 = vxpose.xlu0.b32.cont [12/16] 0.0, 128
  %2684 = vxpose.xlu0.b32.cont [13/16] 0.0, 128
  %2685 = vxpose.xlu0.b32.cont [14/16] 0.0, 128
  %2686 = vxpose.xlu0.b32.cont [15/16] 0.0, 128
  %2687 = vxpose.xlu0.b32.end [16/16] 0.0, 128
  %v2688 = vpop.trf.xlu0
  %v2689 = vpop.trf.xlu0
  %v2690 = vpop.trf.xlu0
  %v2691 = vpop.trf.xlu0
  %v2692 = vpop.trf.xlu0
  %v2693 = vpop.trf.xlu0
  %v2694 = vpop.trf.xlu0
  %v2695 = vpop.trf.xlu0
  %v2696 = vpop.trf.xlu0
  %v2697 = vpop.trf.xlu0
  %v2698 = vpop.trf.xlu0
  %v2699 = vpop.trf.xlu0
  %v2700 = vpop.trf.xlu0
  %v2701 = vpop.trf.xlu0
  %v2702 = vpop.trf.xlu0
  %v2703 = vpop.trf.xlu0
  %v2705 = vsel %vm782, %v2688, 0
  %v2708 = vsel %vm782, %v2689, 0
  %v2711 = vsel %vm782, %v2690, 0
  %v2714 = vsel %vm782, %v2691, 0
  %v2717 = vsel %vm782, %v2692, 0
  %v2720 = vsel %vm782, %v2693, 0
  %v2723 = vsel %vm782, %v2694, 0
  %v2726 = vsel %vm782, %v2695, 0
  %v2729 = vsel %vm782, %v2696, 0
  %v2732 = vsel %vm782, %v2697, 0
  %v2735 = vsel %vm782, %v2698, 0
  %v2738 = vsel %vm782, %v2699, 0
  %v2741 = vsel %vm782, %v2700, 0
  %v2744 = vsel %vm782, %v2701, 0
  %v2747 = vsel %vm782, %v2702, 0
  %v2750 = vsel %vm782, %v2703, 0
  %2752 = vmatprep.subr.mxu0 0.0
  %2753 = vmatpush1.msra.mxu0 0.0
  %2754 = vmatprep.subr.mxu0 0.0
  %2755 = vmatpush1.msra.mxu0 0.0
  %2756 = vmatprep.subr.mxu0 0.0
  %2757 = vmatpush1.msra.mxu0 0.0
  %2758 = vmatprep.subr.mxu0 0.0
  %2759 = vmatpush1.msra.mxu0 0.0
  %2760 = vmatprep.subr.mxu0 0.0
  %2761 = vmatpush1.msra.mxu0 0.0
  %2762 = vmatprep.subr.mxu0 0.0
  %2763 = vmatpush1.msra.mxu0 0.0
  %2764 = vmatprep.subr.mxu0 0.0
  %2765 = vmatpush1.msra.mxu0 0.0
  %2766 = vmatprep.subr.mxu0 0.0
  %2767 = vmatpush1.msra.mxu0 0.0
  %2768 = vmatprep.subr.mxu0 0.0
  %2769 = vmatpush1.msra.mxu0 0.0
  %2770 = vmatprep.subr.mxu0 0.0
  %2771 = vmatpush1.msra.mxu0 0.0
  %2772 = vmatprep.subr.mxu0 0.0
  %2773 = vmatpush1.msra.mxu0 0.0
  %2774 = vmatprep.subr.mxu0 0.0
  %2775 = vmatpush1.msra.mxu0 0.0
  %2776 = vmatprep.subr.mxu0 0.0
  %2777 = vmatpush1.msra.mxu0 0.0
  %2778 = vmatprep.subr.mxu0 0.0
  %2779 = vmatpush1.msra.mxu0 0.0
  %2780 = vmatprep.subr.mxu0 0.0
  %2781 = vmatpush1.msra.mxu0 0.0
  %2782 = vmatprep.subr.mxu0 0.0
  %v2783 = vand.u32 %v707, 4294901760
  %2784 = vmatpush1.msra.mxu0 %v2783
  %2785 = vmatprep.subr.mxu0 0.0
  %2786 = vmatpush2.msra.mxu0 0.0
  %2787 = vmatprep.subr.mxu0 0.0
  %2788 = vmatpush2.msra.mxu0 0.0
  %2789 = vmatprep.subr.mxu0 0.0
  %2790 = vmatpush2.msra.mxu0 0.0
  %2791 = vmatprep.subr.mxu0 0.0
  %2792 = vmatpush2.msra.mxu0 0.0
  %2793 = vmatprep.subr.mxu0 0.0
  %2794 = vmatpush2.msra.mxu0 0.0
  %2795 = vmatprep.subr.mxu0 0.0
  %2796 = vmatpush2.msra.mxu0 0.0
  %2797 = vmatprep.subr.mxu0 0.0
  %2798 = vmatpush2.msra.mxu0 0.0
  %2799 = vmatprep.subr.mxu0 0.0
  %2800 = vmatpush2.msra.mxu0 0.0
  %2801 = vmatprep.subr.mxu0 0.0
  %2802 = vmatpush2.msra.mxu0 0.0
  %2803 = vmatprep.subr.mxu0 0.0
  %2804 = vmatpush2.msra.mxu0 0.0
  %2805 = vmatprep.subr.mxu0 0.0
  %2806 = vmatpush2.msra.mxu0 0.0
  %2807 = vmatprep.subr.mxu0 0.0
  %2808 = vmatpush2.msra.mxu0 0.0
  %2809 = vmatprep.subr.mxu0 0.0
  %2810 = vmatpush2.msra.mxu0 0.0
  %2811 = vmatprep.subr.mxu0 0.0
  %2812 = vmatpush2.msra.mxu0 0.0
  %2813 = vmatprep.subr.mxu0 0.0
  %2814 = vmatpush2.msra.mxu0 0.0
  %2815 = vmatprep.subr.mxu0 0.0
  %2816 = vmatpush2.msra.mxu0 0.0
  %2817 = vmatprep.mubr.f32.mxu0 0.0
  %v2818 = vand.u32 %v2705, 4294901760
  %v2819 = vsub.f32 %v2705, %v2818
  %v2820 = vand.u32 %v2819, 4294901760
  %v2821 = vsub.f32 %v2819, %v2820
  %v2822 = vand.u32 %v2821, 4294901760
  %2823 = vmatmul.mubr.f32.gmra.mxu0 %v2822
  %v2824 = vpop.f32.mrf.mxu0
  %v2825 = vadd.f32 %v2656, %v2824
  %v2826 = vpop.f32.mrf.mxu0
  %2827 = vmatprep.mubr.f32.mxu0 0.0
  %v2828 = vand.u32 %v2708, 4294901760
  %v2829 = vsub.f32 %v2708, %v2828
  %v2830 = vand.u32 %v2829, 4294901760
  %v2831 = vsub.f32 %v2829, %v2830
  %v2832 = vand.u32 %v2831, 4294901760
  %2833 = vmatmul.mubr.f32.gmra.mxu0 %v2832
  %v2834 = vpop.f32.mrf.mxu0
  %v2835 = vadd.f32 %v2657, %v2834
  %v2836 = vpop.f32.mrf.mxu0
  %2837 = vmatprep.mubr.f32.mxu0 0.0
  %v2838 = vand.u32 %v2711, 4294901760
  %v2839 = vsub.f32 %v2711, %v2838
  %v2840 = vand.u32 %v2839, 4294901760
  %v2841 = vsub.f32 %v2839, %v2840
  %v2842 = vand.u32 %v2841, 4294901760
  %2843 = vmatmul.mubr.f32.gmra.mxu0 %v2842
  %v2844 = vpop.f32.mrf.mxu0
  %v2845 = vadd.f32 %v2658, %v2844
  %v2846 = vpop.f32.mrf.mxu0
  %2847 = vmatprep.mubr.f32.mxu0 0.0
  %v2848 = vand.u32 %v2714, 4294901760
  %v2849 = vsub.f32 %v2714, %v2848
  %v2850 = vand.u32 %v2849, 4294901760
  %v2851 = vsub.f32 %v2849, %v2850
  %v2852 = vand.u32 %v2851, 4294901760
  %2853 = vmatmul.mubr.f32.gmra.mxu0 %v2852
  %v2854 = vpop.f32.mrf.mxu0
  %v2855 = vadd.f32 %v2659, %v2854
  %v2856 = vpop.f32.mrf.mxu0
  %2857 = vmatprep.mubr.f32.mxu0 0.0
  %v2858 = vand.u32 %v2717, 4294901760
  %v2859 = vsub.f32 %v2717, %v2858
  %v2860 = vand.u32 %v2859, 4294901760
  %v2861 = vsub.f32 %v2859, %v2860
  %v2862 = vand.u32 %v2861, 4294901760
  %2863 = vmatmul.mubr.f32.gmra.mxu0 %v2862
  %v2864 = vpop.f32.mrf.mxu0
  %v2865 = vadd.f32 %v2660, %v2864
  %v2866 = vpop.f32.mrf.mxu0
  %2867 = vmatprep.mubr.f32.mxu0 0.0
  %v2868 = vand.u32 %v2720, 4294901760
  %v2869 = vsub.f32 %v2720, %v2868
  %v2870 = vand.u32 %v2869, 4294901760
  %v2871 = vsub.f32 %v2869, %v2870
  %v2872 = vand.u32 %v2871, 4294901760
  %2873 = vmatmul.mubr.f32.gmra.mxu0 %v2872
  %v2874 = vpop.f32.mrf.mxu0
  %v2875 = vadd.f32 %v2661, %v2874
  %v2876 = vpop.f32.mrf.mxu0
  %2877 = vmatprep.mubr.f32.mxu0 0.0
  %v2878 = vand.u32 %v2723, 4294901760
  %v2879 = vsub.f32 %v2723, %v2878
  %v2880 = vand.u32 %v2879, 4294901760
  %v2881 = vsub.f32 %v2879, %v2880
  %v2882 = vand.u32 %v2881, 4294901760
  %2883 = vmatmul.mubr.f32.gmra.mxu0 %v2882
  %v2884 = vpop.f32.mrf.mxu0
  %v2885 = vadd.f32 %v2662, %v2884
  %v2886 = vpop.f32.mrf.mxu0
  %2887 = vmatprep.mubr.f32.mxu0 0.0
  %v2888 = vand.u32 %v2726, 4294901760
  %v2889 = vsub.f32 %v2726, %v2888
  %v2890 = vand.u32 %v2889, 4294901760
  %v2891 = vsub.f32 %v2889, %v2890
  %v2892 = vand.u32 %v2891, 4294901760
  %2893 = vmatmul.mubr.f32.gmra.mxu0 %v2892
  %v2894 = vpop.f32.mrf.mxu0
  %v2895 = vadd.f32 %v2663, %v2894
  %v2896 = vpop.f32.mrf.mxu0
  %2897 = vmatprep.mubr.f32.mxu0 0.0
  %v2898 = vand.u32 %v2729, 4294901760
  %v2899 = vsub.f32 %v2729, %v2898
  %v2900 = vand.u32 %v2899, 4294901760
  %v2901 = vsub.f32 %v2899, %v2900
  %v2902 = vand.u32 %v2901, 4294901760
  %2903 = vmatmul.mubr.f32.gmra.mxu0 %v2902
  %v2904 = vpop.f32.mrf.mxu0
  %v2905 = vadd.f32 %v2664, %v2904
  %v2906 = vpop.f32.mrf.mxu0
  %2907 = vmatprep.mubr.f32.mxu0 0.0
  %v2908 = vand.u32 %v2732, 4294901760
  %v2909 = vsub.f32 %v2732, %v2908
  %v2910 = vand.u32 %v2909, 4294901760
  %v2911 = vsub.f32 %v2909, %v2910
  %v2912 = vand.u32 %v2911, 4294901760
  %2913 = vmatmul.mubr.f32.gmra.mxu0 %v2912
  %v2914 = vpop.f32.mrf.mxu0
  %v2915 = vadd.f32 %v2665, %v2914
  %v2916 = vpop.f32.mrf.mxu0
  %2917 = vmatprep.mubr.f32.mxu0 0.0
  %v2918 = vand.u32 %v2735, 4294901760
  %v2919 = vsub.f32 %v2735, %v2918
  %v2920 = vand.u32 %v2919, 4294901760
  %v2921 = vsub.f32 %v2919, %v2920
  %v2922 = vand.u32 %v2921, 4294901760
  %2923 = vmatmul.mubr.f32.gmra.mxu0 %v2922
  %v2924 = vpop.f32.mrf.mxu0
  %v2925 = vadd.f32 %v2666, %v2924
  %v2926 = vpop.f32.mrf.mxu0
  %2927 = vmatprep.mubr.f32.mxu0 0.0
  %v2928 = vand.u32 %v2738, 4294901760
  %v2929 = vsub.f32 %v2738, %v2928
  %v2930 = vand.u32 %v2929, 4294901760
  %v2931 = vsub.f32 %v2929, %v2930
  %v2932 = vand.u32 %v2931, 4294901760
  %2933 = vmatmul.mubr.f32.gmra.mxu0 %v2932
  %v2934 = vpop.f32.mrf.mxu0
  %v2935 = vadd.f32 %v2667, %v2934
  %v2936 = vpop.f32.mrf.mxu0
  %2937 = vmatprep.mubr.f32.mxu0 0.0
  %v2938 = vand.u32 %v2741, 4294901760
  %v2939 = vsub.f32 %v2741, %v2938
  %v2940 = vand.u32 %v2939, 4294901760
  %v2941 = vsub.f32 %v2939, %v2940
  %v2942 = vand.u32 %v2941, 4294901760
  %2943 = vmatmul.mubr.f32.gmra.mxu0 %v2942
  %v2944 = vpop.f32.mrf.mxu0
  %v2945 = vadd.f32 %v2668, %v2944
  %v2946 = vpop.f32.mrf.mxu0
  %2947 = vmatprep.mubr.f32.mxu0 0.0
  %v2948 = vand.u32 %v2744, 4294901760
  %v2949 = vsub.f32 %v2744, %v2948
  %v2950 = vand.u32 %v2949, 4294901760
  %v2951 = vsub.f32 %v2949, %v2950
  %v2952 = vand.u32 %v2951, 4294901760
  %2953 = vmatmul.mubr.f32.gmra.mxu0 %v2952
  %v2954 = vpop.f32.mrf.mxu0
  %v2955 = vadd.f32 %v2669, %v2954
  %v2956 = vpop.f32.mrf.mxu0
  %2957 = vmatprep.mubr.f32.mxu0 0.0
  %v2958 = vand.u32 %v2747, 4294901760
  %v2959 = vsub.f32 %v2747, %v2958
  %v2960 = vand.u32 %v2959, 4294901760
  %v2961 = vsub.f32 %v2959, %v2960
  %v2962 = vand.u32 %v2961, 4294901760
  %2963 = vmatmul.mubr.f32.gmra.mxu0 %v2962
  %v2964 = vpop.f32.mrf.mxu0
  %v2965 = vadd.f32 %v2670, %v2964
  %v2966 = vpop.f32.mrf.mxu0
  %2967 = vmatprep.mubr.f32.mxu0 0.0
  %v2968 = vand.u32 %v2750, 4294901760
  %v2969 = vsub.f32 %v2750, %v2968
  %v2970 = vand.u32 %v2969, 4294901760
  %v2971 = vsub.f32 %v2969, %v2970
  %v2972 = vand.u32 %v2971, 4294901760
  %2973 = vmatmul.mubr.f32.gmra.mxu0 %v2972
  %v2974 = vpop.f32.mrf.mxu0
  %v2975 = vadd.f32 %v2671, %v2974
  %v2976 = vpop.f32.mrf.mxu0
  %2977 = vdwg.mxu0
  %2978 = vmatprep.subr.mxu0 0.0
  %2979 = vmatpush1.msra.mxu0 0.0
  %2980 = vmatprep.subr.mxu0 0.0
  %2981 = vmatpush1.msra.mxu0 0.0
  %2982 = vmatprep.subr.mxu0 0.0
  %2983 = vmatpush1.msra.mxu0 0.0
  %2984 = vmatprep.subr.mxu0 0.0
  %2985 = vmatpush1.msra.mxu0 0.0
  %2986 = vmatprep.subr.mxu0 0.0
  %2987 = vmatpush1.msra.mxu0 0.0
  %2988 = vmatprep.subr.mxu0 0.0
  %2989 = vmatpush1.msra.mxu0 0.0
  %2990 = vmatprep.subr.mxu0 0.0
  %2991 = vmatpush1.msra.mxu0 0.0
  %2992 = vmatprep.subr.mxu0 0.0
  %2993 = vmatpush1.msra.mxu0 0.0
  %2994 = vmatprep.subr.mxu0 0.0
  %2995 = vmatpush1.msra.mxu0 0.0
  %2996 = vmatprep.subr.mxu0 0.0
  %2997 = vmatpush1.msra.mxu0 0.0
  %2998 = vmatprep.subr.mxu0 0.0
  %2999 = vmatpush1.msra.mxu0 0.0
  %3000 = vmatprep.subr.mxu0 0.0
  %3001 = vmatpush1.msra.mxu0 0.0
  %3002 = vmatprep.subr.mxu0 0.0
  %3003 = vmatpush1.msra.mxu0 0.0
  %3004 = vmatprep.subr.mxu0 0.0
  %3005 = vmatpush1.msra.mxu0 0.0
  %3006 = vmatprep.subr.mxu0 0.0
  %3007 = vmatpush1.msra.mxu0 0.0
  %3008 = vmatprep.subr.mxu0 0.0
  %v3009 = vand.u32 %v707, 4294901760
  %v3010 = vsub.f32 %v707, %v3009
  %v3011 = vand.u32 %v3010, 4294901760
  %v3012 = vsub.f32 %v3010, %v3011
  %v3013 = vand.u32 %v3012, 4294901760
  %3014 = vmatpush1.msra.mxu0 %v3013
  %3015 = vmatprep.subr.mxu0 0.0
  %3016 = vmatpush2.msra.mxu0 0.0
  %3017 = vmatprep.subr.mxu0 0.0
  %3018 = vmatpush2.msra.mxu0 0.0
  %3019 = vmatprep.subr.mxu0 0.0
  %3020 = vmatpush2.msra.mxu0 0.0
  %3021 = vmatprep.subr.mxu0 0.0
  %3022 = vmatpush2.msra.mxu0 0.0
  %3023 = vmatprep.subr.mxu0 0.0
  %3024 = vmatpush2.msra.mxu0 0.0
  %3025 = vmatprep.subr.mxu0 0.0
  %3026 = vmatpush2.msra.mxu0 0.0
  %3027 = vmatprep.subr.mxu0 0.0
  %3028 = vmatpush2.msra.mxu0 0.0
  %3029 = vmatprep.subr.mxu0 0.0
  %3030 = vmatpush2.msra.mxu0 0.0
  %3031 = vmatprep.subr.mxu0 0.0
  %3032 = vmatpush2.msra.mxu0 0.0
  %3033 = vmatprep.subr.mxu0 0.0
  %3034 = vmatpush2.msra.mxu0 0.0
  %3035 = vmatprep.subr.mxu0 0.0
  %3036 = vmatpush2.msra.mxu0 0.0
  %3037 = vmatprep.subr.mxu0 0.0
  %3038 = vmatpush2.msra.mxu0 0.0
  %3039 = vmatprep.subr.mxu0 0.0
  %3040 = vmatpush2.msra.mxu0 0.0
  %3041 = vmatprep.subr.mxu0 0.0
  %3042 = vmatpush2.msra.mxu0 0.0
  %3043 = vmatprep.subr.mxu0 0.0
  %3044 = vmatpush2.msra.mxu0 0.0
  %3045 = vmatprep.subr.mxu0 0.0
  %3046 = vmatpush2.msra.mxu0 0.0
  %3047 = vmatprep.mubr.f32.mxu0 0.0
  %v3048 = vand.u32 %v2705, 4294901760
  %3049 = vmatmul.mubr.f32.gmra.mxu0 %v3048
  %v3050 = vpop.f32.mrf.mxu0
  %v3051 = vadd.f32 %v2825, %v3050
  %v3052 = vpop.f32.mrf.mxu0
  %3053 = vmatprep.mubr.f32.mxu0 0.0
  %v3054 = vand.u32 %v2708, 4294901760
  %3055 = vmatmul.mubr.f32.gmra.mxu0 %v3054
  %v3056 = vpop.f32.mrf.mxu0
  %v3057 = vadd.f32 %v2835, %v3056
  %v3058 = vpop.f32.mrf.mxu0
  %3059 = vmatprep.mubr.f32.mxu0 0.0
  %v3060 = vand.u32 %v2711, 4294901760
  %3061 = vmatmul.mubr.f32.gmra.mxu0 %v3060
  %v3062 = vpop.f32.mrf.mxu0
  %v3063 = vadd.f32 %v2845, %v3062
  %v3064 = vpop.f32.mrf.mxu0
  %3065 = vmatprep.mubr.f32.mxu0 0.0
  %v3066 = vand.u32 %v2714, 4294901760
  %3067 = vmatmul.mubr.f32.gmra.mxu0 %v3066
  %v3068 = vpop.f32.mrf.mxu0
  %v3069 = vadd.f32 %v2855, %v3068
  %v3070 = vpop.f32.mrf.mxu0
  %3071 = vmatprep.mubr.f32.mxu0 0.0
  %v3072 = vand.u32 %v2717, 4294901760
  %3073 = vmatmul.mubr.f32.gmra.mxu0 %v3072
  %v3074 = vpop.f32.mrf.mxu0
  %v3075 = vadd.f32 %v2865, %v3074
  %v3076 = vpop.f32.mrf.mxu0
  %3077 = vmatprep.mubr.f32.mxu0 0.0
  %v3078 = vand.u32 %v2720, 4294901760
  %3079 = vmatmul.mubr.f32.gmra.mxu0 %v3078
  %v3080 = vpop.f32.mrf.mxu0
  %v3081 = vadd.f32 %v2875, %v3080
  %v3082 = vpop.f32.mrf.mxu0
  %3083 = vmatprep.mubr.f32.mxu0 0.0
  %v3084 = vand.u32 %v2723, 4294901760
  %3085 = vmatmul.mubr.f32.gmra.mxu0 %v3084
  %v3086 = vpop.f32.mrf.mxu0
  %v3087 = vadd.f32 %v2885, %v3086
  %v3088 = vpop.f32.mrf.mxu0
  %3089 = vmatprep.mubr.f32.mxu0 0.0
  %v3090 = vand.u32 %v2726, 4294901760
  %3091 = vmatmul.mubr.f32.gmra.mxu0 %v3090
  %v3092 = vpop.f32.mrf.mxu0
  %v3093 = vadd.f32 %v2895, %v3092
  %v3094 = vpop.f32.mrf.mxu0
  %3095 = vmatprep.mubr.f32.mxu0 0.0
  %v3096 = vand.u32 %v2729, 4294901760
  %3097 = vmatmul.mubr.f32.gmra.mxu0 %v3096
  %v3098 = vpop.f32.mrf.mxu0
  %v3099 = vadd.f32 %v2905, %v3098
  %v3100 = vpop.f32.mrf.mxu0
  %3101 = vmatprep.mubr.f32.mxu0 0.0
  %v3102 = vand.u32 %v2732, 4294901760
  %3103 = vmatmul.mubr.f32.gmra.mxu0 %v3102
  %v3104 = vpop.f32.mrf.mxu0
  %v3105 = vadd.f32 %v2915, %v3104
  %v3106 = vpop.f32.mrf.mxu0
  %3107 = vmatprep.mubr.f32.mxu0 0.0
  %v3108 = vand.u32 %v2735, 4294901760
  %3109 = vmatmul.mubr.f32.gmra.mxu0 %v3108
  %v3110 = vpop.f32.mrf.mxu0
  %v3111 = vadd.f32 %v2925, %v3110
  %v3112 = vpop.f32.mrf.mxu0
  %3113 = vmatprep.mubr.f32.mxu0 0.0
  %v3114 = vand.u32 %v2738, 4294901760
  %3115 = vmatmul.mubr.f32.gmra.mxu0 %v3114
  %v3116 = vpop.f32.mrf.mxu0
  %v3117 = vadd.f32 %v2935, %v3116
  %v3118 = vpop.f32.mrf.mxu0
  %3119 = vmatprep.mubr.f32.mxu0 0.0
  %v3120 = vand.u32 %v2741, 4294901760
  %3121 = vmatmul.mubr.f32.gmra.mxu0 %v3120
  %v3122 = vpop.f32.mrf.mxu0
  %v3123 = vadd.f32 %v2945, %v3122
  %v3124 = vpop.f32.mrf.mxu0
  %3125 = vmatprep.mubr.f32.mxu0 0.0
  %v3126 = vand.u32 %v2744, 4294901760
  %3127 = vmatmul.mubr.f32.gmra.mxu0 %v3126
  %v3128 = vpop.f32.mrf.mxu0
  %v3129 = vadd.f32 %v2955, %v3128
  %v3130 = vpop.f32.mrf.mxu0
  %3131 = vmatprep.mubr.f32.mxu0 0.0
  %v3132 = vand.u32 %v2747, 4294901760
  %3133 = vmatmul.mubr.f32.gmra.mxu0 %v3132
  %v3134 = vpop.f32.mrf.mxu0
  %v3135 = vadd.f32 %v2965, %v3134
  %v3136 = vpop.f32.mrf.mxu0
  %3137 = vmatprep.mubr.f32.mxu0 0.0
  %v3138 = vand.u32 %v2750, 4294901760
  %3139 = vmatmul.mubr.f32.gmra.mxu0 %v3138
  %v3140 = vpop.f32.mrf.mxu0
  %v3141 = vadd.f32 %v2975, %v3140
  %v3142 = vpop.f32.mrf.mxu0
  %3143 = vdwg.mxu0
  %3144 = vmatprep.subr.mxu0 0.0
  %3145 = vmatpush1.msra.mxu0 0.0
  %3146 = vmatprep.subr.mxu0 0.0
  %3147 = vmatpush1.msra.mxu0 0.0
  %3148 = vmatprep.subr.mxu0 0.0
  %3149 = vmatpush1.msra.mxu0 0.0
  %3150 = vmatprep.subr.mxu0 0.0
  %3151 = vmatpush1.msra.mxu0 0.0
  %3152 = vmatprep.subr.mxu0 0.0
  %3153 = vmatpush1.msra.mxu0 0.0
  %3154 = vmatprep.subr.mxu0 0.0
  %3155 = vmatpush1.msra.mxu0 0.0
  %3156 = vmatprep.subr.mxu0 0.0
  %3157 = vmatpush1.msra.mxu0 0.0
  %3158 = vmatprep.subr.mxu0 0.0
  %3159 = vmatpush1.msra.mxu0 0.0
  %3160 = vmatprep.subr.mxu0 0.0
  %3161 = vmatpush1.msra.mxu0 0.0
  %3162 = vmatprep.subr.mxu0 0.0
  %3163 = vmatpush1.msra.mxu0 0.0
  %3164 = vmatprep.subr.mxu0 0.0
  %3165 = vmatpush1.msra.mxu0 0.0
  %3166 = vmatprep.subr.mxu0 0.0
  %3167 = vmatpush1.msra.mxu0 0.0
  %3168 = vmatprep.subr.mxu0 0.0
  %3169 = vmatpush1.msra.mxu0 0.0
  %3170 = vmatprep.subr.mxu0 0.0
  %3171 = vmatpush1.msra.mxu0 0.0
  %3172 = vmatprep.subr.mxu0 0.0
  %3173 = vmatpush1.msra.mxu0 0.0
  %3174 = vmatprep.subr.mxu0 0.0
  %v3175 = vand.u32 %v707, 4294901760
  %v3176 = vsub.f32 %v707, %v3175
  %3177 = vmatpush1.msra.mxu0 %v3176
  %3178 = vmatprep.subr.mxu0 0.0
  %3179 = vmatpush2.msra.mxu0 0.0
  %3180 = vmatprep.subr.mxu0 0.0
  %3181 = vmatpush2.msra.mxu0 0.0
  %3182 = vmatprep.subr.mxu0 0.0
  %3183 = vmatpush2.msra.mxu0 0.0
  %3184 = vmatprep.subr.mxu0 0.0
  %3185 = vmatpush2.msra.mxu0 0.0
  %3186 = vmatprep.subr.mxu0 0.0
  %3187 = vmatpush2.msra.mxu0 0.0
  %3188 = vmatprep.subr.mxu0 0.0
  %3189 = vmatpush2.msra.mxu0 0.0
  %3190 = vmatprep.subr.mxu0 0.0
  %3191 = vmatpush2.msra.mxu0 0.0
  %3192 = vmatprep.subr.mxu0 0.0
  %3193 = vmatpush2.msra.mxu0 0.0
  %3194 = vmatprep.subr.mxu0 0.0
  %3195 = vmatpush2.msra.mxu0 0.0
  %3196 = vmatprep.subr.mxu0 0.0
  %3197 = vmatpush2.msra.mxu0 0.0
  %3198 = vmatprep.subr.mxu0 0.0
  %3199 = vmatpush2.msra.mxu0 0.0
  %3200 = vmatprep.subr.mxu0 0.0
  %3201 = vmatpush2.msra.mxu0 0.0
  %3202 = vmatprep.subr.mxu0 0.0
  %3203 = vmatpush2.msra.mxu0 0.0
  %3204 = vmatprep.subr.mxu0 0.0
  %3205 = vmatpush2.msra.mxu0 0.0
  %3206 = vmatprep.subr.mxu0 0.0
  %3207 = vmatpush2.msra.mxu0 0.0
  %3208 = vmatprep.subr.mxu0 0.0
  %3209 = vmatpush2.msra.mxu0 0.0
  %3210 = vmatprep.mubr.f32.mxu0 0.0
  %v3211 = vand.u32 %v2705, 4294901760
  %v3212 = vsub.f32 %v2705, %v3211
  %3213 = vmatmul.mubr.f32.gmra.mxu0 %v3212
  %v3214 = vpop.f32.mrf.mxu0
  %v3215 = vadd.f32 %v3051, %v3214
  %v3216 = vpop.f32.mrf.mxu0
  %3217 = vmatprep.mubr.f32.mxu0 0.0
  %v3218 = vand.u32 %v2708, 4294901760
  %v3219 = vsub.f32 %v2708, %v3218
  %3220 = vmatmul.mubr.f32.gmra.mxu0 %v3219
  %v3221 = vpop.f32.mrf.mxu0
  %v3222 = vadd.f32 %v3057, %v3221
  %v3223 = vpop.f32.mrf.mxu0
  %3224 = vmatprep.mubr.f32.mxu0 0.0
  %v3225 = vand.u32 %v2711, 4294901760
  %v3226 = vsub.f32 %v2711, %v3225
  %3227 = vmatmul.mubr.f32.gmra.mxu0 %v3226
  %v3228 = vpop.f32.mrf.mxu0
  %v3229 = vadd.f32 %v3063, %v3228
  %v3230 = vpop.f32.mrf.mxu0
  %3231 = vmatprep.mubr.f32.mxu0 0.0
  %v3232 = vand.u32 %v2714, 4294901760
  %v3233 = vsub.f32 %v2714, %v3232
  %3234 = vmatmul.mubr.f32.gmra.mxu0 %v3233
  %v3235 = vpop.f32.mrf.mxu0
  %v3236 = vadd.f32 %v3069, %v3235
  %v3237 = vpop.f32.mrf.mxu0
  %3238 = vmatprep.mubr.f32.mxu0 0.0
  %v3239 = vand.u32 %v2717, 4294901760
  %v3240 = vsub.f32 %v2717, %v3239
  %3241 = vmatmul.mubr.f32.gmra.mxu0 %v3240
  %v3242 = vpop.f32.mrf.mxu0
  %v3243 = vadd.f32 %v3075, %v3242
  %v3244 = vpop.f32.mrf.mxu0
  %3245 = vmatprep.mubr.f32.mxu0 0.0
  %v3246 = vand.u32 %v2720, 4294901760
  %v3247 = vsub.f32 %v2720, %v3246
  %3248 = vmatmul.mubr.f32.gmra.mxu0 %v3247
  %v3249 = vpop.f32.mrf.mxu0
  %v3250 = vadd.f32 %v3081, %v3249
  %v3251 = vpop.f32.mrf.mxu0
  %3252 = vmatprep.mubr.f32.mxu0 0.0
  %v3253 = vand.u32 %v2723, 4294901760
  %v3254 = vsub.f32 %v2723, %v3253
  %3255 = vmatmul.mubr.f32.gmra.mxu0 %v3254
  %v3256 = vpop.f32.mrf.mxu0
  %v3257 = vadd.f32 %v3087, %v3256
  %v3258 = vpop.f32.mrf.mxu0
  %3259 = vmatprep.mubr.f32.mxu0 0.0
  %v3260 = vand.u32 %v2726, 4294901760
  %v3261 = vsub.f32 %v2726, %v3260
  %3262 = vmatmul.mubr.f32.gmra.mxu0 %v3261
  %v3263 = vpop.f32.mrf.mxu0
  %v3264 = vadd.f32 %v3093, %v3263
  %v3265 = vpop.f32.mrf.mxu0
  %3266 = vmatprep.mubr.f32.mxu0 0.0
  %v3267 = vand.u32 %v2729, 4294901760
  %v3268 = vsub.f32 %v2729, %v3267
  %3269 = vmatmul.mubr.f32.gmra.mxu0 %v3268
  %v3270 = vpop.f32.mrf.mxu0
  %v3271 = vadd.f32 %v3099, %v3270
  %v3272 = vpop.f32.mrf.mxu0
  %3273 = vmatprep.mubr.f32.mxu0 0.0
  %v3274 = vand.u32 %v2732, 4294901760
  %v3275 = vsub.f32 %v2732, %v3274
  %3276 = vmatmul.mubr.f32.gmra.mxu0 %v3275
  %v3277 = vpop.f32.mrf.mxu0
  %v3278 = vadd.f32 %v3105, %v3277
  %v3279 = vpop.f32.mrf.mxu0
  %3280 = vmatprep.mubr.f32.mxu0 0.0
  %v3281 = vand.u32 %v2735, 4294901760
  %v3282 = vsub.f32 %v2735, %v3281
  %3283 = vmatmul.mubr.f32.gmra.mxu0 %v3282
  %v3284 = vpop.f32.mrf.mxu0
  %v3285 = vadd.f32 %v3111, %v3284
  %v3286 = vpop.f32.mrf.mxu0
  %3287 = vmatprep.mubr.f32.mxu0 0.0
  %v3288 = vand.u32 %v2738, 4294901760
  %v3289 = vsub.f32 %v2738, %v3288
  %3290 = vmatmul.mubr.f32.gmra.mxu0 %v3289
  %v3291 = vpop.f32.mrf.mxu0
  %v3292 = vadd.f32 %v3117, %v3291
  %v3293 = vpop.f32.mrf.mxu0
  %3294 = vmatprep.mubr.f32.mxu0 0.0
  %v3295 = vand.u32 %v2741, 4294901760
  %v3296 = vsub.f32 %v2741, %v3295
  %3297 = vmatmul.mubr.f32.gmra.mxu0 %v3296
  %v3298 = vpop.f32.mrf.mxu0
  %v3299 = vadd.f32 %v3123, %v3298
  %v3300 = vpop.f32.mrf.mxu0
  %3301 = vmatprep.mubr.f32.mxu0 0.0
  %v3302 = vand.u32 %v2744, 4294901760
  %v3303 = vsub.f32 %v2744, %v3302
  %3304 = vmatmul.mubr.f32.gmra.mxu0 %v3303
  %v3305 = vpop.f32.mrf.mxu0
  %v3306 = vadd.f32 %v3129, %v3305
  %v3307 = vpop.f32.mrf.mxu0
  %3308 = vmatprep.mubr.f32.mxu0 0.0
  %v3309 = vand.u32 %v2747, 4294901760
  %v3310 = vsub.f32 %v2747, %v3309
  %3311 = vmatmul.mubr.f32.gmra.mxu0 %v3310
  %v3312 = vpop.f32.mrf.mxu0
  %v3313 = vadd.f32 %v3135, %v3312
  %v3314 = vpop.f32.mrf.mxu0
  %3315 = vmatprep.mubr.f32.mxu0 0.0
  %v3316 = vand.u32 %v2750, 4294901760
  %v3317 = vsub.f32 %v2750, %v3316
  %3318 = vmatmul.mubr.f32.gmra.mxu0 %v3317
  %v3319 = vpop.f32.mrf.mxu0
  %v3320 = vadd.f32 %v3141, %v3319
  %v3321 = vpop.f32.mrf.mxu0
  %3322 = vdwg.mxu0
  %3323 = vmatprep.subr.mxu0 0.0
  %3324 = vmatpush1.msra.mxu0 0.0
  %3325 = vmatprep.subr.mxu0 0.0
  %3326 = vmatpush1.msra.mxu0 0.0
  %3327 = vmatprep.subr.mxu0 0.0
  %3328 = vmatpush1.msra.mxu0 0.0
  %3329 = vmatprep.subr.mxu0 0.0
  %3330 = vmatpush1.msra.mxu0 0.0
  %3331 = vmatprep.subr.mxu0 0.0
  %3332 = vmatpush1.msra.mxu0 0.0
  %3333 = vmatprep.subr.mxu0 0.0
  %3334 = vmatpush1.msra.mxu0 0.0
  %3335 = vmatprep.subr.mxu0 0.0
  %3336 = vmatpush1.msra.mxu0 0.0
  %3337 = vmatprep.subr.mxu0 0.0
  %3338 = vmatpush1.msra.mxu0 0.0
  %3339 = vmatprep.subr.mxu0 0.0
  %3340 = vmatpush1.msra.mxu0 0.0
  %3341 = vmatprep.subr.mxu0 0.0
  %3342 = vmatpush1.msra.mxu0 0.0
  %3343 = vmatprep.subr.mxu0 0.0
  %3344 = vmatpush1.msra.mxu0 0.0
  %3345 = vmatprep.subr.mxu0 0.0
  %3346 = vmatpush1.msra.mxu0 0.0
  %3347 = vmatprep.subr.mxu0 0.0
  %3348 = vmatpush1.msra.mxu0 0.0
  %3349 = vmatprep.subr.mxu0 0.0
  %3350 = vmatpush1.msra.mxu0 0.0
  %3351 = vmatprep.subr.mxu0 0.0
  %3352 = vmatpush1.msra.mxu0 0.0
  %3353 = vmatprep.subr.mxu0 0.0
  %v3354 = vand.u32 %v707, 4294901760
  %3355 = vmatpush1.msra.mxu0 %v3354
  %3356 = vmatprep.subr.mxu0 0.0
  %3357 = vmatpush2.msra.mxu0 0.0
  %3358 = vmatprep.subr.mxu0 0.0
  %3359 = vmatpush2.msra.mxu0 0.0
  %3360 = vmatprep.subr.mxu0 0.0
  %3361 = vmatpush2.msra.mxu0 0.0
  %3362 = vmatprep.subr.mxu0 0.0
  %3363 = vmatpush2.msra.mxu0 0.0
  %3364 = vmatprep.subr.mxu0 0.0
  %3365 = vmatpush2.msra.mxu0 0.0
  %3366 = vmatprep.subr.mxu0 0.0
  %3367 = vmatpush2.msra.mxu0 0.0
  %3368 = vmatprep.subr.mxu0 0.0
  %3369 = vmatpush2.msra.mxu0 0.0
  %3370 = vmatprep.subr.mxu0 0.0
  %3371 = vmatpush2.msra.mxu0 0.0
  %3372 = vmatprep.subr.mxu0 0.0
  %3373 = vmatpush2.msra.mxu0 0.0
  %3374 = vmatprep.subr.mxu0 0.0
  %3375 = vmatpush2.msra.mxu0 0.0
  %3376 = vmatprep.subr.mxu0 0.0
  %3377 = vmatpush2.msra.mxu0 0.0
  %3378 = vmatprep.subr.mxu0 0.0
  %3379 = vmatpush2.msra.mxu0 0.0
  %3380 = vmatprep.subr.mxu0 0.0
  %3381 = vmatpush2.msra.mxu0 0.0
  %3382 = vmatprep.subr.mxu0 0.0
  %3383 = vmatpush2.msra.mxu0 0.0
  %3384 = vmatprep.subr.mxu0 0.0
  %3385 = vmatpush2.msra.mxu0 0.0
  %3386 = vmatprep.subr.mxu0 0.0
  %3387 = vmatpush2.msra.mxu0 0.0
  %3388 = vmatprep.mubr.f32.mxu0 0.0
  %v3389 = vand.u32 %v2705, 4294901760
  %v3390 = vsub.f32 %v2705, %v3389
  %v3391 = vand.u32 %v3390, 4294901760
  %3392 = vmatmul.mubr.f32.gmra.mxu0 %v3391
  %v3393 = vpop.f32.mrf.mxu0
  %v3394 = vadd.f32 %v3215, %v3393
  %v3395 = vpop.f32.mrf.mxu0
  %3396 = vmatprep.mubr.f32.mxu0 0.0
  %v3397 = vand.u32 %v2708, 4294901760
  %v3398 = vsub.f32 %v2708, %v3397
  %v3399 = vand.u32 %v3398, 4294901760
  %3400 = vmatmul.mubr.f32.gmra.mxu0 %v3399
  %v3401 = vpop.f32.mrf.mxu0
  %v3402 = vadd.f32 %v3222, %v3401
  %v3403 = vpop.f32.mrf.mxu0
  %3404 = vmatprep.mubr.f32.mxu0 0.0
  %v3405 = vand.u32 %v2711, 4294901760
  %v3406 = vsub.f32 %v2711, %v3405
  %v3407 = vand.u32 %v3406, 4294901760
  %3408 = vmatmul.mubr.f32.gmra.mxu0 %v3407
  %v3409 = vpop.f32.mrf.mxu0
  %v3410 = vadd.f32 %v3229, %v3409
  %v3411 = vpop.f32.mrf.mxu0
  %3412 = vmatprep.mubr.f32.mxu0 0.0
  %v3413 = vand.u32 %v2714, 4294901760
  %v3414 = vsub.f32 %v2714, %v3413
  %v3415 = vand.u32 %v3414, 4294901760
  %3416 = vmatmul.mubr.f32.gmra.mxu0 %v3415
  %v3417 = vpop.f32.mrf.mxu0
  %v3418 = vadd.f32 %v3236, %v3417
  %v3419 = vpop.f32.mrf.mxu0
  %3420 = vmatprep.mubr.f32.mxu0 0.0
  %v3421 = vand.u32 %v2717, 4294901760
  %v3422 = vsub.f32 %v2717, %v3421
  %v3423 = vand.u32 %v3422, 4294901760
  %3424 = vmatmul.mubr.f32.gmra.mxu0 %v3423
  %v3425 = vpop.f32.mrf.mxu0
  %v3426 = vadd.f32 %v3243, %v3425
  %v3427 = vpop.f32.mrf.mxu0
  %3428 = vmatprep.mubr.f32.mxu0 0.0
  %v3429 = vand.u32 %v2720, 4294901760
  %v3430 = vsub.f32 %v2720, %v3429
  %v3431 = vand.u32 %v3430, 4294901760
  %3432 = vmatmul.mubr.f32.gmra.mxu0 %v3431
  %v3433 = vpop.f32.mrf.mxu0
  %v3434 = vadd.f32 %v3250, %v3433
  %v3435 = vpop.f32.mrf.mxu0
  %3436 = vmatprep.mubr.f32.mxu0 0.0
  %v3437 = vand.u32 %v2723, 4294901760
  %v3438 = vsub.f32 %v2723, %v3437
  %v3439 = vand.u32 %v3438, 4294901760
  %3440 = vmatmul.mubr.f32.gmra.mxu0 %v3439
  %v3441 = vpop.f32.mrf.mxu0
  %v3442 = vadd.f32 %v3257, %v3441
  %v3443 = vpop.f32.mrf.mxu0
  %3444 = vmatprep.mubr.f32.mxu0 0.0
  %v3445 = vand.u32 %v2726, 4294901760
  %v3446 = vsub.f32 %v2726, %v3445
  %v3447 = vand.u32 %v3446, 4294901760
  %3448 = vmatmul.mubr.f32.gmra.mxu0 %v3447
  %v3449 = vpop.f32.mrf.mxu0
  %v3450 = vadd.f32 %v3264, %v3449
  %v3451 = vpop.f32.mrf.mxu0
  %3452 = vmatprep.mubr.f32.mxu0 0.0
  %v3453 = vand.u32 %v2729, 4294901760
  %v3454 = vsub.f32 %v2729, %v3453
  %v3455 = vand.u32 %v3454, 4294901760
  %3456 = vmatmul.mubr.f32.gmra.mxu0 %v3455
  %v3457 = vpop.f32.mrf.mxu0
  %v3458 = vadd.f32 %v3271, %v3457
  %v3459 = vpop.f32.mrf.mxu0
  %3460 = vmatprep.mubr.f32.mxu0 0.0
  %v3461 = vand.u32 %v2732, 4294901760
  %v3462 = vsub.f32 %v2732, %v3461
  %v3463 = vand.u32 %v3462, 4294901760
  %3464 = vmatmul.mubr.f32.gmra.mxu0 %v3463
  %v3465 = vpop.f32.mrf.mxu0
  %v3466 = vadd.f32 %v3278, %v3465
  %v3467 = vpop.f32.mrf.mxu0
  %3468 = vmatprep.mubr.f32.mxu0 0.0
  %v3469 = vand.u32 %v2735, 4294901760
  %v3470 = vsub.f32 %v2735, %v3469
  %v3471 = vand.u32 %v3470, 4294901760
  %3472 = vmatmul.mubr.f32.gmra.mxu0 %v3471
  %v3473 = vpop.f32.mrf.mxu0
  %v3474 = vadd.f32 %v3285, %v3473
  %v3475 = vpop.f32.mrf.mxu0
  %3476 = vmatprep.mubr.f32.mxu0 0.0
  %v3477 = vand.u32 %v2738, 4294901760
  %v3478 = vsub.f32 %v2738, %v3477
  %v3479 = vand.u32 %v3478, 4294901760
  %3480 = vmatmul.mubr.f32.gmra.mxu0 %v3479
  %v3481 = vpop.f32.mrf.mxu0
  %v3482 = vadd.f32 %v3292, %v3481
  %v3483 = vpop.f32.mrf.mxu0
  %3484 = vmatprep.mubr.f32.mxu0 0.0
  %v3485 = vand.u32 %v2741, 4294901760
  %v3486 = vsub.f32 %v2741, %v3485
  %v3487 = vand.u32 %v3486, 4294901760
  %3488 = vmatmul.mubr.f32.gmra.mxu0 %v3487
  %v3489 = vpop.f32.mrf.mxu0
  %v3490 = vadd.f32 %v3299, %v3489
  %v3491 = vpop.f32.mrf.mxu0
  %3492 = vmatprep.mubr.f32.mxu0 0.0
  %v3493 = vand.u32 %v2744, 4294901760
  %v3494 = vsub.f32 %v2744, %v3493
  %v3495 = vand.u32 %v3494, 4294901760
  %3496 = vmatmul.mubr.f32.gmra.mxu0 %v3495
  %v3497 = vpop.f32.mrf.mxu0
  %v3498 = vadd.f32 %v3306, %v3497
  %v3499 = vpop.f32.mrf.mxu0
  %3500 = vmatprep.mubr.f32.mxu0 0.0
  %v3501 = vand.u32 %v2747, 4294901760
  %v3502 = vsub.f32 %v2747, %v3501
  %v3503 = vand.u32 %v3502, 4294901760
  %3504 = vmatmul.mubr.f32.gmra.mxu0 %v3503
  %v3505 = vpop.f32.mrf.mxu0
  %v3506 = vadd.f32 %v3313, %v3505
  %v3507 = vpop.f32.mrf.mxu0
  %3508 = vmatprep.mubr.f32.mxu0 0.0
  %v3509 = vand.u32 %v2750, 4294901760
  %v3510 = vsub.f32 %v2750, %v3509
  %v3511 = vand.u32 %v3510, 4294901760
  %3512 = vmatmul.mubr.f32.gmra.mxu0 %v3511
  %v3513 = vpop.f32.mrf.mxu0
  %v3514 = vadd.f32 %v3320, %v3513
  %v3515 = vpop.f32.mrf.mxu0
  %3516 = vdwg.mxu0
  %3517 = vmatprep.subr.mxu0 0.0
  %3518 = vmatpush1.msra.mxu0 0.0
  %3519 = vmatprep.subr.mxu0 0.0
  %3520 = vmatpush1.msra.mxu0 0.0
  %3521 = vmatprep.subr.mxu0 0.0
  %3522 = vmatpush1.msra.mxu0 0.0
  %3523 = vmatprep.subr.mxu0 0.0
  %3524 = vmatpush1.msra.mxu0 0.0
  %3525 = vmatprep.subr.mxu0 0.0
  %3526 = vmatpush1.msra.mxu0 0.0
  %3527 = vmatprep.subr.mxu0 0.0
  %3528 = vmatpush1.msra.mxu0 0.0
  %3529 = vmatprep.subr.mxu0 0.0
  %3530 = vmatpush1.msra.mxu0 0.0
  %3531 = vmatprep.subr.mxu0 0.0
  %3532 = vmatpush1.msra.mxu0 0.0
  %3533 = vmatprep.subr.mxu0 0.0
  %3534 = vmatpush1.msra.mxu0 0.0
  %3535 = vmatprep.subr.mxu0 0.0
  %3536 = vmatpush1.msra.mxu0 0.0
  %3537 = vmatprep.subr.mxu0 0.0
  %3538 = vmatpush1.msra.mxu0 0.0
  %3539 = vmatprep.subr.mxu0 0.0
  %3540 = vmatpush1.msra.mxu0 0.0
  %3541 = vmatprep.subr.mxu0 0.0
  %3542 = vmatpush1.msra.mxu0 0.0
  %3543 = vmatprep.subr.mxu0 0.0
  %3544 = vmatpush1.msra.mxu0 0.0
  %3545 = vmatprep.subr.mxu0 0.0
  %3546 = vmatpush1.msra.mxu0 0.0
  %3547 = vmatprep.subr.mxu0 0.0
  %v3548 = vand.u32 %v707, 4294901760
  %v3549 = vsub.f32 %v707, %v3548
  %v3550 = vand.u32 %v3549, 4294901760
  %3551 = vmatpush1.msra.mxu0 %v3550
  %3552 = vmatprep.subr.mxu0 0.0
  %3553 = vmatpush2.msra.mxu0 0.0
  %3554 = vmatprep.subr.mxu0 0.0
  %3555 = vmatpush2.msra.mxu0 0.0
  %3556 = vmatprep.subr.mxu0 0.0
  %3557 = vmatpush2.msra.mxu0 0.0
  %3558 = vmatprep.subr.mxu0 0.0
  %3559 = vmatpush2.msra.mxu0 0.0
  %3560 = vmatprep.subr.mxu0 0.0
  %3561 = vmatpush2.msra.mxu0 0.0
  %3562 = vmatprep.subr.mxu0 0.0
  %3563 = vmatpush2.msra.mxu0 0.0
  %3564 = vmatprep.subr.mxu0 0.0
  %3565 = vmatpush2.msra.mxu0 0.0
  %3566 = vmatprep.subr.mxu0 0.0
  %3567 = vmatpush2.msra.mxu0 0.0
  %3568 = vmatprep.subr.mxu0 0.0
  %3569 = vmatpush2.msra.mxu0 0.0
  %3570 = vmatprep.subr.mxu0 0.0
  %3571 = vmatpush2.msra.mxu0 0.0
  %3572 = vmatprep.subr.mxu0 0.0
  %3573 = vmatpush2.msra.mxu0 0.0
  %3574 = vmatprep.subr.mxu0 0.0
  %3575 = vmatpush2.msra.mxu0 0.0
  %3576 = vmatprep.subr.mxu0 0.0
  %3577 = vmatpush2.msra.mxu0 0.0
  %3578 = vmatprep.subr.mxu0 0.0
  %3579 = vmatpush2.msra.mxu0 0.0
  %3580 = vmatprep.subr.mxu0 0.0
  %3581 = vmatpush2.msra.mxu0 0.0
  %3582 = vmatprep.subr.mxu0 0.0
  %3583 = vmatpush2.msra.mxu0 0.0
  %3584 = vmatprep.mubr.f32.mxu0 0.0
  %v3585 = vand.u32 %v2705, 4294901760
  %3586 = vmatmul.mubr.f32.gmra.mxu0 %v3585
  %v3587 = vpop.f32.mrf.mxu0
  %v3588 = vadd.f32 %v3394, %v3587
  %v3589 = vpop.f32.mrf.mxu0
  %3590 = vmatprep.mubr.f32.mxu0 0.0
  %v3591 = vand.u32 %v2708, 4294901760
  %3592 = vmatmul.mubr.f32.gmra.mxu0 %v3591
  %v3593 = vpop.f32.mrf.mxu0
  %v3594 = vadd.f32 %v3402, %v3593
  %v3595 = vpop.f32.mrf.mxu0
  %3596 = vmatprep.mubr.f32.mxu0 0.0
  %v3597 = vand.u32 %v2711, 4294901760
  %3598 = vmatmul.mubr.f32.gmra.mxu0 %v3597
  %v3599 = vpop.f32.mrf.mxu0
  %v3600 = vadd.f32 %v3410, %v3599
  %v3601 = vpop.f32.mrf.mxu0
  %3602 = vmatprep.mubr.f32.mxu0 0.0
  %v3603 = vand.u32 %v2714, 4294901760
  %3604 = vmatmul.mubr.f32.gmra.mxu0 %v3603
  %v3605 = vpop.f32.mrf.mxu0
  %v3606 = vadd.f32 %v3418, %v3605
  %v3607 = vpop.f32.mrf.mxu0
  %3608 = vmatprep.mubr.f32.mxu0 0.0
  %v3609 = vand.u32 %v2717, 4294901760
  %3610 = vmatmul.mubr.f32.gmra.mxu0 %v3609
  %v3611 = vpop.f32.mrf.mxu0
  %v3612 = vadd.f32 %v3426, %v3611
  %v3613 = vpop.f32.mrf.mxu0
  %3614 = vmatprep.mubr.f32.mxu0 0.0
  %v3615 = vand.u32 %v2720, 4294901760
  %3616 = vmatmul.mubr.f32.gmra.mxu0 %v3615
  %v3617 = vpop.f32.mrf.mxu0
  %v3618 = vadd.f32 %v3434, %v3617
  %v3619 = vpop.f32.mrf.mxu0
  %3620 = vmatprep.mubr.f32.mxu0 0.0
  %v3621 = vand.u32 %v2723, 4294901760
  %3622 = vmatmul.mubr.f32.gmra.mxu0 %v3621
  %v3623 = vpop.f32.mrf.mxu0
  %v3624 = vadd.f32 %v3442, %v3623
  %v3625 = vpop.f32.mrf.mxu0
  %3626 = vmatprep.mubr.f32.mxu0 0.0
  %v3627 = vand.u32 %v2726, 4294901760
  %3628 = vmatmul.mubr.f32.gmra.mxu0 %v3627
  %v3629 = vpop.f32.mrf.mxu0
  %v3630 = vadd.f32 %v3450, %v3629
  %v3631 = vpop.f32.mrf.mxu0
  %3632 = vmatprep.mubr.f32.mxu0 0.0
  %v3633 = vand.u32 %v2729, 4294901760
  %3634 = vmatmul.mubr.f32.gmra.mxu0 %v3633
  %v3635 = vpop.f32.mrf.mxu0
  %v3636 = vadd.f32 %v3458, %v3635
  %v3637 = vpop.f32.mrf.mxu0
  %3638 = vmatprep.mubr.f32.mxu0 0.0
  %v3639 = vand.u32 %v2732, 4294901760
  %3640 = vmatmul.mubr.f32.gmra.mxu0 %v3639
  %v3641 = vpop.f32.mrf.mxu0
  %v3642 = vadd.f32 %v3466, %v3641
  %v3643 = vpop.f32.mrf.mxu0
  %3644 = vmatprep.mubr.f32.mxu0 0.0
  %v3645 = vand.u32 %v2735, 4294901760
  %3646 = vmatmul.mubr.f32.gmra.mxu0 %v3645
  %v3647 = vpop.f32.mrf.mxu0
  %v3648 = vadd.f32 %v3474, %v3647
  %v3649 = vpop.f32.mrf.mxu0
  %3650 = vmatprep.mubr.f32.mxu0 0.0
  %v3651 = vand.u32 %v2738, 4294901760
  %3652 = vmatmul.mubr.f32.gmra.mxu0 %v3651
  %v3653 = vpop.f32.mrf.mxu0
  %v3654 = vadd.f32 %v3482, %v3653
  %v3655 = vpop.f32.mrf.mxu0
  %3656 = vmatprep.mubr.f32.mxu0 0.0
  %v3657 = vand.u32 %v2741, 4294901760
  %3658 = vmatmul.mubr.f32.gmra.mxu0 %v3657
  %v3659 = vpop.f32.mrf.mxu0
  %v3660 = vadd.f32 %v3490, %v3659
  %v3661 = vpop.f32.mrf.mxu0
  %3662 = vmatprep.mubr.f32.mxu0 0.0
  %v3663 = vand.u32 %v2744, 4294901760
  %3664 = vmatmul.mubr.f32.gmra.mxu0 %v3663
  %v3665 = vpop.f32.mrf.mxu0
  %v3666 = vadd.f32 %v3498, %v3665
  %v3667 = vpop.f32.mrf.mxu0
  %3668 = vmatprep.mubr.f32.mxu0 0.0
  %v3669 = vand.u32 %v2747, 4294901760
  %3670 = vmatmul.mubr.f32.gmra.mxu0 %v3669
  %v3671 = vpop.f32.mrf.mxu0
  %v3672 = vadd.f32 %v3506, %v3671
  %v3673 = vpop.f32.mrf.mxu0
  %3674 = vmatprep.mubr.f32.mxu0 0.0
  %v3675 = vand.u32 %v2750, 4294901760
  %3676 = vmatmul.mubr.f32.gmra.mxu0 %v3675
  %v3677 = vpop.f32.mrf.mxu0
  %v3678 = vadd.f32 %v3514, %v3677
  %v3679 = vpop.f32.mrf.mxu0
  %3680 = vdwg.mxu0
  %3681 = vmatprep.subr.mxu0 0.0
  %3682 = vmatpush1.msra.mxu0 0.0
  %3683 = vmatprep.subr.mxu0 0.0
  %3684 = vmatpush1.msra.mxu0 0.0
  %3685 = vmatprep.subr.mxu0 0.0
  %3686 = vmatpush1.msra.mxu0 0.0
  %3687 = vmatprep.subr.mxu0 0.0
  %3688 = vmatpush1.msra.mxu0 0.0
  %3689 = vmatprep.subr.mxu0 0.0
  %3690 = vmatpush1.msra.mxu0 0.0
  %3691 = vmatprep.subr.mxu0 0.0
  %3692 = vmatpush1.msra.mxu0 0.0
  %3693 = vmatprep.subr.mxu0 0.0
  %3694 = vmatpush1.msra.mxu0 0.0
  %3695 = vmatprep.subr.mxu0 0.0
  %3696 = vmatpush1.msra.mxu0 0.0
  %3697 = vmatprep.subr.mxu0 0.0
  %3698 = vmatpush1.msra.mxu0 0.0
  %3699 = vmatprep.subr.mxu0 0.0
  %3700 = vmatpush1.msra.mxu0 0.0
  %3701 = vmatprep.subr.mxu0 0.0
  %3702 = vmatpush1.msra.mxu0 0.0
  %3703 = vmatprep.subr.mxu0 0.0
  %3704 = vmatpush1.msra.mxu0 0.0
  %3705 = vmatprep.subr.mxu0 0.0
  %3706 = vmatpush1.msra.mxu0 0.0
  %3707 = vmatprep.subr.mxu0 0.0
  %3708 = vmatpush1.msra.mxu0 0.0
  %3709 = vmatprep.subr.mxu0 0.0
  %3710 = vmatpush1.msra.mxu0 0.0
  %3711 = vmatprep.subr.mxu0 0.0
  %v3712 = vand.u32 %v707, 4294901760
  %3713 = vmatpush1.msra.mxu0 %v3712
  %3714 = vmatprep.subr.mxu0 0.0
  %3715 = vmatpush2.msra.mxu0 0.0
  %3716 = vmatprep.subr.mxu0 0.0
  %3717 = vmatpush2.msra.mxu0 0.0
  %3718 = vmatprep.subr.mxu0 0.0
  %3719 = vmatpush2.msra.mxu0 0.0
  %3720 = vmatprep.subr.mxu0 0.0
  %3721 = vmatpush2.msra.mxu0 0.0
  %3722 = vmatprep.subr.mxu0 0.0
  %3723 = vmatpush2.msra.mxu0 0.0
  %3724 = vmatprep.subr.mxu0 0.0
  %3725 = vmatpush2.msra.mxu0 0.0
  %3726 = vmatprep.subr.mxu0 0.0
  %3727 = vmatpush2.msra.mxu0 0.0
  %3728 = vmatprep.subr.mxu0 0.0
  %3729 = vmatpush2.msra.mxu0 0.0
  %3730 = vmatprep.subr.mxu0 0.0
  %3731 = vmatpush2.msra.mxu0 0.0
  %3732 = vmatprep.subr.mxu0 0.0
  %3733 = vmatpush2.msra.mxu0 0.0
  %3734 = vmatprep.subr.mxu0 0.0
  %3735 = vmatpush2.msra.mxu0 0.0
  %3736 = vmatprep.subr.mxu0 0.0
  %3737 = vmatpush2.msra.mxu0 0.0
  %3738 = vmatprep.subr.mxu0 0.0
  %3739 = vmatpush2.msra.mxu0 0.0
  %3740 = vmatprep.subr.mxu0 0.0
  %3741 = vmatpush2.msra.mxu0 0.0
  %3742 = vmatprep.subr.mxu0 0.0
  %3743 = vmatpush2.msra.mxu0 0.0
  %3744 = vmatprep.subr.mxu0 0.0
  %3745 = vmatpush2.msra.mxu0 0.0
  %3746 = vmatprep.mubr.f32.mxu0 0.0
  %v3747 = vand.u32 %v2705, 4294901760
  %3748 = vmatmul.mubr.f32.gmra.mxu0 %v3747
  %v3749 = vpop.f32.mrf.mxu0
  %v3750 = vadd.f32 %v3588, %v3749
  %v3751 = vpop.f32.mrf.mxu0
  %3752 = vmatprep.mubr.f32.mxu0 0.0
  %v3753 = vand.u32 %v2708, 4294901760
  %3754 = vmatmul.mubr.f32.gmra.mxu0 %v3753
  %v3755 = vpop.f32.mrf.mxu0
  %v3756 = vadd.f32 %v3594, %v3755
  %v3757 = vpop.f32.mrf.mxu0
  %3758 = vmatprep.mubr.f32.mxu0 0.0
  %v3759 = vand.u32 %v2711, 4294901760
  %3760 = vmatmul.mubr.f32.gmra.mxu0 %v3759
  %v3761 = vpop.f32.mrf.mxu0
  %v3762 = vadd.f32 %v3600, %v3761
  %v3763 = vpop.f32.mrf.mxu0
  %3764 = vmatprep.mubr.f32.mxu0 0.0
  %v3765 = vand.u32 %v2714, 4294901760
  %3766 = vmatmul.mubr.f32.gmra.mxu0 %v3765
  %v3767 = vpop.f32.mrf.mxu0
  %v3768 = vadd.f32 %v3606, %v3767
  %v3769 = vpop.f32.mrf.mxu0
  %3770 = vmatprep.mubr.f32.mxu0 0.0
  %v3771 = vand.u32 %v2717, 4294901760
  %3772 = vmatmul.mubr.f32.gmra.mxu0 %v3771
  %v3773 = vpop.f32.mrf.mxu0
  %v3774 = vadd.f32 %v3612, %v3773
  %v3775 = vpop.f32.mrf.mxu0
  %3776 = vmatprep.mubr.f32.mxu0 0.0
  %v3777 = vand.u32 %v2720, 4294901760
  %3778 = vmatmul.mubr.f32.gmra.mxu0 %v3777
  %v3779 = vpop.f32.mrf.mxu0
  %v3780 = vadd.f32 %v3618, %v3779
  %v3781 = vpop.f32.mrf.mxu0
  %3782 = vmatprep.mubr.f32.mxu0 0.0
  %v3783 = vand.u32 %v2723, 4294901760
  %3784 = vmatmul.mubr.f32.gmra.mxu0 %v3783
  %v3785 = vpop.f32.mrf.mxu0
  %v3786 = vadd.f32 %v3624, %v3785
  %v3787 = vpop.f32.mrf.mxu0
  %3788 = vmatprep.mubr.f32.mxu0 0.0
  %v3789 = vand.u32 %v2726, 4294901760
  %3790 = vmatmul.mubr.f32.gmra.mxu0 %v3789
  %v3791 = vpop.f32.mrf.mxu0
  %v3792 = vadd.f32 %v3630, %v3791
  %v3793 = vpop.f32.mrf.mxu0
  %3794 = vmatprep.mubr.f32.mxu0 0.0
  %v3795 = vand.u32 %v2729, 4294901760
  %3796 = vmatmul.mubr.f32.gmra.mxu0 %v3795
  %v3797 = vpop.f32.mrf.mxu0
  %v3798 = vadd.f32 %v3636, %v3797
  %v3799 = vpop.f32.mrf.mxu0
  %3800 = vmatprep.mubr.f32.mxu0 0.0
  %v3801 = vand.u32 %v2732, 4294901760
  %3802 = vmatmul.mubr.f32.gmra.mxu0 %v3801
  %v3803 = vpop.f32.mrf.mxu0
  %v3804 = vadd.f32 %v3642, %v3803
  %v3805 = vpop.f32.mrf.mxu0
  %3806 = vmatprep.mubr.f32.mxu0 0.0
  %v3807 = vand.u32 %v2735, 4294901760
  %3808 = vmatmul.mubr.f32.gmra.mxu0 %v3807
  %v3809 = vpop.f32.mrf.mxu0
  %v3810 = vadd.f32 %v3648, %v3809
  %v3811 = vpop.f32.mrf.mxu0
  %3812 = vmatprep.mubr.f32.mxu0 0.0
  %v3813 = vand.u32 %v2738, 4294901760
  %3814 = vmatmul.mubr.f32.gmra.mxu0 %v3813
  %v3815 = vpop.f32.mrf.mxu0
  %v3816 = vadd.f32 %v3654, %v3815
  %v3817 = vpop.f32.mrf.mxu0
  %3818 = vmatprep.mubr.f32.mxu0 0.0
  %v3819 = vand.u32 %v2741, 4294901760
  %3820 = vmatmul.mubr.f32.gmra.mxu0 %v3819
  %v3821 = vpop.f32.mrf.mxu0
  %v3822 = vadd.f32 %v3660, %v3821
  %v3823 = vpop.f32.mrf.mxu0
  %3824 = vmatprep.mubr.f32.mxu0 0.0
  %v3825 = vand.u32 %v2744, 4294901760
  %3826 = vmatmul.mubr.f32.gmra.mxu0 %v3825
  %v3827 = vpop.f32.mrf.mxu0
  %v3828 = vadd.f32 %v3666, %v3827
  %v3829 = vpop.f32.mrf.mxu0
  %3830 = vmatprep.mubr.f32.mxu0 0.0
  %v3831 = vand.u32 %v2747, 4294901760
  %3832 = vmatmul.mubr.f32.gmra.mxu0 %v3831
  %v3833 = vpop.f32.mrf.mxu0
  %v3834 = vadd.f32 %v3672, %v3833
  %v3835 = vpop.f32.mrf.mxu0
  %3836 = vmatprep.mubr.f32.mxu0 0.0
  %v3837 = vand.u32 %v2750, 4294901760
  %3838 = vmatmul.mubr.f32.gmra.mxu0 %v3837
  %v3839 = vpop.f32.mrf.mxu0
  %v3840 = vadd.f32 %v3678, %v3839
  %v3841 = vpop.f32.mrf.mxu0
  %3842 = vdwg.mxu0
  %v3843 = vmax.f32 %v3750, %v3774
  %v3844 = vmax.f32 %v3756, %v3780
  %v3845 = vmax.f32 %v3762, %v3786
  %v3846 = vmax.f32 %v3768, %v3792
  %v3847 = vmax.f32 %v3843, %v3798
  %v3848 = vmax.f32 %v3844, %v3804
  %v3849 = vmax.f32 %v3845, %v3810
  %v3850 = vmax.f32 %v3846, %v3816
  %v3851 = vmax.f32 %v3847, %v3822
  %v3852 = vmax.f32 %v3848, %v3828
  %v3853 = vmax.f32 %v3849, %v3834
  %v3854 = vmax.f32 %v3850, %v3840
  %v3855 = vmax.f32 %v3851, %v3852
  %v3856 = vmax.f32 %v3853, %v3854
  %v3857 = vmax.f32 %v3855, %v3856
  %v3858 = vrot.slane %v3857, 4
  %v3859 = vmax.f32 %v3857, %v3858
  %v3860 = vrot.slane %v3859, 2
  %v3861 = vmax.f32 %v3859, %v3860
  %v3862 = vrot.slane %v3861, 1
  %v3863 = vmax.f32 %v3861, %v3862
  %v3864 = vsub.f32 %v3750, %v3863
  %v3865 = vsub.f32 %v3756, %v3863
  %v3866 = vsub.f32 %v3762, %v3863
  %v3867 = vsub.f32 %v3768, %v3863
  %v3868 = vsub.f32 %v3774, %v3863
  %v3869 = vsub.f32 %v3780, %v3863
  %v3870 = vsub.f32 %v3786, %v3863
  %v3871 = vsub.f32 %v3792, %v3863
  %v3872 = vsub.f32 %v3798, %v3863
  %v3873 = vsub.f32 %v3804, %v3863
  %v3874 = vsub.f32 %v3810, %v3863
  %v3875 = vsub.f32 %v3816, %v3863
  %v3876 = vsub.f32 %v3822, %v3863
  %v3877 = vsub.f32 %v3828, %v3863
  %v3878 = vsub.f32 %v3834, %v3863
  %v3879 = vsub.f32 %v3840, %v3863
  %v3880 = vmul.f32 %v3864, 1.442695
  %v3881 = vpow.pop %v3880
  %v3882 = vmul.f32 %v3865, 1.442695
  %v3883 = vpow.pop %v3882
  %v3884 = vmul.f32 %v3866, 1.442695
  %v3885 = vpow.pop %v3884
  %v3886 = vmul.f32 %v3867, 1.442695
  %v3887 = vpow.pop %v3886
  %v3888 = vmul.f32 %v3868, 1.442695
  %v3889 = vpow.pop %v3888
  %v3890 = vmul.f32 %v3869, 1.442695
  %v3891 = vpow.pop %v3890
  %v3892 = vmul.f32 %v3870, 1.442695
  %v3893 = vpow.pop %v3892
  %v3894 = vmul.f32 %v3871, 1.442695
  %v3895 = vpow.pop %v3894
  %v3896 = vmul.f32 %v3872, 1.442695
  %v3897 = vpow.pop %v3896
  %v3898 = vmul.f32 %v3873, 1.442695
  %v3899 = vpow.pop %v3898
  %v3900 = vmul.f32 %v3874, 1.442695
  %v3901 = vpow.pop %v3900
  %v3902 = vmul.f32 %v3875, 1.442695
  %v3903 = vpow.pop %v3902
  %v3904 = vmul.f32 %v3876, 1.442695
  %v3905 = vpow.pop %v3904
  %v3906 = vmul.f32 %v3877, 1.442695
  %v3907 = vpow.pop %v3906
  %v3908 = vmul.f32 %v3878, 1.442695
  %v3909 = vpow.pop %v3908
  %v3910 = vmul.f32 %v3879, 1.442695
  %v3911 = vpow.pop %v3910
  %v3912 = vadd.f32 %v3881, %v3883
  %v3913 = vadd.f32 %v3912, %v3885
  %v3914 = vadd.f32 %v3913, %v3887
  %v3915 = vadd.f32 %v3914, %v3889
  %v3916 = vadd.f32 %v3915, %v3891
  %v3917 = vadd.f32 %v3916, %v3893
  %v3918 = vadd.f32 %v3917, %v3895
  %v3919 = vadd.f32 %v3918, %v3897
  %v3920 = vadd.f32 %v3919, %v3899
  %v3921 = vadd.f32 %v3920, %v3901
  %v3922 = vadd.f32 %v3921, %v3903
  %v3923 = vadd.f32 %v3922, %v3905
  %v3924 = vadd.f32 %v3923, %v3907
  %v3925 = vadd.f32 %v3924, %v3909
  %v3926 = vadd.f32 %v3925, %v3911
  %v3927 = vrot.slane %v3926, 4
  %v3928 = vadd.f32 %v3926, %v3927
  %v3929 = vrot.slane %v3928, 2
  %v3930 = vadd.f32 %v3928, %v3929
  %v3931 = vrot.slane %v3930, 1
  %v3932 = vadd.f32 %v3930, %v3931
  %3933 = vmatprep.subr.mxu0 0.0
  %v3934 = vand.u32 %v3911, 4294901760
  %3935 = vmatpush1.msra.mxu0 %v3934
  %3936 = vmatprep.subr.mxu0 0.0
  %v3937 = vand.u32 %v3909, 4294901760
  %3938 = vmatpush1.msra.mxu0 %v3937
  %3939 = vmatprep.subr.mxu0 0.0
  %v3940 = vand.u32 %v3907, 4294901760
  %3941 = vmatpush1.msra.mxu0 %v3940
  %3942 = vmatprep.subr.mxu0 0.0
  %v3943 = vand.u32 %v3905, 4294901760
  %3944 = vmatpush1.msra.mxu0 %v3943
  %3945 = vmatprep.subr.mxu0 0.0
  %v3946 = vand.u32 %v3903, 4294901760
  %3947 = vmatpush1.msra.mxu0 %v3946
  %3948 = vmatprep.subr.mxu0 0.0
  %v3949 = vand.u32 %v3901, 4294901760
  %3950 = vmatpush1.msra.mxu0 %v3949
  %3951 = vmatprep.subr.mxu0 0.0
  %v3952 = vand.u32 %v3899, 4294901760
  %3953 = vmatpush1.msra.mxu0 %v3952
  %3954 = vmatprep.subr.mxu0 0.0
  %v3955 = vand.u32 %v3897, 4294901760
  %3956 = vmatpush1.msra.mxu0 %v3955
  %3957 = vmatprep.subr.mxu0 0.0
  %v3958 = vand.u32 %v3895, 4294901760
  %3959 = vmatpush1.msra.mxu0 %v3958
  %3960 = vmatprep.subr.mxu0 0.0
  %v3961 = vand.u32 %v3893, 4294901760
  %3962 = vmatpush1.msra.mxu0 %v3961
  %3963 = vmatprep.subr.mxu0 0.0
  %v3964 = vand.u32 %v3891, 4294901760
  %3965 = vmatpush1.msra.mxu0 %v3964
  %3966 = vmatprep.subr.mxu0 0.0
  %v3967 = vand.u32 %v3889, 4294901760
  %3968 = vmatpush1.msra.mxu0 %v3967
  %3969 = vmatprep.subr.mxu0 0.0
  %v3970 = vand.u32 %v3887, 4294901760
  %3971 = vmatpush1.msra.mxu0 %v3970
  %3972 = vmatprep.subr.mxu0 0.0
  %v3973 = vand.u32 %v3885, 4294901760
  %3974 = vmatpush1.msra.mxu0 %v3973
  %3975 = vmatprep.subr.mxu0 0.0
  %v3976 = vand.u32 %v3883, 4294901760
  %3977 = vmatpush1.msra.mxu0 %v3976
  %3978 = vmatprep.subr.mxu0 0.0
  %v3979 = vand.u32 %v3881, 4294901760
  %3980 = vmatpush1.msra.mxu0 %v3979
  %3981 = vmatprep.subr.mxu0 0.0
  %3982 = vmatpush2.msra.mxu0 0.0
  %3983 = vmatprep.subr.mxu0 0.0
  %3984 = vmatpush2.msra.mxu0 0.0
  %3985 = vmatprep.subr.mxu0 0.0
  %3986 = vmatpush2.msra.mxu0 0.0
  %3987 = vmatprep.subr.mxu0 0.0
  %3988 = vmatpush2.msra.mxu0 0.0
  %3989 = vmatprep.subr.mxu0 0.0
  %3990 = vmatpush2.msra.mxu0 0.0
  %3991 = vmatprep.subr.mxu0 0.0
  %3992 = vmatpush2.msra.mxu0 0.0
  %3993 = vmatprep.subr.mxu0 0.0
  %3994 = vmatpush2.msra.mxu0 0.0
  %3995 = vmatprep.subr.mxu0 0.0
  %3996 = vmatpush2.msra.mxu0 0.0
  %3997 = vmatprep.subr.mxu0 0.0
  %3998 = vmatpush2.msra.mxu0 0.0
  %3999 = vmatprep.subr.mxu0 0.0
  %4000 = vmatpush2.msra.mxu0 0.0
  %4001 = vmatprep.subr.mxu0 0.0
  %4002 = vmatpush2.msra.mxu0 0.0
  %4003 = vmatprep.subr.mxu0 0.0
  %4004 = vmatpush2.msra.mxu0 0.0
  %4005 = vmatprep.subr.mxu0 0.0
  %4006 = vmatpush2.msra.mxu0 0.0
  %4007 = vmatprep.subr.mxu0 0.0
  %4008 = vmatpush2.msra.mxu0 0.0
  %4009 = vmatprep.subr.mxu0 0.0
  %4010 = vmatpush2.msra.mxu0 0.0
  %4011 = vmatprep.subr.mxu0 0.0
  %4012 = vmatpush2.msra.mxu0 0.0
  %4013 = vmatprep.mubr.f32.mxu0 0.0
  %v4014 = vand.u32 %v731, 4294901760
  %v4015 = vsub.f32 %v731, %v4014
  %v4016 = vand.u32 %v4015, 4294901760
  %v4017 = vsub.f32 %v4015, %v4016
  %v4018 = vand.u32 %v4017, 4294901760
  %4019 = vmatmul.mubr.f32.gmra.mxu0 %v4018
  %v4020 = vpop.f32.mrf.mxu0
  %v4021 = vadd.f32 0.0, %v4020
  %v4022 = vpop.f32.mrf.mxu0
  %4023 = vdwg.mxu0
  %4024 = vmatprep.subr.mxu0 0.0
  %v4025 = vand.u32 %v3911, 4294901760
  %v4026 = vsub.f32 %v3911, %v4025
  %v4027 = vand.u32 %v4026, 4294901760
  %v4028 = vsub.f32 %v4026, %v4027
  %v4029 = vand.u32 %v4028, 4294901760
  %4030 = vmatpush1.msra.mxu0 %v4029
  %4031 = vmatprep.subr.mxu0 0.0
  %v4032 = vand.u32 %v3909, 4294901760
  %v4033 = vsub.f32 %v3909, %v4032
  %v4034 = vand.u32 %v4033, 4294901760
  %v4035 = vsub.f32 %v4033, %v4034
  %v4036 = vand.u32 %v4035, 4294901760
  %4037 = vmatpush1.msra.mxu0 %v4036
  %4038 = vmatprep.subr.mxu0 0.0
  %v4039 = vand.u32 %v3907, 4294901760
  %v4040 = vsub.f32 %v3907, %v4039
  %v4041 = vand.u32 %v4040, 4294901760
  %v4042 = vsub.f32 %v4040, %v4041
  %v4043 = vand.u32 %v4042, 4294901760
  %4044 = vmatpush1.msra.mxu0 %v4043
  %4045 = vmatprep.subr.mxu0 0.0
  %v4046 = vand.u32 %v3905, 4294901760
  %v4047 = vsub.f32 %v3905, %v4046
  %v4048 = vand.u32 %v4047, 4294901760
  %v4049 = vsub.f32 %v4047, %v4048
  %v4050 = vand.u32 %v4049, 4294901760
  %4051 = vmatpush1.msra.mxu0 %v4050
  %4052 = vmatprep.subr.mxu0 0.0
  %v4053 = vand.u32 %v3903, 4294901760
  %v4054 = vsub.f32 %v3903, %v4053
  %v4055 = vand.u32 %v4054, 4294901760
  %v4056 = vsub.f32 %v4054, %v4055
  %v4057 = vand.u32 %v4056, 4294901760
  %4058 = vmatpush1.msra.mxu0 %v4057
  %4059 = vmatprep.subr.mxu0 0.0
  %v4060 = vand.u32 %v3901, 4294901760
  %v4061 = vsub.f32 %v3901, %v4060
  %v4062 = vand.u32 %v4061, 4294901760
  %v4063 = vsub.f32 %v4061, %v4062
  %v4064 = vand.u32 %v4063, 4294901760
  %4065 = vmatpush1.msra.mxu0 %v4064
  %4066 = vmatprep.subr.mxu0 0.0
  %v4067 = vand.u32 %v3899, 4294901760
  %v4068 = vsub.f32 %v3899, %v4067
  %v4069 = vand.u32 %v4068, 4294901760
  %v4070 = vsub.f32 %v4068, %v4069
  %v4071 = vand.u32 %v4070, 4294901760
  %4072 = vmatpush1.msra.mxu0 %v4071
  %4073 = vmatprep.subr.mxu0 0.0
  %v4074 = vand.u32 %v3897, 4294901760
  %v4075 = vsub.f32 %v3897, %v4074
  %v4076 = vand.u32 %v4075, 4294901760
  %v4077 = vsub.f32 %v4075, %v4076
  %v4078 = vand.u32 %v4077, 4294901760
  %4079 = vmatpush1.msra.mxu0 %v4078
  %4080 = vmatprep.subr.mxu0 0.0
  %v4081 = vand.u32 %v3895, 4294901760
  %v4082 = vsub.f32 %v3895, %v4081
  %v4083 = vand.u32 %v4082, 4294901760
  %v4084 = vsub.f32 %v4082, %v4083
  %v4085 = vand.u32 %v4084, 4294901760
  %4086 = vmatpush1.msra.mxu0 %v4085
  %4087 = vmatprep.subr.mxu0 0.0
  %v4088 = vand.u32 %v3893, 4294901760
  %v4089 = vsub.f32 %v3893, %v4088
  %v4090 = vand.u32 %v4089, 4294901760
  %v4091 = vsub.f32 %v4089, %v4090
  %v4092 = vand.u32 %v4091, 4294901760
  %4093 = vmatpush1.msra.mxu0 %v4092
  %4094 = vmatprep.subr.mxu0 0.0
  %v4095 = vand.u32 %v3891, 4294901760
  %v4096 = vsub.f32 %v3891, %v4095
  %v4097 = vand.u32 %v4096, 4294901760
  %v4098 = vsub.f32 %v4096, %v4097
  %v4099 = vand.u32 %v4098, 4294901760
  %4100 = vmatpush1.msra.mxu0 %v4099
  %4101 = vmatprep.subr.mxu0 0.0
  %v4102 = vand.u32 %v3889, 4294901760
  %v4103 = vsub.f32 %v3889, %v4102
  %v4104 = vand.u32 %v4103, 4294901760
  %v4105 = vsub.f32 %v4103, %v4104
  %v4106 = vand.u32 %v4105, 4294901760
  %4107 = vmatpush1.msra.mxu0 %v4106
  %4108 = vmatprep.subr.mxu0 0.0
  %v4109 = vand.u32 %v3887, 4294901760
  %v4110 = vsub.f32 %v3887, %v4109
  %v4111 = vand.u32 %v4110, 4294901760
  %v4112 = vsub.f32 %v4110, %v4111
  %v4113 = vand.u32 %v4112, 4294901760
  %4114 = vmatpush1.msra.mxu0 %v4113
  %4115 = vmatprep.subr.mxu0 0.0
  %v4116 = vand.u32 %v3885, 4294901760
  %v4117 = vsub.f32 %v3885, %v4116
  %v4118 = vand.u32 %v4117, 4294901760
  %v4119 = vsub.f32 %v4117, %v4118
  %v4120 = vand.u32 %v4119, 4294901760
  %4121 = vmatpush1.msra.mxu0 %v4120
  %4122 = vmatprep.subr.mxu0 0.0
  %v4123 = vand.u32 %v3883, 4294901760
  %v4124 = vsub.f32 %v3883, %v4123
  %v4125 = vand.u32 %v4124, 4294901760
  %v4126 = vsub.f32 %v4124, %v4125
  %v4127 = vand.u32 %v4126, 4294901760
  %4128 = vmatpush1.msra.mxu0 %v4127
  %4129 = vmatprep.subr.mxu0 0.0
  %v4130 = vand.u32 %v3881, 4294901760
  %v4131 = vsub.f32 %v3881, %v4130
  %v4132 = vand.u32 %v4131, 4294901760
  %v4133 = vsub.f32 %v4131, %v4132
  %v4134 = vand.u32 %v4133, 4294901760
  %4135 = vmatpush1.msra.mxu0 %v4134
  %4136 = vmatprep.subr.mxu0 0.0
  %4137 = vmatpush2.msra.mxu0 0.0
  %4138 = vmatprep.subr.mxu0 0.0
  %4139 = vmatpush2.msra.mxu0 0.0
  %4140 = vmatprep.subr.mxu0 0.0
  %4141 = vmatpush2.msra.mxu0 0.0
  %4142 = vmatprep.subr.mxu0 0.0
  %4143 = vmatpush2.msra.mxu0 0.0
  %4144 = vmatprep.subr.mxu0 0.0
  %4145 = vmatpush2.msra.mxu0 0.0
  %4146 = vmatprep.subr.mxu0 0.0
  %4147 = vmatpush2.msra.mxu0 0.0
  %4148 = vmatprep.subr.mxu0 0.0
  %4149 = vmatpush2.msra.mxu0 0.0
  %4150 = vmatprep.subr.mxu0 0.0
  %4151 = vmatpush2.msra.mxu0 0.0
  %4152 = vmatprep.subr.mxu0 0.0
  %4153 = vmatpush2.msra.mxu0 0.0
  %4154 = vmatprep.subr.mxu0 0.0
  %4155 = vmatpush2.msra.mxu0 0.0
  %4156 = vmatprep.subr.mxu0 0.0
  %4157 = vmatpush2.msra.mxu0 0.0
  %4158 = vmatprep.subr.mxu0 0.0
  %4159 = vmatpush2.msra.mxu0 0.0
  %4160 = vmatprep.subr.mxu0 0.0
  %4161 = vmatpush2.msra.mxu0 0.0
  %4162 = vmatprep.subr.mxu0 0.0
  %4163 = vmatpush2.msra.mxu0 0.0
  %4164 = vmatprep.subr.mxu0 0.0
  %4165 = vmatpush2.msra.mxu0 0.0
  %4166 = vmatprep.subr.mxu0 0.0
  %4167 = vmatpush2.msra.mxu0 0.0
  %4168 = vmatprep.mubr.f32.mxu0 0.0
  %v4169 = vand.u32 %v731, 4294901760
  %4170 = vmatmul.mubr.f32.gmra.mxu0 %v4169
  %v4171 = vpop.f32.mrf.mxu0
  %v4172 = vadd.f32 %v4021, %v4171
  %v4173 = vpop.f32.mrf.mxu0
  %4174 = vdwg.mxu0
  %4175 = vmatprep.subr.mxu0 0.0
  %v4176 = vand.u32 %v3911, 4294901760
  %v4177 = vsub.f32 %v3911, %v4176
  %4178 = vmatpush1.msra.mxu0 %v4177
  %4179 = vmatprep.subr.mxu0 0.0
  %v4180 = vand.u32 %v3909, 4294901760
  %v4181 = vsub.f32 %v3909, %v4180
  %4182 = vmatpush1.msra.mxu0 %v4181
  %4183 = vmatprep.subr.mxu0 0.0
  %v4184 = vand.u32 %v3907, 4294901760
  %v4185 = vsub.f32 %v3907, %v4184
  %4186 = vmatpush1.msra.mxu0 %v4185
  %4187 = vmatprep.subr.mxu0 0.0
  %v4188 = vand.u32 %v3905, 4294901760
  %v4189 = vsub.f32 %v3905, %v4188
  %4190 = vmatpush1.msra.mxu0 %v4189
  %4191 = vmatprep.subr.mxu0 0.0
  %v4192 = vand.u32 %v3903, 4294901760
  %v4193 = vsub.f32 %v3903, %v4192
  %4194 = vmatpush1.msra.mxu0 %v4193
  %4195 = vmatprep.subr.mxu0 0.0
  %v4196 = vand.u32 %v3901, 4294901760
  %v4197 = vsub.f32 %v3901, %v4196
  %4198 = vmatpush1.msra.mxu0 %v4197
  %4199 = vmatprep.subr.mxu0 0.0
  %v4200 = vand.u32 %v3899, 4294901760
  %v4201 = vsub.f32 %v3899, %v4200
  %4202 = vmatpush1.msra.mxu0 %v4201
  %4203 = vmatprep.subr.mxu0 0.0
  %v4204 = vand.u32 %v3897, 4294901760
  %v4205 = vsub.f32 %v3897, %v4204
  %4206 = vmatpush1.msra.mxu0 %v4205
  %4207 = vmatprep.subr.mxu0 0.0
  %v4208 = vand.u32 %v3895, 4294901760
  %v4209 = vsub.f32 %v3895, %v4208
  %4210 = vmatpush1.msra.mxu0 %v4209
  %4211 = vmatprep.subr.mxu0 0.0
  %v4212 = vand.u32 %v3893, 4294901760
  %v4213 = vsub.f32 %v3893, %v4212
  %4214 = vmatpush1.msra.mxu0 %v4213
  %4215 = vmatprep.subr.mxu0 0.0
  %v4216 = vand.u32 %v3891, 4294901760
  %v4217 = vsub.f32 %v3891, %v4216
  %4218 = vmatpush1.msra.mxu0 %v4217
  %4219 = vmatprep.subr.mxu0 0.0
  %v4220 = vand.u32 %v3889, 4294901760
  %v4221 = vsub.f32 %v3889, %v4220
  %4222 = vmatpush1.msra.mxu0 %v4221
  %4223 = vmatprep.subr.mxu0 0.0
  %v4224 = vand.u32 %v3887, 4294901760
  %v4225 = vsub.f32 %v3887, %v4224
  %4226 = vmatpush1.msra.mxu0 %v4225
  %4227 = vmatprep.subr.mxu0 0.0
  %v4228 = vand.u32 %v3885, 4294901760
  %v4229 = vsub.f32 %v3885, %v4228
  %4230 = vmatpush1.msra.mxu0 %v4229
  %4231 = vmatprep.subr.mxu0 0.0
  %v4232 = vand.u32 %v3883, 4294901760
  %v4233 = vsub.f32 %v3883, %v4232
  %4234 = vmatpush1.msra.mxu0 %v4233
  %4235 = vmatprep.subr.mxu0 0.0
  %v4236 = vand.u32 %v3881, 4294901760
  %v4237 = vsub.f32 %v3881, %v4236
  %4238 = vmatpush1.msra.mxu0 %v4237
  %4239 = vmatprep.subr.mxu0 0.0
  %4240 = vmatpush2.msra.mxu0 0.0
  %4241 = vmatprep.subr.mxu0 0.0
  %4242 = vmatpush2.msra.mxu0 0.0
  %4243 = vmatprep.subr.mxu0 0.0
  %4244 = vmatpush2.msra.mxu0 0.0
  %4245 = vmatprep.subr.mxu0 0.0
  %4246 = vmatpush2.msra.mxu0 0.0
  %4247 = vmatprep.subr.mxu0 0.0
  %4248 = vmatpush2.msra.mxu0 0.0
  %4249 = vmatprep.subr.mxu0 0.0
  %4250 = vmatpush2.msra.mxu0 0.0
  %4251 = vmatprep.subr.mxu0 0.0
  %4252 = vmatpush2.msra.mxu0 0.0
  %4253 = vmatprep.subr.mxu0 0.0
  %4254 = vmatpush2.msra.mxu0 0.0
  %4255 = vmatprep.subr.mxu0 0.0
  %4256 = vmatpush2.msra.mxu0 0.0
  %4257 = vmatprep.subr.mxu0 0.0
  %4258 = vmatpush2.msra.mxu0 0.0
  %4259 = vmatprep.subr.mxu0 0.0
  %4260 = vmatpush2.msra.mxu0 0.0
  %4261 = vmatprep.subr.mxu0 0.0
  %4262 = vmatpush2.msra.mxu0 0.0
  %4263 = vmatprep.subr.mxu0 0.0
  %4264 = vmatpush2.msra.mxu0 0.0
  %4265 = vmatprep.subr.mxu0 0.0
  %4266 = vmatpush2.msra.mxu0 0.0
  %4267 = vmatprep.subr.mxu0 0.0
  %4268 = vmatpush2.msra.mxu0 0.0
  %4269 = vmatprep.subr.mxu0 0.0
  %4270 = vmatpush2.msra.mxu0 0.0
  %4271 = vmatprep.mubr.f32.mxu0 0.0
  %v4272 = vand.u32 %v731, 4294901760
  %v4273 = vsub.f32 %v731, %v4272
  %4274 = vmatmul.mubr.f32.gmra.mxu0 %v4273
  %v4275 = vpop.f32.mrf.mxu0
  %v4276 = vadd.f32 %v4172, %v4275
  %v4277 = vpop.f32.mrf.mxu0
  %4278 = vdwg.mxu0
  %4279 = vmatprep.subr.mxu0 0.0
  %v4280 = vand.u32 %v3911, 4294901760
  %4281 = vmatpush1.msra.mxu0 %v4280
  %4282 = vmatprep.subr.mxu0 0.0
  %v4283 = vand.u32 %v3909, 4294901760
  %4284 = vmatpush1.msra.mxu0 %v4283
  %4285 = vmatprep.subr.mxu0 0.0
  %v4286 = vand.u32 %v3907, 4294901760
  %4287 = vmatpush1.msra.mxu0 %v4286
  %4288 = vmatprep.subr.mxu0 0.0
  %v4289 = vand.u32 %v3905, 4294901760
  %4290 = vmatpush1.msra.mxu0 %v4289
  %4291 = vmatprep.subr.mxu0 0.0
  %v4292 = vand.u32 %v3903, 4294901760
  %4293 = vmatpush1.msra.mxu0 %v4292
  %4294 = vmatprep.subr.mxu0 0.0
  %v4295 = vand.u32 %v3901, 4294901760
  %4296 = vmatpush1.msra.mxu0 %v4295
  %4297 = vmatprep.subr.mxu0 0.0
  %v4298 = vand.u32 %v3899, 4294901760
  %4299 = vmatpush1.msra.mxu0 %v4298
  %4300 = vmatprep.subr.mxu0 0.0
  %v4301 = vand.u32 %v3897, 4294901760
  %4302 = vmatpush1.msra.mxu0 %v4301
  %4303 = vmatprep.subr.mxu0 0.0
  %v4304 = vand.u32 %v3895, 4294901760
  %4305 = vmatpush1.msra.mxu0 %v4304
  %4306 = vmatprep.subr.mxu0 0.0
  %v4307 = vand.u32 %v3893, 4294901760
  %4308 = vmatpush1.msra.mxu0 %v4307
  %4309 = vmatprep.subr.mxu0 0.0
  %v4310 = vand.u32 %v3891, 4294901760
  %4311 = vmatpush1.msra.mxu0 %v4310
  %4312 = vmatprep.subr.mxu0 0.0
  %v4313 = vand.u32 %v3889, 4294901760
  %4314 = vmatpush1.msra.mxu0 %v4313
  %4315 = vmatprep.subr.mxu0 0.0
  %v4316 = vand.u32 %v3887, 4294901760
  %4317 = vmatpush1.msra.mxu0 %v4316
  %4318 = vmatprep.subr.mxu0 0.0
  %v4319 = vand.u32 %v3885, 4294901760
  %4320 = vmatpush1.msra.mxu0 %v4319
  %4321 = vmatprep.subr.mxu0 0.0
  %v4322 = vand.u32 %v3883, 4294901760
  %4323 = vmatpush1.msra.mxu0 %v4322
  %4324 = vmatprep.subr.mxu0 0.0
  %v4325 = vand.u32 %v3881, 4294901760
  %4326 = vmatpush1.msra.mxu0 %v4325
  %4327 = vmatprep.subr.mxu0 0.0
  %4328 = vmatpush2.msra.mxu0 0.0
  %4329 = vmatprep.subr.mxu0 0.0
  %4330 = vmatpush2.msra.mxu0 0.0
  %4331 = vmatprep.subr.mxu0 0.0
  %4332 = vmatpush2.msra.mxu0 0.0
  %4333 = vmatprep.subr.mxu0 0.0
  %4334 = vmatpush2.msra.mxu0 0.0
  %4335 = vmatprep.subr.mxu0 0.0
  %4336 = vmatpush2.msra.mxu0 0.0
  %4337 = vmatprep.subr.mxu0 0.0
  %4338 = vmatpush2.msra.mxu0 0.0
  %4339 = vmatprep.subr.mxu0 0.0
  %4340 = vmatpush2.msra.mxu0 0.0
  %4341 = vmatprep.subr.mxu0 0.0
  %4342 = vmatpush2.msra.mxu0 0.0
  %4343 = vmatprep.subr.mxu0 0.0
  %4344 = vmatpush2.msra.mxu0 0.0
  %4345 = vmatprep.subr.mxu0 0.0
  %4346 = vmatpush2.msra.mxu0 0.0
  %4347 = vmatprep.subr.mxu0 0.0
  %4348 = vmatpush2.msra.mxu0 0.0
  %4349 = vmatprep.subr.mxu0 0.0
  %4350 = vmatpush2.msra.mxu0 0.0
  %4351 = vmatprep.subr.mxu0 0.0
  %4352 = vmatpush2.msra.mxu0 0.0
  %4353 = vmatprep.subr.mxu0 0.0
  %4354 = vmatpush2.msra.mxu0 0.0
  %4355 = vmatprep.subr.mxu0 0.0
  %4356 = vmatpush2.msra.mxu0 0.0
  %4357 = vmatprep.subr.mxu0 0.0
  %4358 = vmatpush2.msra.mxu0 0.0
  %4359 = vmatprep.mubr.f32.mxu0 0.0
  %v4360 = vand.u32 %v731, 4294901760
  %v4361 = vsub.f32 %v731, %v4360
  %v4362 = vand.u32 %v4361, 4294901760
  %4363 = vmatmul.mubr.f32.gmra.mxu0 %v4362
  %v4364 = vpop.f32.mrf.mxu0
  %v4365 = vadd.f32 %v4276, %v4364
  %v4366 = vpop.f32.mrf.mxu0
  %4367 = vdwg.mxu0
  %4368 = vmatprep.subr.mxu0 0.0
  %v4369 = vand.u32 %v3911, 4294901760
  %v4370 = vsub.f32 %v3911, %v4369
  %v4371 = vand.u32 %v4370, 4294901760
  %4372 = vmatpush1.msra.mxu0 %v4371
  %4373 = vmatprep.subr.mxu0 0.0
  %v4374 = vand.u32 %v3909, 4294901760
  %v4375 = vsub.f32 %v3909, %v4374
  %v4376 = vand.u32 %v4375, 4294901760
  %4377 = vmatpush1.msra.mxu0 %v4376
  %4378 = vmatprep.subr.mxu0 0.0
  %v4379 = vand.u32 %v3907, 4294901760
  %v4380 = vsub.f32 %v3907, %v4379
  %v4381 = vand.u32 %v4380, 4294901760
  %4382 = vmatpush1.msra.mxu0 %v4381
  %4383 = vmatprep.subr.mxu0 0.0
  %v4384 = vand.u32 %v3905, 4294901760
  %v4385 = vsub.f32 %v3905, %v4384
  %v4386 = vand.u32 %v4385, 4294901760
  %4387 = vmatpush1.msra.mxu0 %v4386
  %4388 = vmatprep.subr.mxu0 0.0
  %v4389 = vand.u32 %v3903, 4294901760
  %v4390 = vsub.f32 %v3903, %v4389
  %v4391 = vand.u32 %v4390, 4294901760
  %4392 = vmatpush1.msra.mxu0 %v4391
  %4393 = vmatprep.subr.mxu0 0.0
  %v4394 = vand.u32 %v3901, 4294901760
  %v4395 = vsub.f32 %v3901, %v4394
  %v4396 = vand.u32 %v4395, 4294901760
  %4397 = vmatpush1.msra.mxu0 %v4396
  %4398 = vmatprep.subr.mxu0 0.0
  %v4399 = vand.u32 %v3899, 4294901760
  %v4400 = vsub.f32 %v3899, %v4399
  %v4401 = vand.u32 %v4400, 4294901760
  %4402 = vmatpush1.msra.mxu0 %v4401
  %4403 = vmatprep.subr.mxu0 0.0
  %v4404 = vand.u32 %v3897, 4294901760
  %v4405 = vsub.f32 %v3897, %v4404
  %v4406 = vand.u32 %v4405, 4294901760
  %4407 = vmatpush1.msra.mxu0 %v4406
  %4408 = vmatprep.subr.mxu0 0.0
  %v4409 = vand.u32 %v3895, 4294901760
  %v4410 = vsub.f32 %v3895, %v4409
  %v4411 = vand.u32 %v4410, 4294901760
  %4412 = vmatpush1.msra.mxu0 %v4411
  %4413 = vmatprep.subr.mxu0 0.0
  %v4414 = vand.u32 %v3893, 4294901760
  %v4415 = vsub.f32 %v3893, %v4414
  %v4416 = vand.u32 %v4415, 4294901760
  %4417 = vmatpush1.msra.mxu0 %v4416
  %4418 = vmatprep.subr.mxu0 0.0
  %v4419 = vand.u32 %v3891, 4294901760
  %v4420 = vsub.f32 %v3891, %v4419
  %v4421 = vand.u32 %v4420, 4294901760
  %4422 = vmatpush1.msra.mxu0 %v4421
  %4423 = vmatprep.subr.mxu0 0.0
  %v4424 = vand.u32 %v3889, 4294901760
  %v4425 = vsub.f32 %v3889, %v4424
  %v4426 = vand.u32 %v4425, 4294901760
  %4427 = vmatpush1.msra.mxu0 %v4426
  %4428 = vmatprep.subr.mxu0 0.0
  %v4429 = vand.u32 %v3887, 4294901760
  %v4430 = vsub.f32 %v3887, %v4429
  %v4431 = vand.u32 %v4430, 4294901760
  %4432 = vmatpush1.msra.mxu0 %v4431
  %4433 = vmatprep.subr.mxu0 0.0
  %v4434 = vand.u32 %v3885, 4294901760
  %v4435 = vsub.f32 %v3885, %v4434
  %v4436 = vand.u32 %v4435, 4294901760
  %4437 = vmatpush1.msra.mxu0 %v4436
  %4438 = vmatprep.subr.mxu0 0.0
  %v4439 = vand.u32 %v3883, 4294901760
  %v4440 = vsub.f32 %v3883, %v4439
  %v4441 = vand.u32 %v4440, 4294901760
  %4442 = vmatpush1.msra.mxu0 %v4441
  %4443 = vmatprep.subr.mxu0 0.0
  %v4444 = vand.u32 %v3881, 4294901760
  %v4445 = vsub.f32 %v3881, %v4444
  %v4446 = vand.u32 %v4445, 4294901760
  %4447 = vmatpush1.msra.mxu0 %v4446
  %4448 = vmatprep.subr.mxu0 0.0
  %4449 = vmatpush2.msra.mxu0 0.0
  %4450 = vmatprep.subr.mxu0 0.0
  %4451 = vmatpush2.msra.mxu0 0.0
  %4452 = vmatprep.subr.mxu0 0.0
  %4453 = vmatpush2.msra.mxu0 0.0
  %4454 = vmatprep.subr.mxu0 0.0
  %4455 = vmatpush2.msra.mxu0 0.0
  %4456 = vmatprep.subr.mxu0 0.0
  %4457 = vmatpush2.msra.mxu0 0.0
  %4458 = vmatprep.subr.mxu0 0.0
  %4459 = vmatpush2.msra.mxu0 0.0
  %4460 = vmatprep.subr.mxu0 0.0
  %4461 = vmatpush2.msra.mxu0 0.0
  %4462 = vmatprep.subr.mxu0 0.0
  %4463 = vmatpush2.msra.mxu0 0.0
  %4464 = vmatprep.subr.mxu0 0.0
  %4465 = vmatpush2.msra.mxu0 0.0
  %4466 = vmatprep.subr.mxu0 0.0
  %4467 = vmatpush2.msra.mxu0 0.0
  %4468 = vmatprep.subr.mxu0 0.0
  %4469 = vmatpush2.msra.mxu0 0.0
  %4470 = vmatprep.subr.mxu0 0.0
  %4471 = vmatpush2.msra.mxu0 0.0
  %4472 = vmatprep.subr.mxu0 0.0
  %4473 = vmatpush2.msra.mxu0 0.0
  %4474 = vmatprep.subr.mxu0 0.0
  %4475 = vmatpush2.msra.mxu0 0.0
  %4476 = vmatprep.subr.mxu0 0.0
  %4477 = vmatpush2.msra.mxu0 0.0
  %4478 = vmatprep.subr.mxu0 0.0
  %4479 = vmatpush2.msra.mxu0 0.0
  %4480 = vmatprep.mubr.f32.mxu0 0.0
  %v4481 = vand.u32 %v731, 4294901760
  %4482 = vmatmul.mubr.f32.gmra.mxu0 %v4481
  %v4483 = vpop.f32.mrf.mxu0
  %v4484 = vadd.f32 %v4365, %v4483
  %v4485 = vpop.f32.mrf.mxu0
  %4486 = vdwg.mxu0
  %4487 = vmatprep.subr.mxu0 0.0
  %v4488 = vand.u32 %v3911, 4294901760
  %4489 = vmatpush1.msra.mxu0 %v4488
  %4490 = vmatprep.subr.mxu0 0.0
  %v4491 = vand.u32 %v3909, 4294901760
  %4492 = vmatpush1.msra.mxu0 %v4491
  %4493 = vmatprep.subr.mxu0 0.0
  %v4494 = vand.u32 %v3907, 4294901760
  %4495 = vmatpush1.msra.mxu0 %v4494
  %4496 = vmatprep.subr.mxu0 0.0
  %v4497 = vand.u32 %v3905, 4294901760
  %4498 = vmatpush1.msra.mxu0 %v4497
  %4499 = vmatprep.subr.mxu0 0.0
  %v4500 = vand.u32 %v3903, 4294901760
  %4501 = vmatpush1.msra.mxu0 %v4500
  %4502 = vmatprep.subr.mxu0 0.0
  %v4503 = vand.u32 %v3901, 4294901760
  %4504 = vmatpush1.msra.mxu0 %v4503
  %4505 = vmatprep.subr.mxu0 0.0
  %v4506 = vand.u32 %v3899, 4294901760
  %4507 = vmatpush1.msra.mxu0 %v4506
  %4508 = vmatprep.subr.mxu0 0.0
  %v4509 = vand.u32 %v3897, 4294901760
  %4510 = vmatpush1.msra.mxu0 %v4509
  %4511 = vmatprep.subr.mxu0 0.0
  %v4512 = vand.u32 %v3895, 4294901760
  %4513 = vmatpush1.msra.mxu0 %v4512
  %4514 = vmatprep.subr.mxu0 0.0
  %v4515 = vand.u32 %v3893, 4294901760
  %4516 = vmatpush1.msra.mxu0 %v4515
  %4517 = vmatprep.subr.mxu0 0.0
  %v4518 = vand.u32 %v3891, 4294901760
  %4519 = vmatpush1.msra.mxu0 %v4518
  %4520 = vmatprep.subr.mxu0 0.0
  %v4521 = vand.u32 %v3889, 4294901760
  %4522 = vmatpush1.msra.mxu0 %v4521
  %4523 = vmatprep.subr.mxu0 0.0
  %v4524 = vand.u32 %v3887, 4294901760
  %4525 = vmatpush1.msra.mxu0 %v4524
  %4526 = vmatprep.subr.mxu0 0.0
  %v4527 = vand.u32 %v3885, 4294901760
  %4528 = vmatpush1.msra.mxu0 %v4527
  %4529 = vmatprep.subr.mxu0 0.0
  %v4530 = vand.u32 %v3883, 4294901760
  %4531 = vmatpush1.msra.mxu0 %v4530
  %4532 = vmatprep.subr.mxu0 0.0
  %v4533 = vand.u32 %v3881, 4294901760
  %4534 = vmatpush1.msra.mxu0 %v4533
  %4535 = vmatprep.subr.mxu0 0.0
  %4536 = vmatpush2.msra.mxu0 0.0
  %4537 = vmatprep.subr.mxu0 0.0
  %4538 = vmatpush2.msra.mxu0 0.0
  %4539 = vmatprep.subr.mxu0 0.0
  %4540 = vmatpush2.msra.mxu0 0.0
  %4541 = vmatprep.subr.mxu0 0.0
  %4542 = vmatpush2.msra.mxu0 0.0
  %4543 = vmatprep.subr.mxu0 0.0
  %4544 = vmatpush2.msra.mxu0 0.0
  %4545 = vmatprep.subr.mxu0 0.0
  %4546 = vmatpush2.msra.mxu0 0.0
  %4547 = vmatprep.subr.mxu0 0.0
  %4548 = vmatpush2.msra.mxu0 0.0
  %4549 = vmatprep.subr.mxu0 0.0
  %4550 = vmatpush2.msra.mxu0 0.0
  %4551 = vmatprep.subr.mxu0 0.0
  %4552 = vmatpush2.msra.mxu0 0.0
  %4553 = vmatprep.subr.mxu0 0.0
  %4554 = vmatpush2.msra.mxu0 0.0
  %4555 = vmatprep.subr.mxu0 0.0
  %4556 = vmatpush2.msra.mxu0 0.0
  %4557 = vmatprep.subr.mxu0 0.0
  %4558 = vmatpush2.msra.mxu0 0.0
  %4559 = vmatprep.subr.mxu0 0.0
  %4560 = vmatpush2.msra.mxu0 0.0
  %4561 = vmatprep.subr.mxu0 0.0
  %4562 = vmatpush2.msra.mxu0 0.0
  %4563 = vmatprep.subr.mxu0 0.0
  %4564 = vmatpush2.msra.mxu0 0.0
  %4565 = vmatprep.subr.mxu0 0.0
  %4566 = vmatpush2.msra.mxu0 0.0
  %4567 = vmatprep.mubr.f32.mxu0 0.0
  %v4568 = vand.u32 %v731, 4294901760
  %4569 = vmatmul.mubr.f32.gmra.mxu0 %v4568
  %v4570 = vpop.f32.mrf.mxu0
  %v4571 = vadd.f32 %v4484, %v4570
  %v4572 = vpop.f32.mrf.mxu0
  %4573 = vdwg.mxu0
  %v4574 = vrcp.pop %v3932
  %v4575 = vmul.f32 %v4571, %v4574
  %4577 = vset.pattern.permute.xlu0 20
  %4578 = vperm.xlu0 %4577, %v23
  %v4579 = vpop.permute.xlu0 %4578
  %vm4581 = vcmask 130048
  %v4582 = vsel %vm4581, %v23, 0
  %4584 = vmatprep.subr.mxu0 0.0
  %4585 = vmatpush1.msra.mxu0 0.0
  %4586 = vmatprep.subr.mxu0 0.0
  %4587 = vmatpush1.msra.mxu0 0.0
  %4588 = vmatprep.subr.mxu0 0.0
  %4589 = vmatpush1.msra.mxu0 0.0
  %4590 = vmatprep.subr.mxu0 0.0
  %4591 = vmatpush1.msra.mxu0 0.0
  %4592 = vmatprep.subr.mxu0 0.0
  %4593 = vmatpush1.msra.mxu0 0.0
  %4594 = vmatprep.subr.mxu0 0.0
  %4595 = vmatpush1.msra.mxu0 0.0
  %4596 = vmatprep.subr.mxu0 0.0
  %4597 = vmatpush1.msra.mxu0 0.0
  %4598 = vmatprep.subr.mxu0 0.0
  %4599 = vmatpush1.msra.mxu0 0.0
  %4600 = vmatprep.subr.mxu0 0.0
  %4601 = vmatpush1.msra.mxu0 0.0
  %4602 = vmatprep.subr.mxu0 0.0
  %4603 = vmatpush1.msra.mxu0 0.0
  %4604 = vmatprep.subr.mxu0 0.0
  %4605 = vmatpush1.msra.mxu0 0.0
  %4606 = vmatprep.subr.mxu0 0.0
  %4607 = vmatpush1.msra.mxu0 0.0
  %4608 = vmatprep.subr.mxu0 0.0
  %4609 = vmatpush1.msra.mxu0 0.0
  %4610 = vmatprep.subr.mxu0 0.0
  %4611 = vmatpush1.msra.mxu0 0.0
  %4612 = vmatprep.subr.mxu0 0.0
  %v4613 = vand.u32 %v4575, 4294901760
  %4614 = vmatpush1.msra.mxu0 %v4613
  %4615 = vmatprep.subr.mxu0 0.0
  %v4616 = vand.u32 %v2654, 4294901760
  %4617 = vmatpush1.msra.mxu0 %v4616
  %4618 = vmatprep.subr.mxu0 0.0
  %4619 = vmatpush2.msra.mxu0 0.0
  %4620 = vmatprep.subr.mxu0 0.0
  %4621 = vmatpush2.msra.mxu0 0.0
  %4622 = vmatprep.subr.mxu0 0.0
  %4623 = vmatpush2.msra.mxu0 0.0
  %4624 = vmatprep.subr.mxu0 0.0
  %4625 = vmatpush2.msra.mxu0 0.0
  %4626 = vmatprep.subr.mxu0 0.0
  %4627 = vmatpush2.msra.mxu0 0.0
  %4628 = vmatprep.subr.mxu0 0.0
  %4629 = vmatpush2.msra.mxu0 0.0
  %4630 = vmatprep.subr.mxu0 0.0
  %4631 = vmatpush2.msra.mxu0 0.0
  %4632 = vmatprep.subr.mxu0 0.0
  %4633 = vmatpush2.msra.mxu0 0.0
  %4634 = vmatprep.subr.mxu0 0.0
  %4635 = vmatpush2.msra.mxu0 0.0
  %4636 = vmatprep.subr.mxu0 0.0
  %4637 = vmatpush2.msra.mxu0 0.0
  %4638 = vmatprep.subr.mxu0 0.0
  %4639 = vmatpush2.msra.mxu0 0.0
  %4640 = vmatprep.subr.mxu0 0.0
  %4641 = vmatpush2.msra.mxu0 0.0
  %4642 = vmatprep.subr.mxu0 0.0
  %4643 = vmatpush2.msra.mxu0 0.0
  %4644 = vmatprep.subr.mxu0 0.0
  %4645 = vmatpush2.msra.mxu0 0.0
  %4646 = vmatprep.subr.mxu0 0.0
  %4647 = vmatpush2.msra.mxu0 0.0
  %4648 = vmatprep.subr.mxu0 0.0
  %4649 = vmatpush2.msra.mxu0 0.0
  %4650 = vmatprep.mubr.f32.mxu0 0.0
  %v4651 = vand.u32 %v4582, 4294901760
  %v4652 = vsub.f32 %v4582, %v4651
  %v4653 = vand.u32 %v4652, 4294901760
  %v4654 = vsub.f32 %v4652, %v4653
  %v4655 = vand.u32 %v4654, 4294901760
  %4656 = vmatmul.mubr.f32.gmra.mxu0 %v4655
  %v4657 = vpop.f32.mrf.mxu0
  %v4658 = vadd.f32 %v4579, %v4657
  %v4659 = vpop.f32.mrf.mxu0
  %4660 = vdwg.mxu0
  %4661 = vmatprep.subr.mxu0 0.0
  %4662 = vmatpush1.msra.mxu0 0.0
  %4663 = vmatprep.subr.mxu0 0.0
  %4664 = vmatpush1.msra.mxu0 0.0
  %4665 = vmatprep.subr.mxu0 0.0
  %4666 = vmatpush1.msra.mxu0 0.0
  %4667 = vmatprep.subr.mxu0 0.0
  %4668 = vmatpush1.msra.mxu0 0.0
  %4669 = vmatprep.subr.mxu0 0.0
  %4670 = vmatpush1.msra.mxu0 0.0
  %4671 = vmatprep.subr.mxu0 0.0
  %4672 = vmatpush1.msra.mxu0 0.0
  %4673 = vmatprep.subr.mxu0 0.0
  %4674 = vmatpush1.msra.mxu0 0.0
  %4675 = vmatprep.subr.mxu0 0.0
  %4676 = vmatpush1.msra.mxu0 0.0
  %4677 = vmatprep.subr.mxu0 0.0
  %4678 = vmatpush1.msra.mxu0 0.0
  %4679 = vmatprep.subr.mxu0 0.0
  %4680 = vmatpush1.msra.mxu0 0.0
  %4681 = vmatprep.subr.mxu0 0.0
  %4682 = vmatpush1.msra.mxu0 0.0
  %4683 = vmatprep.subr.mxu0 0.0
  %4684 = vmatpush1.msra.mxu0 0.0
  %4685 = vmatprep.subr.mxu0 0.0
  %4686 = vmatpush1.msra.mxu0 0.0
  %4687 = vmatprep.subr.mxu0 0.0
  %4688 = vmatpush1.msra.mxu0 0.0
  %4689 = vmatprep.subr.mxu0 0.0
  %v4690 = vand.u32 %v4575, 4294901760
  %v4691 = vsub.f32 %v4575, %v4690
  %v4692 = vand.u32 %v4691, 4294901760
  %v4693 = vsub.f32 %v4691, %v4692
  %v4694 = vand.u32 %v4693, 4294901760
  %4695 = vmatpush1.msra.mxu0 %v4694
  %4696 = vmatprep.subr.mxu0 0.0
  %v4697 = vand.u32 %v2654, 4294901760
  %v4698 = vsub.f32 %v2654, %v4697
  %v4699 = vand.u32 %v4698, 4294901760
  %v4700 = vsub.f32 %v4698, %v4699
  %v4701 = vand.u32 %v4700, 4294901760
  %4702 = vmatpush1.msra.mxu0 %v4701
  %4703 = vmatprep.subr.mxu0 0.0
  %4704 = vmatpush2.msra.mxu0 0.0
  %4705 = vmatprep.subr.mxu0 0.0
  %4706 = vmatpush2.msra.mxu0 0.0
  %4707 = vmatprep.subr.mxu0 0.0
  %4708 = vmatpush2.msra.mxu0 0.0
  %4709 = vmatprep.subr.mxu0 0.0
  %4710 = vmatpush2.msra.mxu0 0.0
  %4711 = vmatprep.subr.mxu0 0.0
  %4712 = vmatpush2.msra.mxu0 0.0
  %4713 = vmatprep.subr.mxu0 0.0
  %4714 = vmatpush2.msra.mxu0 0.0
  %4715 = vmatprep.subr.mxu0 0.0
  %4716 = vmatpush2.msra.mxu0 0.0
  %4717 = vmatprep.subr.mxu0 0.0
  %4718 = vmatpush2.msra.mxu0 0.0
  %4719 = vmatprep.subr.mxu0 0.0
  %4720 = vmatpush2.msra.mxu0 0.0
  %4721 = vmatprep.subr.mxu0 0.0
  %4722 = vmatpush2.msra.mxu0 0.0
  %4723 = vmatprep.subr.mxu0 0.0
  %4724 = vmatpush2.msra.mxu0 0.0
  %4725 = vmatprep.subr.mxu0 0.0
  %4726 = vmatpush2.msra.mxu0 0.0
  %4727 = vmatprep.subr.mxu0 0.0
  %4728 = vmatpush2.msra.mxu0 0.0
  %4729 = vmatprep.subr.mxu0 0.0
  %4730 = vmatpush2.msra.mxu0 0.0
  %4731 = vmatprep.subr.mxu0 0.0
  %4732 = vmatpush2.msra.mxu0 0.0
  %4733 = vmatprep.subr.mxu0 0.0
  %4734 = vmatpush2.msra.mxu0 0.0
  %4735 = vmatprep.mubr.f32.mxu0 0.0
  %v4736 = vand.u32 %v4582, 4294901760
  %4737 = vmatmul.mubr.f32.gmra.mxu0 %v4736
  %v4738 = vpop.f32.mrf.mxu0
  %v4739 = vadd.f32 %v4658, %v4738
  %v4740 = vpop.f32.mrf.mxu0
  %4741 = vdwg.mxu0
  %4742 = vmatprep.subr.mxu0 0.0
  %4743 = vmatpush1.msra.mxu0 0.0
  %4744 = vmatprep.subr.mxu0 0.0
  %4745 = vmatpush1.msra.mxu0 0.0
  %4746 = vmatprep.subr.mxu0 0.0
  %4747 = vmatpush1.msra.mxu0 0.0
  %4748 = vmatprep.subr.mxu0 0.0
  %4749 = vmatpush1.msra.mxu0 0.0
  %4750 = vmatprep.subr.mxu0 0.0
  %4751 = vmatpush1.msra.mxu0 0.0
  %4752 = vmatprep.subr.mxu0 0.0
  %4753 = vmatpush1.msra.mxu0 0.0
  %4754 = vmatprep.subr.mxu0 0.0
  %4755 = vmatpush1.msra.mxu0 0.0
  %4756 = vmatprep.subr.mxu0 0.0
  %4757 = vmatpush1.msra.mxu0 0.0
  %4758 = vmatprep.subr.mxu0 0.0
  %4759 = vmatpush1.msra.mxu0 0.0
  %4760 = vmatprep.subr.mxu0 0.0
  %4761 = vmatpush1.msra.mxu0 0.0
  %4762 = vmatprep.subr.mxu0 0.0
  %4763 = vmatpush1.msra.mxu0 0.0
  %4764 = vmatprep.subr.mxu0 0.0
  %4765 = vmatpush1.msra.mxu0 0.0
  %4766 = vmatprep.subr.mxu0 0.0
  %4767 = vmatpush1.msra.mxu0 0.0
  %4768 = vmatprep.subr.mxu0 0.0
  %4769 = vmatpush1.msra.mxu0 0.0
  %4770 = vmatprep.subr.mxu0 0.0
  %v4771 = vand.u32 %v4575, 4294901760
  %v4772 = vsub.f32 %v4575, %v4771
  %4773 = vmatpush1.msra.mxu0 %v4772
  %4774 = vmatprep.subr.mxu0 0.0
  %v4775 = vand.u32 %v2654, 4294901760
  %v4776 = vsub.f32 %v2654, %v4775
  %4777 = vmatpush1.msra.mxu0 %v4776
  %4778 = vmatprep.subr.mxu0 0.0
  %4779 = vmatpush2.msra.mxu0 0.0
  %4780 = vmatprep.subr.mxu0 0.0
  %4781 = vmatpush2.msra.mxu0 0.0
  %4782 = vmatprep.subr.mxu0 0.0
  %4783 = vmatpush2.msra.mxu0 0.0
  %4784 = vmatprep.subr.mxu0 0.0
  %4785 = vmatpush2.msra.mxu0 0.0
  %4786 = vmatprep.subr.mxu0 0.0
  %4787 = vmatpush2.msra.mxu0 0.0
  %4788 = vmatprep.subr.mxu0 0.0
  %4789 = vmatpush2.msra.mxu0 0.0
  %4790 = vmatprep.subr.mxu0 0.0
  %4791 = vmatpush2.msra.mxu0 0.0
  %4792 = vmatprep.subr.mxu0 0.0
  %4793 = vmatpush2.msra.mxu0 0.0
  %4794 = vmatprep.subr.mxu0 0.0
  %4795 = vmatpush2.msra.mxu0 0.0
  %4796 = vmatprep.subr.mxu0 0.0
  %4797 = vmatpush2.msra.mxu0 0.0
  %4798 = vmatprep.subr.mxu0 0.0
  %4799 = vmatpush2.msra.mxu0 0.0
  %4800 = vmatprep.subr.mxu0 0.0
  %4801 = vmatpush2.msra.mxu0 0.0
  %4802 = vmatprep.subr.mxu0 0.0
  %4803 = vmatpush2.msra.mxu0 0.0
  %4804 = vmatprep.subr.mxu0 0.0
  %4805 = vmatpush2.msra.mxu0 0.0
  %4806 = vmatprep.subr.mxu0 0.0
  %4807 = vmatpush2.msra.mxu0 0.0
  %4808 = vmatprep.subr.mxu0 0.0
  %4809 = vmatpush2.msra.mxu0 0.0
  %4810 = vmatprep.mubr.f32.mxu0 0.0
  %v4811 = vand.u32 %v4582, 4294901760
  %v4812 = vsub.f32 %v4582, %v4811
  %4813 = vmatmul.mubr.f32.gmra.mxu0 %v4812
  %v4814 = vpop.f32.mrf.mxu0
  %v4815 = vadd.f32 %v4739, %v4814
  %v4816 = vpop.f32.mrf.mxu0
  %4817 = vdwg.mxu0
  %4818 = vmatprep.subr.mxu0 0.0
  %4819 = vmatpush1.msra.mxu0 0.0
  %4820 = vmatprep.subr.mxu0 0.0
  %4821 = vmatpush1.msra.mxu0 0.0
  %4822 = vmatprep.subr.mxu0 0.0
  %4823 = vmatpush1.msra.mxu0 0.0
  %4824 = vmatprep.subr.mxu0 0.0
  %4825 = vmatpush1.msra.mxu0 0.0
  %4826 = vmatprep.subr.mxu0 0.0
  %4827 = vmatpush1.msra.mxu0 0.0
  %4828 = vmatprep.subr.mxu0 0.0
  %4829 = vmatpush1.msra.mxu0 0.0
  %4830 = vmatprep.subr.mxu0 0.0
  %4831 = vmatpush1.msra.mxu0 0.0
  %4832 = vmatprep.subr.mxu0 0.0
  %4833 = vmatpush1.msra.mxu0 0.0
  %4834 = vmatprep.subr.mxu0 0.0
  %4835 = vmatpush1.msra.mxu0 0.0
  %4836 = vmatprep.subr.mxu0 0.0
  %4837 = vmatpush1.msra.mxu0 0.0
  %4838 = vmatprep.subr.mxu0 0.0
  %4839 = vmatpush1.msra.mxu0 0.0
  %4840 = vmatprep.subr.mxu0 0.0
  %4841 = vmatpush1.msra.mxu0 0.0
  %4842 = vmatprep.subr.mxu0 0.0
  %4843 = vmatpush1.msra.mxu0 0.0
  %4844 = vmatprep.subr.mxu0 0.0
  %4845 = vmatpush1.msra.mxu0 0.0
  %4846 = vmatprep.subr.mxu0 0.0
  %v4847 = vand.u32 %v4575, 4294901760
  %4848 = vmatpush1.msra.mxu0 %v4847
  %4849 = vmatprep.subr.mxu0 0.0
  %v4850 = vand.u32 %v2654, 4294901760
  %4851 = vmatpush1.msra.mxu0 %v4850
  %4852 = vmatprep.subr.mxu0 0.0
  %4853 = vmatpush2.msra.mxu0 0.0
  %4854 = vmatprep.subr.mxu0 0.0
  %4855 = vmatpush2.msra.mxu0 0.0
  %4856 = vmatprep.subr.mxu0 0.0
  %4857 = vmatpush2.msra.mxu0 0.0
  %4858 = vmatprep.subr.mxu0 0.0
  %4859 = vmatpush2.msra.mxu0 0.0
  %4860 = vmatprep.subr.mxu0 0.0
  %4861 = vmatpush2.msra.mxu0 0.0
  %4862 = vmatprep.subr.mxu0 0.0
  %4863 = vmatpush2.msra.mxu0 0.0
  %4864 = vmatprep.subr.mxu0 0.0
  %4865 = vmatpush2.msra.mxu0 0.0
  %4866 = vmatprep.subr.mxu0 0.0
  %4867 = vmatpush2.msra.mxu0 0.0
  %4868 = vmatprep.subr.mxu0 0.0
  %4869 = vmatpush2.msra.mxu0 0.0
  %4870 = vmatprep.subr.mxu0 0.0
  %4871 = vmatpush2.msra.mxu0 0.0
  %4872 = vmatprep.subr.mxu0 0.0
  %4873 = vmatpush2.msra.mxu0 0.0
  %4874 = vmatprep.subr.mxu0 0.0
  %4875 = vmatpush2.msra.mxu0 0.0
  %4876 = vmatprep.subr.mxu0 0.0
  %4877 = vmatpush2.msra.mxu0 0.0
  %4878 = vmatprep.subr.mxu0 0.0
  %4879 = vmatpush2.msra.mxu0 0.0
  %4880 = vmatprep.subr.mxu0 0.0
  %4881 = vmatpush2.msra.mxu0 0.0
  %4882 = vmatprep.subr.mxu0 0.0
  %4883 = vmatpush2.msra.mxu0 0.0
  %4884 = vmatprep.mubr.f32.mxu0 0.0
  %v4885 = vand.u32 %v4582, 4294901760
  %v4886 = vsub.f32 %v4582, %v4885
  %v4887 = vand.u32 %v4886, 4294901760
  %4888 = vmatmul.mubr.f32.gmra.mxu0 %v4887
  %v4889 = vpop.f32.mrf.mxu0
  %v4890 = vadd.f32 %v4815, %v4889
  %v4891 = vpop.f32.mrf.mxu0
  %4892 = vdwg.mxu0
  %4893 = vmatprep.subr.mxu0 0.0
  %4894 = vmatpush1.msra.mxu0 0.0
  %4895 = vmatprep.subr.mxu0 0.0
  %4896 = vmatpush1.msra.mxu0 0.0
  %4897 = vmatprep.subr.mxu0 0.0
  %4898 = vmatpush1.msra.mxu0 0.0
  %4899 = vmatprep.subr.mxu0 0.0
  %4900 = vmatpush1.msra.mxu0 0.0
  %4901 = vmatprep.subr.mxu0 0.0
  %4902 = vmatpush1.msra.mxu0 0.0
  %4903 = vmatprep.subr.mxu0 0.0
  %4904 = vmatpush1.msra.mxu0 0.0
  %4905 = vmatprep.subr.mxu0 0.0
  %4906 = vmatpush1.msra.mxu0 0.0
  %4907 = vmatprep.subr.mxu0 0.0
  %4908 = vmatpush1.msra.mxu0 0.0
  %4909 = vmatprep.subr.mxu0 0.0
  %4910 = vmatpush1.msra.mxu0 0.0
  %4911 = vmatprep.subr.mxu0 0.0
  %4912 = vmatpush1.msra.mxu0 0.0
  %4913 = vmatprep.subr.mxu0 0.0
  %4914 = vmatpush1.msra.mxu0 0.0
  %4915 = vmatprep.subr.mxu0 0.0
  %4916 = vmatpush1.msra.mxu0 0.0
  %4917 = vmatprep.subr.mxu0 0.0
  %4918 = vmatpush1.msra.mxu0 0.0
  %4919 = vmatprep.subr.mxu0 0.0
  %4920 = vmatpush1.msra.mxu0 0.0
  %4921 = vmatprep.subr.mxu0 0.0
  %v4922 = vand.u32 %v4575, 4294901760
  %v4923 = vsub.f32 %v4575, %v4922
  %v4924 = vand.u32 %v4923, 4294901760
  %4925 = vmatpush1.msra.mxu0 %v4924
  %4926 = vmatprep.subr.mxu0 0.0
  %v4927 = vand.u32 %v2654, 4294901760
  %v4928 = vsub.f32 %v2654, %v4927
  %v4929 = vand.u32 %v4928, 4294901760
  %4930 = vmatpush1.msra.mxu0 %v4929
  %4931 = vmatprep.subr.mxu0 0.0
  %4932 = vmatpush2.msra.mxu0 0.0
  %4933 = vmatprep.subr.mxu0 0.0
  %4934 = vmatpush2.msra.mxu0 0.0
  %4935 = vmatprep.subr.mxu0 0.0
  %4936 = vmatpush2.msra.mxu0 0.0
  %4937 = vmatprep.subr.mxu0 0.0
  %4938 = vmatpush2.msra.mxu0 0.0
  %4939 = vmatprep.subr.mxu0 0.0
  %4940 = vmatpush2.msra.mxu0 0.0
  %4941 = vmatprep.subr.mxu0 0.0
  %4942 = vmatpush2.msra.mxu0 0.0
  %4943 = vmatprep.subr.mxu0 0.0
  %4944 = vmatpush2.msra.mxu0 0.0
  %4945 = vmatprep.subr.mxu0 0.0
  %4946 = vmatpush2.msra.mxu0 0.0
  %4947 = vmatprep.subr.mxu0 0.0
  %4948 = vmatpush2.msra.mxu0 0.0
  %4949 = vmatprep.subr.mxu0 0.0
  %4950 = vmatpush2.msra.mxu0 0.0
  %4951 = vmatprep.subr.mxu0 0.0
  %4952 = vmatpush2.msra.mxu0 0.0
  %4953 = vmatprep.subr.mxu0 0.0
  %4954 = vmatpush2.msra.mxu0 0.0
  %4955 = vmatprep.subr.mxu0 0.0
  %4956 = vmatpush2.msra.mxu0 0.0
  %4957 = vmatprep.subr.mxu0 0.0
  %4958 = vmatpush2.msra.mxu0 0.0
  %4959 = vmatprep.subr.mxu0 0.0
  %4960 = vmatpush2.msra.mxu0 0.0
  %4961 = vmatprep.subr.mxu0 0.0
  %4962 = vmatpush2.msra.mxu0 0.0
  %4963 = vmatprep.mubr.f32.mxu0 0.0
  %v4964 = vand.u32 %v4582, 4294901760
  %4965 = vmatmul.mubr.f32.gmra.mxu0 %v4964
  %v4966 = vpop.f32.mrf.mxu0
  %v4967 = vadd.f32 %v4890, %v4966
  %v4968 = vpop.f32.mrf.mxu0
  %4969 = vdwg.mxu0
  %4970 = vmatprep.subr.mxu0 0.0
  %4971 = vmatpush1.msra.mxu0 0.0
  %4972 = vmatprep.subr.mxu0 0.0
  %4973 = vmatpush1.msra.mxu0 0.0
  %4974 = vmatprep.subr.mxu0 0.0
  %4975 = vmatpush1.msra.mxu0 0.0
  %4976 = vmatprep.subr.mxu0 0.0
  %4977 = vmatpush1.msra.mxu0 0.0
  %4978 = vmatprep.subr.mxu0 0.0
  %4979 = vmatpush1.msra.mxu0 0.0
  %4980 = vmatprep.subr.mxu0 0.0
  %4981 = vmatpush1.msra.mxu0 0.0
  %4982 = vmatprep.subr.mxu0 0.0
  %4983 = vmatpush1.msra.mxu0 0.0
  %4984 = vmatprep.subr.mxu0 0.0
  %4985 = vmatpush1.msra.mxu0 0.0
  %4986 = vmatprep.subr.mxu0 0.0
  %4987 = vmatpush1.msra.mxu0 0.0
  %4988 = vmatprep.subr.mxu0 0.0
  %4989 = vmatpush1.msra.mxu0 0.0
  %4990 = vmatprep.subr.mxu0 0.0
  %4991 = vmatpush1.msra.mxu0 0.0
  %4992 = vmatprep.subr.mxu0 0.0
  %4993 = vmatpush1.msra.mxu0 0.0
  %4994 = vmatprep.subr.mxu0 0.0
  %4995 = vmatpush1.msra.mxu0 0.0
  %4996 = vmatprep.subr.mxu0 0.0
  %4997 = vmatpush1.msra.mxu0 0.0
  %4998 = vmatprep.subr.mxu0 0.0
  %v4999 = vand.u32 %v4575, 4294901760
  %5000 = vmatpush1.msra.mxu0 %v4999
  %5001 = vmatprep.subr.mxu0 0.0
  %v5002 = vand.u32 %v2654, 4294901760
  %5003 = vmatpush1.msra.mxu0 %v5002
  %5004 = vmatprep.subr.mxu0 0.0
  %5005 = vmatpush2.msra.mxu0 0.0
  %5006 = vmatprep.subr.mxu0 0.0
  %5007 = vmatpush2.msra.mxu0 0.0
  %5008 = vmatprep.subr.mxu0 0.0
  %5009 = vmatpush2.msra.mxu0 0.0
  %5010 = vmatprep.subr.mxu0 0.0
  %5011 = vmatpush2.msra.mxu0 0.0
  %5012 = vmatprep.subr.mxu0 0.0
  %5013 = vmatpush2.msra.mxu0 0.0
  %5014 = vmatprep.subr.mxu0 0.0
  %5015 = vmatpush2.msra.mxu0 0.0
  %5016 = vmatprep.subr.mxu0 0.0
  %5017 = vmatpush2.msra.mxu0 0.0
  %5018 = vmatprep.subr.mxu0 0.0
  %5019 = vmatpush2.msra.mxu0 0.0
  %5020 = vmatprep.subr.mxu0 0.0
  %5021 = vmatpush2.msra.mxu0 0.0
  %5022 = vmatprep.subr.mxu0 0.0
  %5023 = vmatpush2.msra.mxu0 0.0
  %5024 = vmatprep.subr.mxu0 0.0
  %5025 = vmatpush2.msra.mxu0 0.0
  %5026 = vmatprep.subr.mxu0 0.0
  %5027 = vmatpush2.msra.mxu0 0.0
  %5028 = vmatprep.subr.mxu0 0.0
  %5029 = vmatpush2.msra.mxu0 0.0
  %5030 = vmatprep.subr.mxu0 0.0
  %5031 = vmatpush2.msra.mxu0 0.0
  %5032 = vmatprep.subr.mxu0 0.0
  %5033 = vmatpush2.msra.mxu0 0.0
  %5034 = vmatprep.subr.mxu0 0.0
  %5035 = vmatpush2.msra.mxu0 0.0
  %5036 = vmatprep.mubr.f32.mxu0 0.0
  %v5037 = vand.u32 %v4582, 4294901760
  %5038 = vmatmul.mubr.f32.gmra.mxu0 %v5037
  %v5039 = vpop.f32.mrf.mxu0
  %v5040 = vadd.f32 %v4967, %v5039
  %v5041 = vpop.f32.mrf.mxu0
  %5042 = vdwg.mxu0
  %5043 = vst [vmem:[%s3] sm:$0xff] %v5040
  // Predicated region
  $region14: #{cross_spatial_window_attention.1} parent=0 // pred_check
    _
  $region15: #{cross_spatial_window_attention.1} parent=0 // pred_check_branch
    %5045 = sbr.rel (0) target = $region17
  $region16: #{cross_spatial_window_attention.1} parent=0 // pred_region
    _
  $region17: #{cross_spatial_window_attention.1} parent=0 // pred_fallthru
    _
  // Predicated region
  $region18: #{cross_spatial_window_attention.1} parent=0 // pred_check
    _
  $region19: #{cross_spatial_window_attention.1} parent=0 // pred_check_branch
    %5047 = sbr.rel (0) target = $region21
  $region20: #{cross_spatial_window_attention.1} parent=0 // pred_region
    _
  $region21: #{cross_spatial_window_attention.1} parent=0 // pred_fallthru
    _

</llo_original>
